<compile_context>
chip_gen: v5e
topology: v5e:2x2
jax: 0.10.0
libtpu: 0.0.40
codegen_flags: <defaults>
</compile_context>

<pallas_src>
import functools

import jax
import jax.numpy as jnp
from jax.experimental import pallas as pl
from jax.experimental.pallas import tpu as pltpu


LANE = 128          # node-dimension tile (lane width)
VMEM_LIMIT = 32 * 1024 * 1024


# ----------------------------------------------------------------------------
# Kernel 1: one GCN layer  h_out = relu((Ahat @ h) @ W + b)
# grid = (row tiles of Ahat, col tiles of Ahat); reduction axis last.
# ----------------------------------------------------------------------------
def gcn_layer_kernel(adj_ref, h_ref, w_ref, b_ref, out_ref, acc_ref):
    k = pl.program_id(1)

    @pl.when(k == 0)
    def _():
        acc_ref[...] = jnp.zeros_like(acc_ref)

    # (TM, TK) bf16 @ (TK, Cin) bf16 on the MXU, f32 accumulate.
    acc_ref[...] += jnp.dot(adj_ref[...], h_ref[...],
                            preferred_element_type=jnp.float32)

    @pl.when(k == pl.num_programs(1) - 1)
    def _():
        agg = acc_ref[...].astype(jnp.bfloat16)                   # (TM, Cin)
        z = jnp.dot(agg, w_ref[...], preferred_element_type=jnp.float32)
        z = z + b_ref[...]
        out_ref[...] = jnp.maximum(z, 0.0).astype(out_ref.dtype)


def gcn_layer(adj, h, w, b, *, tile=LANE):
    npad, cin = h.shape
    cout = w.shape[1]
    tm = tk = min(tile, npad)
    grid = (npad // tm, npad // tk)

    flops = 2 * npad * npad * cin + 2 * npad * cin * cout
    bytes_accessed = (adj.size * adj.dtype.itemsize
                      + h.size * h.dtype.itemsize
                      + w.size * w.dtype.itemsize
                      + b.size * b.dtype.itemsize
                      + npad * cout * 2)

    return pl.pallas_call(
        gcn_layer_kernel,
        out_shape=jax.ShapeDtypeStruct((npad, cout), jnp.bfloat16),
        grid=grid,
        in_specs=[
            pl.BlockSpec((tm, tk), lambda i, k: (i, k)),      # adj tile
            pl.BlockSpec((tk, cin), lambda i, k: (k, 0)),     # h col-block
            pl.BlockSpec((cin, cout), lambda i, k: (0, 0)),   # W (whole)
            pl.BlockSpec((1, cout), lambda i, k: (0, 0)),     # b (whole)
        ],
        out_specs=pl.BlockSpec((tm, cout), lambda i, k: (i, 0)),
        scratch_shapes=[pltpu.VMEM((tm, cin), jnp.float32)],
        compiler_params=pltpu.CompilerParams(
            dimension_semantics=("parallel", "arbitrary"),
            vmem_limit_bytes=VMEM_LIMIT),
        cost_estimate=pl.CostEstimate(flops=flops, transcendentals=0,
                                      bytes_accessed=bytes_accessed),
    )(adj, h, w, b)


# ----------------------------------------------------------------------------
# Kernel 2: global_mean_pool (pool @ h4, accumulated over node tiles) + MLP.
# ----------------------------------------------------------------------------
def pool_mlp_kernel(pool_ref, h_ref, wslab_ref, bslab_ref, out_ref, acc_ref,
                    *, mlp_dims, w_offsets):
    k = pl.program_id(0)

    @pl.when(k == 0)
    def _():
        acc_ref[...] = jnp.zeros_like(acc_ref)

    acc_ref[...] += jnp.dot(pool_ref[...], h_ref[...],
                            preferred_element_type=jnp.float32)      # (G, 48)

    @pl.when(k == pl.num_programs(0) - 1)
    def _():
        z = acc_ref[...]                                             # f32
        n_layers = len(mlp_dims)
        for li, (din, dout) in enumerate(mlp_dims):
            off = w_offsets[li]
            w = wslab_ref[off:off + din, 0:dout].astype(jnp.bfloat16)
            bias = bslab_ref[8 * li:8 * li + 1, 0:dout]
            z = jnp.dot(z.astype(jnp.bfloat16), w,
                        preferred_element_type=jnp.float32) + bias
            if li < n_layers - 1:
                z = jnp.maximum(z, 0.0)
        out_ref[...] = z.astype(out_ref.dtype)


def pool_mlp(pool, h, wslab, bslab, mlp_dims, w_offsets, out_channels,
             *, tile=LANE):
    g, npad = pool.shape
    c = h.shape[1]
    tk = min(tile, npad)
    grid = (npad // tk,)

    kern = functools.partial(pool_mlp_kernel,
                             mlp_dims=tuple(mlp_dims),
                             w_offsets=tuple(w_offsets))
    return pl.pallas_call(
        kern,
        out_shape=jax.ShapeDtypeStruct((g, out_channels), jnp.float32),
        grid=grid,
        in_specs=[
            pl.BlockSpec((g, tk), lambda k: (0, k)),          # pool col-block
            pl.BlockSpec((tk, c), lambda k: (k, 0)),          # h4 row-block
            pl.BlockSpec(wslab.shape, lambda k: (0, 0)),      # packed weights
            pl.BlockSpec(bslab.shape, lambda k: (0, 0)),      # packed biases
        ],
        out_specs=pl.BlockSpec((g, out_channels), lambda k: (0, 0)),
        scratch_shapes=[pltpu.VMEM((g, c), jnp.float32)],
        compiler_params=pltpu.CompilerParams(
            dimension_semantics=("arbitrary",),
            vmem_limit_bytes=VMEM_LIMIT),
    )(pool, h, wslab, bslab)


# ----------------------------------------------------------------------------
# Plain-JAX glue: dense normalized adjacency, pooling matrix, MLP slab packing.
# ----------------------------------------------------------------------------
def build_normalized_adjacency(edge_index, num_nodes):
    """GCN normalization: Ahat = D^{-1/2}(A + I)D^{-1/2}."""
    src, dst = edge_index[0], edge_index[1]
    adj = jnp.zeros((num_nodes, num_nodes), jnp.float32)
    adj = adj.at[dst, src].add(1.0)
    adj = adj + jnp.eye(num_nodes, dtype=jnp.float32)
    deg = jnp.sum(adj, axis=1)
    dinv = jnp.where(deg > 0, 1.0 / jnp.sqrt(deg), 0.0)
    return dinv[:, None] * adj * dinv[None, :]


def build_mean_pool_matrix(batch, num_graphs):
    """(G, N) matrix P with P[g, i] = 1/|graph g| if batch[i] == g."""
    onehot = (batch[None, :] == jnp.arange(num_graphs)[:, None]).astype(jnp.float32)
    counts = jnp.maximum(jnp.sum(onehot, axis=1, keepdims=True), 1.0)
    return onehot / counts


def pack_mlp_params(params, mlp_dims):
    """Pack the 4 MLP weights into one slab (sublane-aligned row offsets) and
    the 4 biases into one slab (one 8-row band per bias)."""
    offsets, off = [], 0
    for din, _ in mlp_dims:
        offsets.append(off)
        off += ((din + 7) // 8) * 8
    max_dout = max(d for _, d in mlp_dims)
    wslab = jnp.zeros((off, max_dout), jnp.float32)
    bslab = jnp.zeros((8 * len(mlp_dims), max_dout), jnp.float32)
    for li, (din, dout) in enumerate(mlp_dims):
        wslab = wslab.at[offsets[li]:offsets[li] + din, 0:dout].set(
            params[f"mw{li + 1}"])
        bslab = bslab.at[8 * li:8 * li + 1, 0:dout].set(params[f"mb{li + 1}"])
    return wslab, bslab, offsets


# ----------------------------------------------------------------------------
# Forward wrapper.
# ----------------------------------------------------------------------------
@functools.partial(jax.jit, static_argnames=("num_graphs", "out_channels"))
def xxsgcn_forward(x, edge_index, batch, params, *, num_graphs, out_channels):
    n = x.shape[0]
    npad = ((n + LANE - 1) // LANE) * LANE   # pad node dim to a lane multiple

    adj = build_normalized_adjacency(edge_index, n)
    pool = build_mean_pool_matrix(batch, num_graphs)

    # Zero-pad the node dimension; padded nodes never reach real nodes
    # (zero adjacency columns) nor the pooled output (zero pool weights).
    adj_p = jnp.zeros((npad, npad), jnp.float32).at[:n, :n].set(adj)
    pool_p = jnp.zeros((num_graphs, npad), jnp.float32).at[:, :n].set(pool)
    h = jnp.zeros((npad, x.shape[1]), jnp.float32).at[:n, :].set(x)

    adj_bf16 = adj_p.astype(jnp.bfloat16)
    pool_bf16 = pool_p.astype(jnp.bfloat16)
    h = h.astype(jnp.bfloat16)

    # 4 GCN layers: relu((Ahat @ h) @ W + b), tiled over the node dimension.
    for li in range(1, 5):
        h = gcn_layer(adj_bf16, h,
                      params[f"w{li}"].astype(jnp.bfloat16),
                      params[f"b{li}"])

    mlp_dims = ((48, 24), (24, 12), (12, 4), (4, out_channels))
    wslab, bslab, w_offsets = pack_mlp_params(params, mlp_dims)
    return pool_mlp(pool_bf16, h, wslab, bslab, mlp_dims, w_offsets,
                    out_channels)


# ----------------------------------------------------------------------------
# Deterministic parameter init (synthetic; shapes follow the nn.Module).
# ----------------------------------------------------------------------------
def init_params(key, in_channels, out_channels):
    dims_gcn = [(in_channels, 6), (6, 12), (12, 24), (24, 48)]
    dims_mlp = [(48, 24), (24, 12), (12, 4), (4, out_channels)]
    params = {}
    keys = jax.random.split(key, len(dims_gcn) + len(dims_mlp))
    for i, (din, dout) in enumerate(dims_gcn):
        scale = 1.0 / jnp.sqrt(jnp.float32(din))
        params[f"w{i+1}"] = jax.random.normal(keys[i], (din, dout), jnp.float32) * scale
        params[f"b{i+1}"] = jnp.zeros((1, dout), jnp.float32)
    for i, (din, dout) in enumerate(dims_mlp):
        k = keys[len(dims_gcn) + i]
        scale = 1.0 / jnp.sqrt(jnp.float32(din))
        params[f"mw{i+1}"] = jax.random.normal(k, (din, dout), jnp.float32) * scale
        params[f"mb{i+1}"] = jnp.full((1, dout), 0.01, jnp.float32)
    return params


if __name__ == "__main__":
    in_channels = 4
    out_channels = 2
    nodes_per_graph = 32
    num_graphs = 8                       # batch more graphs: N = 256 fills tiles
    num_nodes = nodes_per_graph * num_graphs

    key = jax.random.PRNGKey(0)
    kx, kp = jax.random.split(key)

    # Node features.
    x = jax.random.normal(kx, (num_nodes, in_channels), jnp.float32)

    # Undirected ring within each graph -> directed edge list (2, E).
    srcs, dsts = [], []
    for g in range(num_graphs):
        base = g * nodes_per_graph
        for i in range(nodes_per_graph):
            a = base + i
            b = base + (i + 1) % nodes_per_graph
            srcs += [a, b]
            dsts += [b, a]
    edge_index = jnp.array([srcs, dsts], dtype=jnp.int32)

    # Graph membership of each node.
    batch = jnp.repeat(jnp.arange(num_graphs, dtype=jnp.int32), nodes_per_graph)

    params = init_params(kp, in_channels, out_channels)

    out = xxsgcn_forward(
        x, edge_index, batch, params,
        num_graphs=num_graphs, out_channels=out_channels)
    out = jax.block_until_ready(out)

    assert out.shape == (num_graphs, out_channels)
    assert bool(jnp.all(jnp.isfinite(out)))
    print("KERNEL_OK")
</pallas_src>

<mosaic_0001>
module attributes {stable_mosaic.version = 11 : i64} {
  func.func @gcn_layer_kernel(%arg0: i32, %arg1: i32, %arg2: memref<128x128xbf16, #tpu.memory_space<vmem>>, %arg3: memref<128x4xbf16, #tpu.memory_space<vmem>>, %arg4: memref<4x6xbf16, #tpu.memory_space<vmem>>, %arg5: memref<1x6xf32, #tpu.memory_space<vmem>>, %arg6: memref<128x6xbf16, #tpu.memory_space<vmem>>, %arg7: memref<128x4xf32, #tpu.memory_space<vmem>>) attributes {dimension_semantics = [#tpu.dimension_semantics<parallel>, #tpu.dimension_semantics<arbitrary>], iteration_bounds = array<i64: 2, 2>, scalar_prefetch = 0 : i64, scratch_operands = 1 : i64, tpu.core_type = #tpu.core_type<tc>, window_params = [{transform_indices = @transform_0, window_bounds = array<i64: 128, 128>}, {transform_indices = @transform_1, window_bounds = array<i64: 128, 4>}, {pipeline_mode = #tpu.pipeline_mode<synchronous>, transform_indices = @transform_2, window_bounds = array<i64: 4, 6>}, {pipeline_mode = #tpu.pipeline_mode<synchronous>, transform_indices = @transform_3, window_bounds = array<i64: 1, 6>}, {transform_indices = @transform_4, window_bounds = array<i64: 128, 6>}]} {
    %c0_i32 = arith.constant 0 : i32
    %0 = arith.cmpi eq, %arg1, %c0_i32 : i32
    %1 = arith.extui %0 : i1 to i32
    %c0_i32_0 = arith.constant 0 : i32
    %2 = arith.cmpi ne, %1, %c0_i32_0 : i32
    scf.if %2 {
      %cst_9 = arith.constant 0.000000e+00 : f32
      %12 = vector.broadcast %cst_9 : f32 to vector<128x4xf32>
      %c0_10 = arith.constant 0 : index
      %c0_11 = arith.constant 0 : index
      %13 = vector.load %arg7[%c0_10, %c0_11] : memref<128x4xf32, #tpu.memory_space<vmem>>, vector<128x4xf32>
      tpu.vector_store %arg7[%c0_10, %c0_11], %12 {strides = array<i32>} : memref<128x4xf32, #tpu.memory_space<vmem>>, vector<128x4xf32>,
    } else {
    }
    %c0 = arith.constant 0 : index
    %c0_1 = arith.constant 0 : index
    %3 = vector.load %arg7[%c0, %c0_1] : memref<128x4xf32, #tpu.memory_space<vmem>>, vector<128x4xf32>
    %c0_2 = arith.constant 0 : index
    %c0_3 = arith.constant 0 : index
    %4 = vector.load %arg2[%c0_2, %c0_3] : memref<128x128xbf16, #tpu.memory_space<vmem>>, vector<128x128xbf16>
    %c0_4 = arith.constant 0 : index
    %c0_5 = arith.constant 0 : index
    %5 = vector.load %arg3[%c0_4, %c0_5] : memref<128x4xbf16, #tpu.memory_space<vmem>>, vector<128x4xbf16>
    %cst = arith.constant dense<0.000000e+00> : vector<128x4xf32>
    %6 = tpu.matmul %4, %5, %cst {dimension_numbers = #tpu.dot_dimension_numbers<[1], [0], [0], [1], [0, 0, 1, 1], [], []>} : vector<128x128xbf16>, vector<128x4xbf16>, vector<128x4xf32> -> vector<128x4xf32>
    %7 = arith.addf %3, %6 : vector<128x4xf32>
    %c0_6 = arith.constant 0 : index
    %c0_7 = arith.constant 0 : index
    %8 = vector.load %arg7[%c0_6, %c0_7] : memref<128x4xf32, #tpu.memory_space<vmem>>, vector<128x4xf32>
    tpu.vector_store %arg7[%c0_6, %c0_7], %7 {strides = array<i32>} : memref<128x4xf32, #tpu.memory_space<vmem>>, vector<128x4xf32>,
    %c1_i32 = arith.constant 1 : i32
    %9 = arith.cmpi eq, %arg1, %c1_i32 : i32
    %10 = arith.extui %9 : i1 to i32
    %c0_i32_8 = arith.constant 0 : i32
    %11 = arith.cmpi ne, %10, %c0_i32_8 : i32
    scf.if %11 {
      %c0_9 = arith.constant 0 : index
      %c0_10 = arith.constant 0 : index
      %12 = vector.load %arg7[%c0_9, %c0_10] : memref<128x4xf32, #tpu.memory_space<vmem>>, vector<128x4xf32>
      %13 = arith.truncf %12 : vector<128x4xf32> to vector<128x4xbf16>
      %c0_11 = arith.constant 0 : index
      %c0_12 = arith.constant 0 : index
      %14 = vector.load %arg4[%c0_11, %c0_12] : memref<4x6xbf16, #tpu.memory_space<vmem>>, vector<4x6xbf16>
      %cst_13 = arith.constant dense<0.000000e+00> : vector<128x6xf32>
      %15 = tpu.matmul %13, %14, %cst_13 {dimension_numbers = #tpu.dot_dimension_numbers<[1], [0], [0], [1], [0, 0, 1, 1], [], []>} : vector<128x4xbf16>, vector<4x6xbf16>, vector<128x6xf32> -> vector<128x6xf32>
      %c0_14 = arith.constant 0 : index
      %c0_15 = arith.constant 0 : index
      %16 = vector.load %arg5[%c0_14, %c0_15] : memref<1x6xf32, #tpu.memory_space<vmem>>, vector<1x6xf32>
      %17 = vector.broadcast %16 : vector<1x6xf32> to vector<128x6xf32>
      %18 = arith.addf %15, %17 : vector<128x6xf32>
      %cst_16 = arith.constant 0.000000e+00 : f32
      %19 = vector.broadcast %cst_16 : f32 to vector<128x6xf32>
      %20 = arith.maximumf %18, %19 : vector<128x6xf32>
      %21 = arith.truncf %20 : vector<128x6xf32> to vector<128x6xbf16>
      %c0_17 = arith.constant 0 : index
      %c0_18 = arith.constant 0 : index
      %22 = vector.load %arg6[%c0_17, %c0_18] : memref<128x6xbf16, #tpu.memory_space<vmem>>, vector<128x6xbf16>
      tpu.vector_store %arg6[%c0_17, %c0_18], %21 {strides = array<i32>} : memref<128x6xbf16, #tpu.memory_space<vmem>>, vector<128x6xbf16>,
    } else {
    }
    return
  }
  func.func @transform_0(%arg0: i32, %arg1: i32) -> (i32, i32) {
    %c0_i32 = arith.constant 0 : i32
    return %arg0, %arg1 : i32, i32
  }
  func.func @transform_1(%arg0: i32, %arg1: i32) -> (i32, i32) {
    %c0_i32 = arith.constant 0 : i32
    %c0_i32_0 = arith.constant 0 : i32
    return %arg1, %c0_i32 : i32, i32
  }
  func.func @transform_2(%arg0: i32, %arg1: i32) -> (i32, i32) {
    %c0_i32 = arith.constant 0 : i32
    %c0_i32_0 = arith.constant 0 : i32
    %c0_i32_1 = arith.constant 0 : i32
    return %c0_i32, %c0_i32_0 : i32, i32
  }
  func.func @transform_3(%arg0: i32, %arg1: i32) -> (i32, i32) {
    %c0_i32 = arith.constant 0 : i32
    %c0_i32_0 = arith.constant 0 : i32
    %c0_i32_1 = arith.constant 0 : i32
    return %c0_i32, %c0_i32_0 : i32, i32
  }
  func.func @transform_4(%arg0: i32, %arg1: i32) -> (i32, i32) {
    %c0_i32 = arith.constant 0 : i32
    %c0_i32_0 = arith.constant 0 : i32
    return %arg0, %c0_i32 : i32, i32
  }
}

module attributes {stable_mosaic.version = 11 : i64} {
  func.func @gcn_layer_kernel(%arg0: i32, %arg1: i32, %arg2: memref<128x128xbf16, #tpu.memory_space<vmem>>, %arg3: memref<128x6xbf16, #tpu.memory_space<vmem>>, %arg4: memref<6x12xbf16, #tpu.memory_space<vmem>>, %arg5: memref<1x12xf32, #tpu.memory_space<vmem>>, %arg6: memref<128x12xbf16, #tpu.memory_space<vmem>>, %arg7: memref<128x6xf32, #tpu.memory_space<vmem>>) attributes {dimension_semantics = [#tpu.dimension_semantics<parallel>, #tpu.dimension_semantics<arbitrary>], iteration_bounds = array<i64: 2, 2>, scalar_prefetch = 0 : i64, scratch_operands = 1 : i64, tpu.core_type = #tpu.core_type<tc>, window_params = [{transform_indices = @transform_0, window_bounds = array<i64: 128, 128>}, {transform_indices = @transform_1, window_bounds = array<i64: 128, 6>}, {pipeline_mode = #tpu.pipeline_mode<synchronous>, transform_indices = @transform_2, window_bounds = array<i64: 6, 12>}, {pipeline_mode = #tpu.pipeline_mode<synchronous>, transform_indices = @transform_3, window_bounds = array<i64: 1, 12>}, {transform_indices = @transform_4, window_bounds = array<i64: 128, 12>}]} {
    %c0_i32 = arith.constant 0 : i32
    %0 = arith.cmpi eq, %arg1, %c0_i32 : i32
    %1 = arith.extui %0 : i1 to i32
    %c0_i32_0 = arith.constant 0 : i32
    %2 = arith.cmpi ne, %1, %c0_i32_0 : i32
    scf.if %2 {
      %cst_9 = arith.constant 0.000000e+00 : f32
      %12 = vector.broadcast %cst_9 : f32 to vector<128x6xf32>
      %c0_10 = arith.constant 0 : index
      %c0_11 = arith.constant 0 : index
      %13 = vector.load %arg7[%c0_10, %c0_11] : memref<128x6xf32, #tpu.memory_space<vmem>>, vector<128x6xf32>
      tpu.vector_store %arg7[%c0_10, %c0_11], %12 {strides = array<i32>} : memref<128x6xf32, #tpu.memory_space<vmem>>, vector<128x6xf32>,
    } else {
    }
    %c0 = arith.constant 0 : index
    %c0_1 = arith.constant 0 : index
    %3 = vector.load %arg7[%c0, %c0_1] : memref<128x6xf32, #tpu.memory_space<vmem>>, vector<128x6xf32>
    %c0_2 = arith.constant 0 : index
    %c0_3 = arith.constant 0 : index
    %4 = vector.load %arg2[%c0_2, %c0_3] : memref<128x128xbf16, #tpu.memory_space<vmem>>, vector<128x128xbf16>
    %c0_4 = arith.constant 0 : index
    %c0_5 = arith.constant 0 : index
    %5 = vector.load %arg3[%c0_4, %c0_5] : memref<128x6xbf16, #tpu.memory_space<vmem>>, vector<128x6xbf16>
    %cst = arith.constant dense<0.000000e+00> : vector<128x6xf32>
    %6 = tpu.matmul %4, %5, %cst {dimension_numbers = #tpu.dot_dimension_numbers<[1], [0], [0], [1], [0, 0, 1, 1], [], []>} : vector<128x128xbf16>, vector<128x6xbf16>, vector<128x6xf32> -> vector<128x6xf32>
    %7 = arith.addf %3, %6 : vector<128x6xf32>
    %c0_6 = arith.constant 0 : index
    %c0_7 = arith.constant 0 : index
    %8 = vector.load %arg7[%c0_6, %c0_7] : memref<128x6xf32, #tpu.memory_space<vmem>>, vector<128x6xf32>
    tpu.vector_store %arg7[%c0_6, %c0_7], %7 {strides = array<i32>} : memref<128x6xf32, #tpu.memory_space<vmem>>, vector<128x6xf32>,
    %c1_i32 = arith.constant 1 : i32
    %9 = arith.cmpi eq, %arg1, %c1_i32 : i32
    %10 = arith.extui %9 : i1 to i32
    %c0_i32_8 = arith.constant 0 : i32
    %11 = arith.cmpi ne, %10, %c0_i32_8 : i32
    scf.if %11 {
      %c0_9 = arith.constant 0 : index
      %c0_10 = arith.constant 0 : index
      %12 = vector.load %arg7[%c0_9, %c0_10] : memref<128x6xf32, #tpu.memory_space<vmem>>, vector<128x6xf32>
      %13 = arith.truncf %12 : vector<128x6xf32> to vector<128x6xbf16>
      %c0_11 = arith.constant 0 : index
      %c0_12 = arith.constant 0 : index
      %14 = vector.load %arg4[%c0_11, %c0_12] : memref<6x12xbf16, #tpu.memory_space<vmem>>, vector<6x12xbf16>
      %cst_13 = arith.constant dense<0.000000e+00> : vector<128x12xf32>
      %15 = tpu.matmul %13, %14, %cst_13 {dimension_numbers = #tpu.dot_dimension_numbers<[1], [0], [0], [1], [0, 0, 1, 1], [], []>} : vector<128x6xbf16>, vector<6x12xbf16>, vector<128x12xf32> -> vector<128x12xf32>
      %c0_14 = arith.constant 0 : index
      %c0_15 = arith.constant 0 : index
      %16 = vector.load %arg5[%c0_14, %c0_15] : memref<1x12xf32, #tpu.memory_space<vmem>>, vector<1x12xf32>
      %17 = vector.broadcast %16 : vector<1x12xf32> to vector<128x12xf32>
      %18 = arith.addf %15, %17 : vector<128x12xf32>
      %cst_16 = arith.constant 0.000000e+00 : f32
      %19 = vector.broadcast %cst_16 : f32 to vector<128x12xf32>
      %20 = arith.maximumf %18, %19 : vector<128x12xf32>
      %21 = arith.truncf %20 : vector<128x12xf32> to vector<128x12xbf16>
      %c0_17 = arith.constant 0 : index
      %c0_18 = arith.constant 0 : index
      %22 = vector.load %arg6[%c0_17, %c0_18] : memref<128x12xbf16, #tpu.memory_space<vmem>>, vector<128x12xbf16>
      tpu.vector_store %arg6[%c0_17, %c0_18], %21 {strides = array<i32>} : memref<128x12xbf16, #tpu.memory_space<vmem>>, vector<128x12xbf16>,
    } else {
    }
    return
  }
  func.func @transform_0(%arg0: i32, %arg1: i32) -> (i32, i32) {
    %c0_i32 = arith.constant 0 : i32
    return %arg0, %arg1 : i32, i32
  }
  func.func @transform_1(%arg0: i32, %arg1: i32) -> (i32, i32) {
    %c0_i32 = arith.constant 0 : i32
    %c0_i32_0 = arith.constant 0 : i32
    return %arg1, %c0_i32 : i32, i32
  }
  func.func @transform_2(%arg0: i32, %arg1: i32) -> (i32, i32) {
    %c0_i32 = arith.constant 0 : i32
    %c0_i32_0 = arith.constant 0 : i32
    %c0_i32_1 = arith.constant 0 : i32
    return %c0_i32, %c0_i32_0 : i32, i32
  }
  func.func @transform_3(%arg0: i32, %arg1: i32) -> (i32, i32) {
    %c0_i32 = arith.constant 0 : i32
    %c0_i32_0 = arith.constant 0 : i32
    %c0_i32_1 = arith.constant 0 : i32
    return %c0_i32, %c0_i32_0 : i32, i32
  }
  func.func @transform_4(%arg0: i32, %arg1: i32) -> (i32, i32) {
    %c0_i32 = arith.constant 0 : i32
    %c0_i32_0 = arith.constant 0 : i32
    return %arg0, %c0_i32 : i32, i32
  }
}

module attributes {stable_mosaic.version = 11 : i64} {
  func.func @gcn_layer_kernel(%arg0: i32, %arg1: i32, %arg2: memref<128x128xbf16, #tpu.memory_space<vmem>>, %arg3: memref<128x12xbf16, #tpu.memory_space<vmem>>, %arg4: memref<12x24xbf16, #tpu.memory_space<vmem>>, %arg5: memref<1x24xf32, #tpu.memory_space<vmem>>, %arg6: memref<128x24xbf16, #tpu.memory_space<vmem>>, %arg7: memref<128x12xf32, #tpu.memory_space<vmem>>) attributes {dimension_semantics = [#tpu.dimension_semantics<parallel>, #tpu.dimension_semantics<arbitrary>], iteration_bounds = array<i64: 2, 2>, scalar_prefetch = 0 : i64, scratch_operands = 1 : i64, tpu.core_type = #tpu.core_type<tc>, window_params = [{transform_indices = @transform_0, window_bounds = array<i64: 128, 128>}, {transform_indices = @transform_1, window_bounds = array<i64: 128, 12>}, {pipeline_mode = #tpu.pipeline_mode<synchronous>, transform_indices = @transform_2, window_bounds = array<i64: 12, 24>}, {pipeline_mode = #tpu.pipeline_mode<synchronous>, transform_indices = @transform_3, window_bounds = array<i64: 1, 24>}, {transform_indices = @transform_4, window_bounds = array<i64: 128, 24>}]} {
    %c0_i32 = arith.constant 0 : i32
    %0 = arith.cmpi eq, %arg1, %c0_i32 : i32
    %1 = arith.extui %0 : i1 to i32
    %c0_i32_0 = arith.constant 0 : i32
    %2 = arith.cmpi ne, %1, %c0_i32_0 : i32
    scf.if %2 {
      %cst_9 = arith.constant 0.000000e+00 : f32
      %12 = vector.broadcast %cst_9 : f32 to vector<128x12xf32>
      %c0_10 = arith.constant 0 : index
      %c0_11 = arith.constant 0 : index
      %13 = vector.load %arg7[%c0_10, %c0_11] : memref<128x12xf32, #tpu.memory_space<vmem>>, vector<128x12xf32>
      tpu.vector_store %arg7[%c0_10, %c0_11], %12 {strides = array<i32>} : memref<128x12xf32, #tpu.memory_space<vmem>>, vector<128x12xf32>,
    } else {
    }
    %c0 = arith.constant 0 : index
    %c0_1 = arith.constant 0 : index
    %3 = vector.load %arg7[%c0, %c0_1] : memref<128x12xf32, #tpu.memory_space<vmem>>, vector<128x12xf32>
    %c0_2 = arith.constant 0 : index
    %c0_3 = arith.constant 0 : index
    %4 = vector.load %arg2[%c0_2, %c0_3] : memref<128x128xbf16, #tpu.memory_space<vmem>>, vector<128x128xbf16>
    %c0_4 = arith.constant 0 : index
    %c0_5 = arith.constant 0 : index
    %5 = vector.load %arg3[%c0_4, %c0_5] : memref<128x12xbf16, #tpu.memory_space<vmem>>, vector<128x12xbf16>
    %cst = arith.constant dense<0.000000e+00> : vector<128x12xf32>
    %6 = tpu.matmul %4, %5, %cst {dimension_numbers = #tpu.dot_dimension_numbers<[1], [0], [0], [1], [0, 0, 1, 1], [], []>} : vector<128x128xbf16>, vector<128x12xbf16>, vector<128x12xf32> -> vector<128x12xf32>
    %7 = arith.addf %3, %6 : vector<128x12xf32>
    %c0_6 = arith.constant 0 : index
    %c0_7 = arith.constant 0 : index
    %8 = vector.load %arg7[%c0_6, %c0_7] : memref<128x12xf32, #tpu.memory_space<vmem>>, vector<128x12xf32>
    tpu.vector_store %arg7[%c0_6, %c0_7], %7 {strides = array<i32>} : memref<128x12xf32, #tpu.memory_space<vmem>>, vector<128x12xf32>,
    %c1_i32 = arith.constant 1 : i32
    %9 = arith.cmpi eq, %arg1, %c1_i32 : i32
    %10 = arith.extui %9 : i1 to i32
    %c0_i32_8 = arith.constant 0 : i32
    %11 = arith.cmpi ne, %10, %c0_i32_8 : i32
    scf.if %11 {
      %c0_9 = arith.constant 0 : index
      %c0_10 = arith.constant 0 : index
      %12 = vector.load %arg7[%c0_9, %c0_10] : memref<128x12xf32, #tpu.memory_space<vmem>>, vector<128x12xf32>
      %13 = arith.truncf %12 : vector<128x12xf32> to vector<128x12xbf16>
      %c0_11 = arith.constant 0 : index
      %c0_12 = arith.constant 0 : index
      %14 = vector.load %arg4[%c0_11, %c0_12] : memref<12x24xbf16, #tpu.memory_space<vmem>>, vector<12x24xbf16>
      %cst_13 = arith.constant dense<0.000000e+00> : vector<128x24xf32>
      %15 = tpu.matmul %13, %14, %cst_13 {dimension_numbers = #tpu.dot_dimension_numbers<[1], [0], [0], [1], [0, 0, 1, 1], [], []>} : vector<128x12xbf16>, vector<12x24xbf16>, vector<128x24xf32> -> vector<128x24xf32>
      %c0_14 = arith.constant 0 : index
      %c0_15 = arith.constant 0 : index
      %16 = vector.load %arg5[%c0_14, %c0_15] : memref<1x24xf32, #tpu.memory_space<vmem>>, vector<1x24xf32>
      %17 = vector.broadcast %16 : vector<1x24xf32> to vector<128x24xf32>
      %18 = arith.addf %15, %17 : vector<128x24xf32>
      %cst_16 = arith.constant 0.000000e+00 : f32
      %19 = vector.broadcast %cst_16 : f32 to vector<128x24xf32>
      %20 = arith.maximumf %18, %19 : vector<128x24xf32>
      %21 = arith.truncf %20 : vector<128x24xf32> to vector<128x24xbf16>
      %c0_17 = arith.constant 0 : index
      %c0_18 = arith.constant 0 : index
      %22 = vector.load %arg6[%c0_17, %c0_18] : memref<128x24xbf16, #tpu.memory_space<vmem>>, vector<128x24xbf16>
      tpu.vector_store %arg6[%c0_17, %c0_18], %21 {strides = array<i32>} : memref<128x24xbf16, #tpu.memory_space<vmem>>, vector<128x24xbf16>,
    } else {
    }
    return
  }
  func.func @transform_0(%arg0: i32, %arg1: i32) -> (i32, i32) {
    %c0_i32 = arith.constant 0 : i32
    return %arg0, %arg1 : i32, i32
  }
  func.func @transform_1(%arg0: i32, %arg1: i32) -> (i32, i32) {
    %c0_i32 = arith.constant 0 : i32
    %c0_i32_0 = arith.constant 0 : i32
    return %arg1, %c0_i32 : i32, i32
  }
  func.func @transform_2(%arg0: i32, %arg1: i32) -> (i32, i32) {
    %c0_i32 = arith.constant 0 : i32
    %c0_i32_0 = arith.constant 0 : i32
    %c0_i32_1 = arith.constant 0 : i32
    return %c0_i32, %c0_i32_0 : i32, i32
  }
  func.func @transform_3(%arg0: i32, %arg1: i32) -> (i32, i32) {
    %c0_i32 = arith.constant 0 : i32
    %c0_i32_0 = arith.constant 0 : i32
    %c0_i32_1 = arith.constant 0 : i32
    return %c0_i32, %c0_i32_0 : i32, i32
  }
  func.func @transform_4(%arg0: i32, %arg1: i32) -> (i32, i32) {
    %c0_i32 = arith.constant 0 : i32
    %c0_i32_0 = arith.constant 0 : i32
    return %arg0, %c0_i32 : i32, i32
  }
}

module attributes {stable_mosaic.version = 11 : i64} {
  func.func @gcn_layer_kernel(%arg0: i32, %arg1: i32, %arg2: memref<128x128xbf16, #tpu.memory_space<vmem>>, %arg3: memref<128x24xbf16, #tpu.memory_space<vmem>>, %arg4: memref<24x48xbf16, #tpu.memory_space<vmem>>, %arg5: memref<1x48xf32, #tpu.memory_space<vmem>>, %arg6: memref<128x48xbf16, #tpu.memory_space<vmem>>, %arg7: memref<128x24xf32, #tpu.memory_space<vmem>>) attributes {dimension_semantics = [#tpu.dimension_semantics<parallel>, #tpu.dimension_semantics<arbitrary>], iteration_bounds = array<i64: 2, 2>, scalar_prefetch = 0 : i64, scratch_operands = 1 : i64, tpu.core_type = #tpu.core_type<tc>, window_params = [{transform_indices = @transform_0, window_bounds = array<i64: 128, 128>}, {transform_indices = @transform_1, window_bounds = array<i64: 128, 24>}, {pipeline_mode = #tpu.pipeline_mode<synchronous>, transform_indices = @transform_2, window_bounds = array<i64: 24, 48>}, {pipeline_mode = #tpu.pipeline_mode<synchronous>, transform_indices = @transform_3, window_bounds = array<i64: 1, 48>}, {transform_indices = @transform_4, window_bounds = array<i64: 128, 48>}]} {
    %c0_i32 = arith.constant 0 : i32
    %0 = arith.cmpi eq, %arg1, %c0_i32 : i32
    %1 = arith.extui %0 : i1 to i32
    %c0_i32_0 = arith.constant 0 : i32
    %2 = arith.cmpi ne, %1, %c0_i32_0 : i32
    scf.if %2 {
      %cst_9 = arith.constant 0.000000e+00 : f32
      %12 = vector.broadcast %cst_9 : f32 to vector<128x24xf32>
      %c0_10 = arith.constant 0 : index
      %c0_11 = arith.constant 0 : index
      %13 = vector.load %arg7[%c0_10, %c0_11] : memref<128x24xf32, #tpu.memory_space<vmem>>, vector<128x24xf32>
      tpu.vector_store %arg7[%c0_10, %c0_11], %12 {strides = array<i32>} : memref<128x24xf32, #tpu.memory_space<vmem>>, vector<128x24xf32>,
    } else {
    }
    %c0 = arith.constant 0 : index
    %c0_1 = arith.constant 0 : index
    %3 = vector.load %arg7[%c0, %c0_1] : memref<128x24xf32, #tpu.memory_space<vmem>>, vector<128x24xf32>
    %c0_2 = arith.constant 0 : index
    %c0_3 = arith.constant 0 : index
    %4 = vector.load %arg2[%c0_2, %c0_3] : memref<128x128xbf16, #tpu.memory_space<vmem>>, vector<128x128xbf16>
    %c0_4 = arith.constant 0 : index
    %c0_5 = arith.constant 0 : index
    %5 = vector.load %arg3[%c0_4, %c0_5] : memref<128x24xbf16, #tpu.memory_space<vmem>>, vector<128x24xbf16>
    %cst = arith.constant dense<0.000000e+00> : vector<128x24xf32>
    %6 = tpu.matmul %4, %5, %cst {dimension_numbers = #tpu.dot_dimension_numbers<[1], [0], [0], [1], [0, 0, 1, 1], [], []>} : vector<128x128xbf16>, vector<128x24xbf16>, vector<128x24xf32> -> vector<128x24xf32>
    %7 = arith.addf %3, %6 : vector<128x24xf32>
    %c0_6 = arith.constant 0 : index
    %c0_7 = arith.constant 0 : index
    %8 = vector.load %arg7[%c0_6, %c0_7] : memref<128x24xf32, #tpu.memory_space<vmem>>, vector<128x24xf32>
    tpu.vector_store %arg7[%c0_6, %c0_7], %7 {strides = array<i32>} : memref<128x24xf32, #tpu.memory_space<vmem>>, vector<128x24xf32>,
    %c1_i32 = arith.constant 1 : i32
    %9 = arith.cmpi eq, %arg1, %c1_i32 : i32
    %10 = arith.extui %9 : i1 to i32
    %c0_i32_8 = arith.constant 0 : i32
    %11 = arith.cmpi ne, %10, %c0_i32_8 : i32
    scf.if %11 {
      %c0_9 = arith.constant 0 : index
      %c0_10 = arith.constant 0 : index
      %12 = vector.load %arg7[%c0_9, %c0_10] : memref<128x24xf32, #tpu.memory_space<vmem>>, vector<128x24xf32>
      %13 = arith.truncf %12 : vector<128x24xf32> to vector<128x24xbf16>
      %c0_11 = arith.constant 0 : index
      %c0_12 = arith.constant 0 : index
      %14 = vector.load %arg4[%c0_11, %c0_12] : memref<24x48xbf16, #tpu.memory_space<vmem>>, vector<24x48xbf16>
      %cst_13 = arith.constant dense<0.000000e+00> : vector<128x48xf32>
      %15 = tpu.matmul %13, %14, %cst_13 {dimension_numbers = #tpu.dot_dimension_numbers<[1], [0], [0], [1], [0, 0, 1, 1], [], []>} : vector<128x24xbf16>, vector<24x48xbf16>, vector<128x48xf32> -> vector<128x48xf32>
      %c0_14 = arith.constant 0 : index
      %c0_15 = arith.constant 0 : index
      %16 = vector.load %arg5[%c0_14, %c0_15] : memref<1x48xf32, #tpu.memory_space<vmem>>, vector<1x48xf32>
      %17 = vector.broadcast %16 : vector<1x48xf32> to vector<128x48xf32>
      %18 = arith.addf %15, %17 : vector<128x48xf32>
      %cst_16 = arith.constant 0.000000e+00 : f32
      %19 = vector.broadcast %cst_16 : f32 to vector<128x48xf32>
      %20 = arith.maximumf %18, %19 : vector<128x48xf32>
      %21 = arith.truncf %20 : vector<128x48xf32> to vector<128x48xbf16>
      %c0_17 = arith.constant 0 : index
      %c0_18 = arith.constant 0 : index
      %22 = vector.load %arg6[%c0_17, %c0_18] : memref<128x48xbf16, #tpu.memory_space<vmem>>, vector<128x48xbf16>
      tpu.vector_store %arg6[%c0_17, %c0_18], %21 {strides = array<i32>} : memref<128x48xbf16, #tpu.memory_space<vmem>>, vector<128x48xbf16>,
    } else {
    }
    return
  }
  func.func @transform_0(%arg0: i32, %arg1: i32) -> (i32, i32) {
    %c0_i32 = arith.constant 0 : i32
    return %arg0, %arg1 : i32, i32
  }
  func.func @transform_1(%arg0: i32, %arg1: i32) -> (i32, i32) {
    %c0_i32 = arith.constant 0 : i32
    %c0_i32_0 = arith.constant 0 : i32
    return %arg1, %c0_i32 : i32, i32
  }
  func.func @transform_2(%arg0: i32, %arg1: i32) -> (i32, i32) {
    %c0_i32 = arith.constant 0 : i32
    %c0_i32_0 = arith.constant 0 : i32
    %c0_i32_1 = arith.constant 0 : i32
    return %c0_i32, %c0_i32_0 : i32, i32
  }
  func.func @transform_3(%arg0: i32, %arg1: i32) -> (i32, i32) {
    %c0_i32 = arith.constant 0 : i32
    %c0_i32_0 = arith.constant 0 : i32
    %c0_i32_1 = arith.constant 0 : i32
    return %c0_i32, %c0_i32_0 : i32, i32
  }
  func.func @transform_4(%arg0: i32, %arg1: i32) -> (i32, i32) {
    %c0_i32 = arith.constant 0 : i32
    %c0_i32_0 = arith.constant 0 : i32
    return %arg0, %c0_i32 : i32, i32
  }
}

module attributes {stable_mosaic.version = 11 : i64} {
  func.func @pool_mlp_kernel(%arg0: i32, %arg1: memref<8x128xbf16, #tpu.memory_space<vmem>>, %arg2: memref<128x48xbf16, #tpu.memory_space<vmem>>, %arg3: memref<96x24xf32, #tpu.memory_space<vmem>>, %arg4: memref<32x24xf32, #tpu.memory_space<vmem>>, %arg5: memref<8x2xf32, #tpu.memory_space<vmem>>, %arg6: memref<8x48xf32, #tpu.memory_space<vmem>>) attributes {dimension_semantics = [#tpu.dimension_semantics<arbitrary>], iteration_bounds = array<i64: 2>, scalar_prefetch = 0 : i64, scratch_operands = 1 : i64, tpu.core_type = #tpu.core_type<tc>, window_params = [{transform_indices = @transform_0, window_bounds = array<i64: 8, 128>}, {transform_indices = @transform_1, window_bounds = array<i64: 128, 48>}, {pipeline_mode = #tpu.pipeline_mode<synchronous>, transform_indices = @transform_2, window_bounds = array<i64: 96, 24>}, {pipeline_mode = #tpu.pipeline_mode<synchronous>, transform_indices = @transform_3, window_bounds = array<i64: 32, 24>}, {pipeline_mode = #tpu.pipeline_mode<synchronous>, transform_indices = @transform_4, window_bounds = array<i64: 8, 2>}]} {
    %c0_i32 = arith.constant 0 : i32
    %0 = arith.cmpi eq, %arg0, %c0_i32 : i32
    %1 = arith.extui %0 : i1 to i32
    %c0_i32_0 = arith.constant 0 : i32
    %2 = arith.cmpi ne, %1, %c0_i32_0 : i32
    scf.if %2 {
      %cst_9 = arith.constant 0.000000e+00 : f32
      %12 = vector.broadcast %cst_9 : f32 to vector<8x48xf32>
      %c0_10 = arith.constant 0 : index
      %c0_11 = arith.constant 0 : index
      %13 = vector.load %arg6[%c0_10, %c0_11] : memref<8x48xf32, #tpu.memory_space<vmem>>, vector<8x48xf32>
      tpu.vector_store %arg6[%c0_10, %c0_11], %12 {strides = array<i32>} : memref<8x48xf32, #tpu.memory_space<vmem>>, vector<8x48xf32>,
    } else {
    }
    %c0 = arith.constant 0 : index
    %c0_1 = arith.constant 0 : index
    %3 = vector.load %arg6[%c0, %c0_1] : memref<8x48xf32, #tpu.memory_space<vmem>>, vector<8x48xf32>
    %c0_2 = arith.constant 0 : index
    %c0_3 = arith.constant 0 : index
    %4 = vector.load %arg1[%c0_2, %c0_3] : memref<8x128xbf16, #tpu.memory_space<vmem>>, vector<8x128xbf16>
    %c0_4 = arith.constant 0 : index
    %c0_5 = arith.constant 0 : index
    %5 = vector.load %arg2[%c0_4, %c0_5] : memref<128x48xbf16, #tpu.memory_space<vmem>>, vector<128x48xbf16>
    %cst = arith.constant dense<0.000000e+00> : vector<8x48xf32>
    %6 = tpu.matmul %4, %5, %cst {dimension_numbers = #tpu.dot_dimension_numbers<[1], [0], [0], [1], [0, 0, 1, 1], [], []>} : vector<8x128xbf16>, vector<128x48xbf16>, vector<8x48xf32> -> vector<8x48xf32>
    %7 = arith.addf %3, %6 : vector<8x48xf32>
    %c0_6 = arith.constant 0 : index
    %c0_7 = arith.constant 0 : index
    %8 = vector.load %arg6[%c0_6, %c0_7] : memref<8x48xf32, #tpu.memory_space<vmem>>, vector<8x48xf32>
    tpu.vector_store %arg6[%c0_6, %c0_7], %7 {strides = array<i32>} : memref<8x48xf32, #tpu.memory_space<vmem>>, vector<8x48xf32>,
    %c1_i32 = arith.constant 1 : i32
    %9 = arith.cmpi eq, %arg0, %c1_i32 : i32
    %10 = arith.extui %9 : i1 to i32
    %c0_i32_8 = arith.constant 0 : i32
    %11 = arith.cmpi ne, %10, %c0_i32_8 : i32
    scf.if %11 {
      %c0_9 = arith.constant 0 : index
      %c0_10 = arith.constant 0 : index
      %12 = vector.load %arg6[%c0_9, %c0_10] : memref<8x48xf32, #tpu.memory_space<vmem>>, vector<8x48xf32>
      %c0_11 = arith.constant 0 : index
      %c0_12 = arith.constant 0 : index
      %13 = vector.load %arg3[%c0_11, %c0_12] : memref<96x24xf32, #tpu.memory_space<vmem>>, vector<48x24xf32>
      %14 = arith.truncf %13 : vector<48x24xf32> to vector<48x24xbf16>
      %c0_13 = arith.constant 0 : index
      %c0_14 = arith.constant 0 : index
      %15 = vector.load %arg4[%c0_13, %c0_14] : memref<32x24xf32, #tpu.memory_space<vmem>>, vector<1x24xf32>
      %16 = arith.truncf %12 : vector<8x48xf32> to vector<8x48xbf16>
      %cst_15 = arith.constant dense<0.000000e+00> : vector<8x24xf32>
      %17 = tpu.matmul %16, %14, %cst_15 {dimension_numbers = #tpu.dot_dimension_numbers<[1], [0], [0], [1], [0, 0, 1, 1], [], []>} : vector<8x48xbf16>, vector<48x24xbf16>, vector<8x24xf32> -> vector<8x24xf32>
      %18 = vector.broadcast %15 : vector<1x24xf32> to vector<8x24xf32>
      %19 = arith.addf %17, %18 : vector<8x24xf32>
      %cst_16 = arith.constant 0.000000e+00 : f32
      %20 = vector.broadcast %cst_16 : f32 to vector<8x24xf32>
      %21 = arith.maximumf %19, %20 : vector<8x24xf32>
      %c48 = arith.constant 48 : index
      %c0_17 = arith.constant 0 : index
      %22 = vector.load %arg3[%c48, %c0_17] : memref<96x24xf32, #tpu.memory_space<vmem>>, vector<24x12xf32>
      %23 = arith.truncf %22 : vector<24x12xf32> to vector<24x12xbf16>
      %c8 = arith.constant 8 : index
      %c0_18 = arith.constant 0 : index
      %24 = vector.load %arg4[%c8, %c0_18] : memref<32x24xf32, #tpu.memory_space<vmem>>, vector<1x12xf32>
      %25 = arith.truncf %21 : vector<8x24xf32> to vector<8x24xbf16>
      %cst_19 = arith.constant dense<0.000000e+00> : vector<8x12xf32>
      %26 = tpu.matmul %25, %23, %cst_19 {dimension_numbers = #tpu.dot_dimension_numbers<[1], [0], [0], [1], [0, 0, 1, 1], [], []>} : vector<8x24xbf16>, vector<24x12xbf16>, vector<8x12xf32> -> vector<8x12xf32>
      %27 = vector.broadcast %24 : vector<1x12xf32> to vector<8x12xf32>
      %28 = arith.addf %26, %27 : vector<8x12xf32>
      %cst_20 = arith.constant 0.000000e+00 : f32
      %29 = vector.broadcast %cst_20 : f32 to vector<8x12xf32>
      %30 = arith.maximumf %28, %29 : vector<8x12xf32>
      %c72 = arith.constant 72 : index
      %c0_21 = arith.constant 0 : index
      %31 = vector.load %arg3[%c72, %c0_21] : memref<96x24xf32, #tpu.memory_space<vmem>>, vector<12x4xf32>
      %32 = arith.truncf %31 : vector<12x4xf32> to vector<12x4xbf16>
      %c16 = arith.constant 16 : index
      %c0_22 = arith.constant 0 : index
      %33 = vector.load %arg4[%c16, %c0_22] : memref<32x24xf32, #tpu.memory_space<vmem>>, vector<1x4xf32>
      %34 = arith.truncf %30 : vector<8x12xf32> to vector<8x12xbf16>
      %cst_23 = arith.constant dense<0.000000e+00> : vector<8x4xf32>
      %35 = tpu.matmul %34, %32, %cst_23 {dimension_numbers = #tpu.dot_dimension_numbers<[1], [0], [0], [1], [0, 0, 1, 1], [], []>} : vector<8x12xbf16>, vector<12x4xbf16>, vector<8x4xf32> -> vector<8x4xf32>
      %36 = vector.broadcast %33 : vector<1x4xf32> to vector<8x4xf32>
      %37 = arith.addf %35, %36 : vector<8x4xf32>
      %cst_24 = arith.constant 0.000000e+00 : f32
      %38 = vector.broadcast %cst_24 : f32 to vector<8x4xf32>
      %39 = arith.maximumf %37, %38 : vector<8x4xf32>
      %c88 = arith.constant 88 : index
      %c0_25 = arith.constant 0 : index
      %40 = vector.load %arg3[%c88, %c0_25] : memref<96x24xf32, #tpu.memory_space<vmem>>, vector<4x2xf32>
      %41 = arith.truncf %40 : vector<4x2xf32> to vector<4x2xbf16>
      %c24 = arith.constant 24 : index
      %c0_26 = arith.constant 0 : index
      %42 = vector.load %arg4[%c24, %c0_26] : memref<32x24xf32, #tpu.memory_space<vmem>>, vector<1x2xf32>
      %43 = arith.truncf %39 : vector<8x4xf32> to vector<8x4xbf16>
      %cst_27 = arith.constant dense<0.000000e+00> : vector<8x2xf32>
      %44 = tpu.matmul %43, %41, %cst_27 {dimension_numbers = #tpu.dot_dimension_numbers<[1], [0], [0], [1], [0, 0, 1, 1], [], []>} : vector<8x4xbf16>, vector<4x2xbf16>, vector<8x2xf32> -> vector<8x2xf32>
      %45 = vector.broadcast %42 : vector<1x2xf32> to vector<8x2xf32>
      %46 = arith.addf %44, %45 : vector<8x2xf32>
      %c0_28 = arith.constant 0 : index
      %c0_29 = arith.constant 0 : index
      %47 = vector.load %arg5[%c0_28, %c0_29] : memref<8x2xf32, #tpu.memory_space<vmem>>, vector<8x2xf32>
      tpu.vector_store %arg5[%c0_28, %c0_29], %46 {strides = array<i32>} : memref<8x2xf32, #tpu.memory_space<vmem>>, vector<8x2xf32>,
    } else {
    }
    return
  }
  func.func @transform_0(%arg0: i32) -> (i32, i32) {
    %c0_i32 = arith.constant 0 : i32
    %c0_i32_0 = arith.constant 0 : i32
    return %c0_i32, %arg0 : i32, i32
  }
  func.func @transform_1(%arg0: i32) -> (i32, i32) {
    %c0_i32 = arith.constant 0 : i32
    %c0_i32_0 = arith.constant 0 : i32
    return %arg0, %c0_i32 : i32, i32
  }
  func.func @transform_2(%arg0: i32) -> (i32, i32) {
    %c0_i32 = arith.constant 0 : i32
    %c0_i32_0 = arith.constant 0 : i32
    %c0_i32_1 = arith.constant 0 : i32
    return %c0_i32, %c0_i32_0 : i32, i32
  }
  func.func @transform_3(%arg0: i32) -> (i32, i32) {
    %c0_i32 = arith.constant 0 : i32
    %c0_i32_0 = arith.constant 0 : i32
    %c0_i32_1 = arith.constant 0 : i32
    return %c0_i32, %c0_i32_0 : i32, i32
  }
  func.func @transform_4(%arg0: i32) -> (i32, i32) {
    %c0_i32 = arith.constant 0 : i32
    %c0_i32_0 = arith.constant 0 : i32
    %c0_i32_1 = arith.constant 0 : i32
    return %c0_i32, %c0_i32_0 : i32, i32
  }
}

</mosaic_0001>

<llo_original>
// kernel: xxsgcn_forward.7
$region0: #{xxsgcn_forward.7}
  #allocation0 [shape = 'u32[]', space=smem, size = 0x4, offset = 0x4, fixed_abs, tag = 'smem constant byte address 0x4 - core index']
  #allocation1 [shape = 'u32[72,128]{1,0:T(1,128)}', space=vmem, size = 0x9000, scoped, tag = 'internal scratch']
  #allocation2 [shape = 'f32[128,12]{1,0:T(8,128)}', space=vmem, size = 0x10000, scoped, tag = 'scratch operand']
  %s0 = inlined_call_operand.vmem [shape: bf16[256,256], index: 0, kind: input, shape index: {}]
  %s1 = inlined_call_operand.vmem [shape: bf16[256,12], index: 1, kind: input, shape index: {}]
  %s2 = inlined_call_operand.vmem [shape: bf16[12,24], index: 2, kind: input, shape index: {}]
  %s3 = inlined_call_operand.vmem [shape: f32[1,24], index: 3, kind: input, shape index: {}]
  %s4 = inlined_call_operand.vmem [shape: bf16[256,24], index: 4, kind: output, shape index: {}]
  %s5 = sld [smem:[#allocation0]]
  $region98: #{xxsgcn_forward.7} parent=0
    _
  %s7 = ssub.s32 1, %s5
  %s8 = scalar_select 0, %s7, %s5
  $region1: #{xxsgcn_forward.7} parent=0
    #allocation3 [shape = 'u8[65536]{0}', space=vmem, size = 0x10000, scoped, tag = 'input window, operand 0']
    loop: start=0, step=1, limit=6
    $region2: #{xxsgcn_forward.7} parent=1 // loop_pre_header
      _
    $region3: #{xxsgcn_forward.7} parent=1 // loop_header
      %s10 = sphi 0, %s14
      %p11 = scmp.ge.s32.totalorder %s10, 6
      %s17 = sphi 0, %s29
      %s18 = sphi 0, %s25
      %s19 = sphi 0, %s17
      %s20 = sphi 0, %s18
      %s21 = sphi 0, %s19
      %s22 = sphi 0, %s20
      %s34 = sphi 0, %s36
      %s37 = sphi 0, %s34
      %s38 = sphi 0, %s37
      %s54 = sphi 0, %s38
      %s60 = sphi 0, %s62
      %s63 = sphi 0, %s60
      %s64 = sphi 0, %s63
      %s80 = sphi 0, %s64
      %s84 = sphi 0, %s84
      %s86 = sphi 0, %s84
      %s87 = sphi 0, %s86
      %s101 = sphi 0, %s87
      %s105 = sphi 0, %s105
      %s107 = sphi 0, %s105
      %s108 = sphi 0, %s107
      %s122 = sphi 0, %s108
      %s128 = sphi 0, %s130
      %s131 = sphi 0, %s128
      %s132 = sphi 0, %s131
      %s148 = sphi 0, %s132
    $region4: #{xxsgcn_forward.7} parent=1 // loop_header_branch
      %13 = sbr.rel (%p11) target = $region8
    $region5: #{xxsgcn_forward.7} parent=1 // loop_body
      %s15 = ssub.s32 %s10, 1
      %s16 = ssub.s32 %s10, 2
      %s23 = sadd.s32 1, %s18
      %p24 = scmp.ge.s32.totalorder %s23, 2
      %s25 = scalar_select %p24, 0, %s23
      %s26 = sadd.s32 1, %s17
      %s27 = scalar_select %p24, %s26, %s17
      %p28 = scmp.ge.s32.totalorder %s27, 2
      %s29 = scalar_select %p28, 0, %s27
      %s30 = ssub.s32 %s17, %s29
      %s31 = ssub.s32 %s18, %s25
      %s32 = sor.u32 %s30, %s31
      %p33 = scmp.eq.s32.totalorder %s32, 0
      %s35 = sadd.s32 %s34, 1
      %s36 = scalar_select %p33, %s34, %s35
      %p39 = pneg %p33
      %p40 = scmp.eq.s32.totalorder %s10, 3
      %p41 = por %p39, %p40
      %p42 = scmp.ne.s32.totalorder %s34, %s37
      %p43 = scmp.eq.s32.totalorder %s10, 0
      %p44 = por %p42, %p43
      %p45 = scmp.ne.s32.totalorder %s34, %s37
      %p46 = scmp.eq.s32.totalorder %s15, 3
      %p47 = por %p45, %p46
      %p48 = scmp.ne.s32.totalorder %s37, %s38
      %p49 = scmp.eq.s32.totalorder %s15, 0
      %p50 = por %p48, %p49
      %p51 = scmp.ne.s32.totalorder %s37, %s38
      %p52 = scmp.eq.s32.totalorder %s16, 3
      %p53 = por %p51, %p52
      %p55 = scmp.ne.s32.totalorder %s38, %s54
      %p56 = scmp.eq.s32.totalorder %s16, 0
      %p57 = por %p55, %p56
      %s58 = ssub.s32 %s18, %s25
      %p59 = scmp.eq.s32.totalorder %s58, 0
      %s61 = sadd.s32 %s60, 1
      %s62 = scalar_select %p59, %s60, %s61
      %p65 = pneg %p59
      %p66 = scmp.eq.s32.totalorder %s10, 3
      %p67 = por %p65, %p66
      %p68 = scmp.ne.s32.totalorder %s60, %s63
      %p69 = scmp.eq.s32.totalorder %s10, 0
      %p70 = por %p68, %p69
      %p71 = scmp.ne.s32.totalorder %s60, %s63
      %p72 = scmp.eq.s32.totalorder %s15, 3
      %p73 = por %p71, %p72
      %p74 = scmp.ne.s32.totalorder %s63, %s64
      %p75 = scmp.eq.s32.totalorder %s15, 0
      %p76 = por %p74, %p75
      %p77 = scmp.ne.s32.totalorder %s63, %s64
      %p78 = scmp.eq.s32.totalorder %s16, 3
      %p79 = por %p77, %p78
      %p81 = scmp.ne.s32.totalorder %s64, %s80
      %p82 = scmp.eq.s32.totalorder %s16, 0
      %p83 = por %p81, %p82
      %s85 = sadd.s32 %s84, 1
      %p88 = scmp.eq.s32.totalorder %s10, 3
      %p89 = scmp.ne.s32.totalorder %s84, %s86
      %p90 = scmp.eq.s32.totalorder %s10, 0
      %p91 = por %p89, %p90
      %p92 = scmp.ne.s32.totalorder %s84, %s86
      %p93 = scmp.eq.s32.totalorder %s15, 3
      %p94 = por %p92, %p93
      %p95 = scmp.ne.s32.totalorder %s86, %s87
      %p96 = scmp.eq.s32.totalorder %s15, 0
      %p97 = por %p95, %p96
      %p98 = scmp.ne.s32.totalorder %s86, %s87
      %p99 = scmp.eq.s32.totalorder %s16, 3
      %p100 = por %p98, %p99
      %p102 = scmp.ne.s32.totalorder %s87, %s101
      %p103 = scmp.eq.s32.totalorder %s16, 0
      %p104 = por %p102, %p103
      %s106 = sadd.s32 %s105, 1
      %p109 = scmp.eq.s32.totalorder %s10, 3
      %p110 = scmp.ne.s32.totalorder %s105, %s107
      %p111 = scmp.eq.s32.totalorder %s10, 0
      %p112 = por %p110, %p111
      %p113 = scmp.ne.s32.totalorder %s105, %s107
      %p114 = scmp.eq.s32.totalorder %s15, 3
      %p115 = por %p113, %p114
      %p116 = scmp.ne.s32.totalorder %s107, %s108
      %p117 = scmp.eq.s32.totalorder %s15, 0
      %p118 = por %p116, %p117
      %p119 = scmp.ne.s32.totalorder %s107, %s108
      %p120 = scmp.eq.s32.totalorder %s16, 3
      %p121 = por %p119, %p120
      %p123 = scmp.ne.s32.totalorder %s108, %s122
      %p124 = scmp.eq.s32.totalorder %s16, 0
      %p125 = por %p123, %p124
      %s126 = ssub.s32 %s17, %s29
      %p127 = scmp.eq.s32.totalorder %s126, 0
      %s129 = sadd.s32 %s128, 1
      %s130 = scalar_select %p127, %s128, %s129
      %p133 = pneg %p127
      %p134 = scmp.eq.s32.totalorder %s10, 3
      %p135 = por %p133, %p134
      %p136 = scmp.ne.s32.totalorder %s128, %s131
      %p137 = scmp.eq.s32.totalorder %s10, 0
      %p138 = por %p136, %p137
      %p139 = scmp.ne.s32.totalorder %s128, %s131
      %p140 = scmp.eq.s32.totalorder %s15, 3
      %p141 = por %p139, %p140
      %p142 = scmp.ne.s32.totalorder %s131, %s132
      %p143 = scmp.eq.s32.totalorder %s15, 0
      %p144 = por %p142, %p143
      %p145 = scmp.ne.s32.totalorder %s131, %s132
      %p146 = scmp.eq.s32.totalorder %s16, 3
      %p147 = por %p145, %p146
      %p149 = scmp.ne.s32.totalorder %s132, %s148
      %p150 = scmp.eq.s32.totalorder %s16, 0
      %p151 = por %p149, %p150
      %p152 = scmp.le.s32.totalorder 1, %s10
      %p153 = scmp.lt.s32.totalorder %s10, 5
      %p154 = pnand %p152, %p153
      %p155 = pneg %p154
      // Predicated region
      $region9: #{xxsgcn_forward.7} parent=5 // pred_check
        _
      $region10: #{xxsgcn_forward.7} parent=5 // pred_check_branch
        %157 = sbr.rel (%p154) target = $region12
      $region11: #{xxsgcn_forward.7} parent=5 // pred_region
        %s158 = ssub.s32 %s10, 1
        // Predicated region
        $region13: #{xxsgcn_forward.7} parent=11 // pred_check
          %p159 = pneg %p97
        $region14: #{xxsgcn_forward.7} parent=11 // pred_check_branch
          %161 = sbr.rel (%p159) target = $region16
        $region15: #{xxsgcn_forward.7} parent=11 // pred_region
          _
        $region16: #{xxsgcn_forward.7} parent=11 // pred_fallthru
          _
        // Predicated region
        $region17: #{xxsgcn_forward.7} parent=11 // pred_check
          %p162 = pneg %p118
        $region18: #{xxsgcn_forward.7} parent=11 // pred_check_branch
          %164 = sbr.rel (%p162) target = $region20
        $region19: #{xxsgcn_forward.7} parent=11 // pred_region
          _
        $region20: #{xxsgcn_forward.7} parent=11 // pred_fallthru
          _
      $region12: #{xxsgcn_forward.7} parent=5 // pred_fallthru
        _
      %p165 = scmp.lt.s32.totalorder %s10, 4
      // Predicated region
      $region21: #{xxsgcn_forward.7} parent=5 // pred_check
        %p166 = pneg %p165
      $region22: #{xxsgcn_forward.7} parent=5 // pred_check_branch
        %168 = sbr.rel (%p166) target = $region24
      $region23: #{xxsgcn_forward.7} parent=5 // pred_region
        // Predicated region
        $region25: #{xxsgcn_forward.7} parent=23 // pred_check
          %p169 = pneg %p44
        $region26: #{xxsgcn_forward.7} parent=23 // pred_check_branch
          %171 = sbr.rel (%p169) target = $region28
        $region27: #{xxsgcn_forward.7} parent=23 // pred_region
          %s172 = sand.u32 %s34, 1
          %s173 = sand.u32 %s34, 1
          %s174 = smul.addr %s173, 64
          %s175 = scalar_lea.vmem [#allocation3], %s174
          %s176 = smul.u32 16, %s17
          %s177 = smul.addr %s176, 2
          %s178 = sadd.s32 %s18, %s177
          %s179 = smul.addr %s178, 4
          %s180 = scalar_lea.vmem %s0, %s179
          // Predicated region
          $region29: #{xxsgcn_forward.7} parent=27 // pred_check
            _
          $region30: #{xxsgcn_forward.7} parent=27 // pred_check_branch
            %182 = sbr.rel (0) target = $region32
          $region31: #{xxsgcn_forward.7} parent=27 // pred_region
            // Predicated region
            $region33: #{xxsgcn_forward.7} parent=31 // pred_check
              _
            $region34: #{xxsgcn_forward.7} parent=31 // pred_check_branch
              %184 = sbr.rel target = $region36
            $region35: #{xxsgcn_forward.7} parent=31 // pred_region
              // Predicated region
              $region48: #{xxsgcn_forward.7} parent=35 // pred_check
                _
              $region49: #{xxsgcn_forward.7} parent=35 // pred_check_branch
                %230 = sbr.rel (0) target = $region51
              $region50: #{xxsgcn_forward.7} parent=35 // pred_region
                loop: start=0, step=1, limit=1
                $region52: #{xxsgcn_forward.7} parent=50 // loop_pre_header
                  _
                $region53: #{xxsgcn_forward.7} parent=50 // loop_header
                  %s232 = sphi 0, %s236
                  %p233 = scmp.ge.s32.totalorder %s232, 1
                  %s237 = sphi %s180, %s180
                  %s238 = sphi %s175, %s175
                $region54: #{xxsgcn_forward.7} parent=50 // loop_header_branch
                  %235 = sbr.rel (%p233) target = $region58
                $region55: #{xxsgcn_forward.7} parent=50 // loop_body
                  _
                $region56: #{xxsgcn_forward.7} parent=50 // loop_footer
                  %s236 = sadd.s32 1, %s232
                $region57: #{xxsgcn_forward.7} parent=50 // loop_footer_branch
                  %231 = sbr.rel target = $region53
                $region58: #{xxsgcn_forward.7} parent=50 // loop_exit
                  _
                %s240 = ssub.s32 16, 1
                loop: start=0, step=1, limit=1
                $region59: #{xxsgcn_forward.7} parent=50 // loop_pre_header
                  _
                $region60: #{xxsgcn_forward.7} parent=50 // loop_header
                  %s242 = sphi 0, %s246
                  %p243 = scmp.ge.s32.totalorder %s242, 1
                  %s247 = sphi %s180, %s180
                  %s248 = sphi %s175, %s175
                $region61: #{xxsgcn_forward.7} parent=50 // loop_header_branch
                  %245 = sbr.rel (%p243) target = $region65
                $region62: #{xxsgcn_forward.7} parent=50 // loop_body
                  %v249 = vld [vmem:[%s247] sm:%s240]
                  %250 = vst [vmem:[%s248] sm:%s240] %v249
                  %v251 = vld [vmem:[%s247 + $0x8] sm:%s240]
                  %252 = vst [vmem:[%s248 + $0x4] sm:%s240] %v251
                  %v253 = vld [vmem:[%s247 + $0x10] sm:%s240]
                  %254 = vst [vmem:[%s248 + $0x8] sm:%s240] %v253
                  %v255 = vld [vmem:[%s247 + $0x18] sm:%s240]
                  %256 = vst [vmem:[%s248 + $0xc] sm:%s240] %v255
                  %v257 = vld [vmem:[%s247 + $0x20] sm:%s240]
                  %258 = vst [vmem:[%s248 + $0x10] sm:%s240] %v257
                  %v259 = vld [vmem:[%s247 + $0x28] sm:%s240]
                  %260 = vst [vmem:[%s248 + $0x14] sm:%s240] %v259
                  %v261 = vld [vmem:[%s247 + $0x30] sm:%s240]
                  %262 = vst [vmem:[%s248 + $0x18] sm:%s240] %v261
                  %v263 = vld [vmem:[%s247 + $0x38] sm:%s240]
                  %264 = vst [vmem:[%s248 + $0x1c] sm:%s240] %v263
                  %v265 = vld [vmem:[%s247 + $0x40] sm:%s240]
                  %266 = vst [vmem:[%s248 + $0x20] sm:%s240] %v265
                  %v267 = vld [vmem:[%s247 + $0x48] sm:%s240]
                  %268 = vst [vmem:[%s248 + $0x24] sm:%s240] %v267
                  %v269 = vld [vmem:[%s247 + $0x50] sm:%s240]
                  %270 = vst [vmem:[%s248 + $0x28] sm:%s240] %v269
                  %v271 = vld [vmem:[%s247 + $0x58] sm:%s240]
                  %272 = vst [vmem:[%s248 + $0x2c] sm:%s240] %v271
                  %v273 = vld [vmem:[%s247 + $0x60] sm:%s240]
                  %274 = vst [vmem:[%s248 + $0x30] sm:%s240] %v273
                  %v275 = vld [vmem:[%s247 + $0x68] sm:%s240]
                  %276 = vst [vmem:[%s248 + $0x34] sm:%s240] %v275
                  %v277 = vld [vmem:[%s247 + $0x70] sm:%s240]
                  %278 = vst [vmem:[%s248 + $0x38] sm:%s240] %v277
                  %v279 = vld [vmem:[%s247 + $0x78] sm:%s240]
                  %280 = vst [vmem:[%s248 + $0x3c] sm:%s240] %v279
                $region63: #{xxsgcn_forward.7} parent=50 // loop_footer
                  %s246 = sadd.s32 1, %s242
                $region64: #{xxsgcn_forward.7} parent=50 // loop_footer_branch
                  %241 = sbr.rel target = $region60
                $region65: #{xxsgcn_forward.7} parent=50 // loop_exit
                  _
              $region51: #{xxsgcn_forward.7} parent=35 // pred_fallthru
                _
            $region36: #{xxsgcn_forward.7} parent=31 // pred_fallthru
              _
            // Predicated region
            $region37: #{xxsgcn_forward.7} parent=31 // pred_check
              _
            $region38: #{xxsgcn_forward.7} parent=31 // pred_check_branch
              %186 = sbr.rel (0) target = $region40
            $region39: #{xxsgcn_forward.7} parent=31 // pred_region
              %s188 = ssub.s32 16, 1
              loop: start=0, step=1, limit=1
              $region41: #{xxsgcn_forward.7} parent=39 // loop_pre_header
                _
              $region42: #{xxsgcn_forward.7} parent=39 // loop_header
                %s190 = sphi 0, %s194
                %p191 = scmp.ge.s32.totalorder %s190, 1
                %s195 = sphi %s180, %s180
                %s196 = sphi %s175, %s175
              $region43: #{xxsgcn_forward.7} parent=39 // loop_header_branch
                %193 = sbr.rel (%p191) target = $region47
              $region44: #{xxsgcn_forward.7} parent=39 // loop_body
                %v197 = vld [vmem:[%s195] sm:%s188]
                %198 = vst [vmem:[%s196] sm:%s188] %v197
                %v199 = vld [vmem:[%s195 + $0x8] sm:%s188]
                %200 = vst [vmem:[%s196 + $0x4] sm:%s188] %v199
                %v201 = vld [vmem:[%s195 + $0x10] sm:%s188]
                %202 = vst [vmem:[%s196 + $0x8] sm:%s188] %v201
                %v203 = vld [vmem:[%s195 + $0x18] sm:%s188]
                %204 = vst [vmem:[%s196 + $0xc] sm:%s188] %v203
                %v205 = vld [vmem:[%s195 + $0x20] sm:%s188]
                %206 = vst [vmem:[%s196 + $0x10] sm:%s188] %v205
                %v207 = vld [vmem:[%s195 + $0x28] sm:%s188]
                %208 = vst [vmem:[%s196 + $0x14] sm:%s188] %v207
                %v209 = vld [vmem:[%s195 + $0x30] sm:%s188]
                %210 = vst [vmem:[%s196 + $0x18] sm:%s188] %v209
                %v211 = vld [vmem:[%s195 + $0x38] sm:%s188]
                %212 = vst [vmem:[%s196 + $0x1c] sm:%s188] %v211
                %v213 = vld [vmem:[%s195 + $0x40] sm:%s188]
                %214 = vst [vmem:[%s196 + $0x20] sm:%s188] %v213
                %v215 = vld [vmem:[%s195 + $0x48] sm:%s188]
                %216 = vst [vmem:[%s196 + $0x24] sm:%s188] %v215
                %v217 = vld [vmem:[%s195 + $0x50] sm:%s188]
                %218 = vst [vmem:[%s196 + $0x28] sm:%s188] %v217
                %v219 = vld [vmem:[%s195 + $0x58] sm:%s188]
                %220 = vst [vmem:[%s196 + $0x2c] sm:%s188] %v219
                %v221 = vld [vmem:[%s195 + $0x60] sm:%s188]
                %222 = vst [vmem:[%s196 + $0x30] sm:%s188] %v221
                %v223 = vld [vmem:[%s195 + $0x68] sm:%s188]
                %224 = vst [vmem:[%s196 + $0x34] sm:%s188] %v223
                %v225 = vld [vmem:[%s195 + $0x70] sm:%s188]
                %226 = vst [vmem:[%s196 + $0x38] sm:%s188] %v225
                %v227 = vld [vmem:[%s195 + $0x78] sm:%s188]
                %228 = vst [vmem:[%s196 + $0x3c] sm:%s188] %v227
              $region45: #{xxsgcn_forward.7} parent=39 // loop_footer
                %s194 = sadd.s32 1, %s190
              $region46: #{xxsgcn_forward.7} parent=39 // loop_footer_branch
                %189 = sbr.rel target = $region42
              $region47: #{xxsgcn_forward.7} parent=39 // loop_exit
                _
            $region40: #{xxsgcn_forward.7} parent=31 // pred_fallthru
              _
          $region32: #{xxsgcn_forward.7} parent=27 // pred_fallthru
            _
          %281 = vnop
        $region28: #{xxsgcn_forward.7} parent=23 // pred_fallthru
          _
        // Predicated region
        $region66: #{xxsgcn_forward.7} parent=23 // pred_check
          %p282 = pneg %p70
        $region67: #{xxsgcn_forward.7} parent=23 // pred_check_branch
          %284 = sbr.rel (%p282) target = $region69
        $region68: #{xxsgcn_forward.7} parent=23 // pred_region
          %s285 = smul.u32 16, %s18
          %p286 = scmp.lt.s32.totalorder %s285, 31
          %s287 = scalar_select %p286, %s285, 31
          %s288 = smul.addr %s287, 4
          %s289 = scalar_lea.vmem %s1, %s288
          %s290 = smul.u32 16, %s18
        $region69: #{xxsgcn_forward.7} parent=23 // pred_fallthru
          _
      $region24: #{xxsgcn_forward.7} parent=5 // pred_fallthru
        _
      %p291 = scmp.le.s32.totalorder 1, %s10
      %p292 = scmp.lt.s32.totalorder %s10, 5
      %p293 = pnand %p291, %p292
      %p294 = pneg %p293
      // Predicated region
      $region70: #{xxsgcn_forward.7} parent=5 // pred_check
        _
      $region71: #{xxsgcn_forward.7} parent=5 // pred_check_branch
        %296 = sbr.rel (%p293) target = $region73
      $region72: #{xxsgcn_forward.7} parent=5 // pred_region
        %s297 = ssub.s32 %s10, 1
        %s298 = sand.u32 %s37, 1
        %s299 = sand.u32 %s37, 1
        %s300 = smul.addr %s299, 64
        %s301 = scalar_lea.vmem [#allocation3], %s300
        // Predicated region
        $region74: #{xxsgcn_forward.7} parent=72 // pred_check
          %p302 = pneg %p50
        $region75: #{xxsgcn_forward.7} parent=72 // pred_check_branch
          %304 = sbr.rel (%p302) target = $region77
        $region76: #{xxsgcn_forward.7} parent=72 // pred_region
          _
        $region77: #{xxsgcn_forward.7} parent=72 // pred_fallthru
          _
        %s305 = sand.u32 %s37, 1
        %s306 = sand.u32 %s37, 1
        %s307 = smul.addr %s306, 64
        %s308 = scalar_lea.vmem [#allocation3], %s307
        %p309 = pneg %p50
        %p310 = pneg %p47
        %s311 = smul.u32 16, %s20
        %p312 = scmp.lt.s32.totalorder %s311, 31
        %s313 = scalar_select %p312, %s311, 31
        %s314 = smul.addr %s313, 4
        %s315 = scalar_lea.vmem %s1, %s314
        %p316 = pneg %p76
        %p317 = pneg %p73
        %p318 = pneg %p97
        %p319 = pneg %p94
        %p320 = pneg %p118
        %p321 = pneg %p115
        %p322 = pneg %p144
        %p323 = pneg %p141
        %s324 = smul.u32 16, %s19
        %p325 = scmp.lt.s32.totalorder %s324, 31
        %s326 = scalar_select %p325, %s324, 31
        %s327 = smul.addr %s326, 4
        %s328 = scalar_lea.vmem %s4, %s327
        %s329 = smul.u32 16, %s19
        %s330 = smul.u32 16, %s20
        %p331 = scmp.lt.s32.totalorder %s330, 31
        %s332 = scalar_select %p331, %s330, 31
        %s333 = smul.addr %s332, 4
        %s334 = scalar_lea.vmem %s1, %s333
        %s335 = smul.u32 16, %s20
        %s336 = smul.u32 16, %s19
        %p337 = scmp.lt.s32.totalorder %s336, 31
        %s338 = scalar_select %p337, %s336, 31
        %s339 = smul.addr %s338, 4
        %s340 = scalar_lea.vmem %s4, %s339
        %s341 = smul.u32 16, %s19
        %p343 = scmp.eq.s32.totalorder %s20, 0
        // Predicated region
        $region78: #{xxsgcn_forward.7} parent=72 // pred_check
          %p344 = pneg %p343
        $region79: #{xxsgcn_forward.7} parent=72 // pred_check_branch
          %346 = sbr.rel (%p344) target = $region81
        $region80: #{xxsgcn_forward.7} parent=72 // pred_region
          %vm347 = vcmask 97280
          %348 = vst.msk [vmem:[#allocation2] sm:$0xff] %vm347, 0.0
          %349 = vst.msk [vmem:[#allocation2 + $0x8] sm:$0xff] %vm347, 0.0
          %350 = vst.msk [vmem:[#allocation2 + $0x10] sm:$0xff] %vm347, 0.0
          %351 = vst.msk [vmem:[#allocation2 + $0x18] sm:$0xff] %vm347, 0.0
          %352 = vst.msk [vmem:[#allocation2 + $0x20] sm:$0xff] %vm347, 0.0
          %353 = vst.msk [vmem:[#allocation2 + $0x28] sm:$0xff] %vm347, 0.0
          %354 = vst.msk [vmem:[#allocation2 + $0x30] sm:$0xff] %vm347, 0.0
          %355 = vst.msk [vmem:[#allocation2 + $0x38] sm:$0xff] %vm347, 0.0
          %356 = vst.msk [vmem:[#allocation2 + $0x40] sm:$0xff] %vm347, 0.0
          %357 = vst.msk [vmem:[#allocation2 + $0x48] sm:$0xff] %vm347, 0.0
          %358 = vst.msk [vmem:[#allocation2 + $0x50] sm:$0xff] %vm347, 0.0
          %359 = vst.msk [vmem:[#allocation2 + $0x58] sm:$0xff] %vm347, 0.0
          %360 = vst.msk [vmem:[#allocation2 + $0x60] sm:$0xff] %vm347, 0.0
          %361 = vst.msk [vmem:[#allocation2 + $0x68] sm:$0xff] %vm347, 0.0
          %362 = vst.msk [vmem:[#allocation2 + $0x70] sm:$0xff] %vm347, 0.0
          %363 = vst.msk [vmem:[#allocation2 + $0x78] sm:$0xff] %vm347, 0.0
        $region81: #{xxsgcn_forward.7} parent=72 // pred_fallthru
          _
        %v364 = vld [vmem:[#allocation2] sm:$0xff]
        %v365 = vld [vmem:[#allocation2 + $0x8] sm:$0xff]
        %v366 = vld [vmem:[#allocation2 + $0x10] sm:$0xff]
        %v367 = vld [vmem:[#allocation2 + $0x18] sm:$0xff]
        %v368 = vld [vmem:[#allocation2 + $0x20] sm:$0xff]
        %v369 = vld [vmem:[#allocation2 + $0x28] sm:$0xff]
        %v370 = vld [vmem:[#allocation2 + $0x30] sm:$0xff]
        %v371 = vld [vmem:[#allocation2 + $0x38] sm:$0xff]
        %v372 = vld [vmem:[#allocation2 + $0x40] sm:$0xff]
        %v373 = vld [vmem:[#allocation2 + $0x48] sm:$0xff]
        %v374 = vld [vmem:[#allocation2 + $0x50] sm:$0xff]
        %v375 = vld [vmem:[#allocation2 + $0x58] sm:$0xff]
        %v376 = vld [vmem:[#allocation2 + $0x60] sm:$0xff]
        %v377 = vld [vmem:[#allocation2 + $0x68] sm:$0xff]
        %v378 = vld [vmem:[#allocation2 + $0x70] sm:$0xff]
        %v379 = vld [vmem:[#allocation2 + $0x78] sm:$0xff]
        %v380 = vld [vmem:[%s301] sm:$0xf]
        %v381 = vld [vmem:[%s301 + $0x4] sm:$0xf]
        %v382 = vld [vmem:[%s301 + $0x8] sm:$0xf]
        %v383 = vld [vmem:[%s301 + $0xc] sm:$0xf]
        %v384 = vld [vmem:[%s301 + $0x10] sm:$0xf]
        %v385 = vld [vmem:[%s301 + $0x14] sm:$0xf]
        %v386 = vld [vmem:[%s301 + $0x18] sm:$0xf]
        %v387 = vld [vmem:[%s301 + $0x1c] sm:$0xf]
        %v388 = vld [vmem:[%s301 + $0x20] sm:$0xf]
        %v389 = vld [vmem:[%s301 + $0x24] sm:$0xf]
        %v390 = vld [vmem:[%s301 + $0x28] sm:$0xf]
        %v391 = vld [vmem:[%s301 + $0x2c] sm:$0xf]
        %v392 = vld [vmem:[%s301 + $0x30] sm:$0xf]
        %v393 = vld [vmem:[%s301 + $0x34] sm:$0xf]
        %v394 = vld [vmem:[%s301 + $0x38] sm:$0xf]
        %v395 = vld [vmem:[%s301 + $0x3c] sm:$0xf]
        %v396 = vld [vmem:[%s334] sm:$0xf]
        %v397 = vld [vmem:[%s334 + $0x4] sm:$0xf]
        %v398 = vld [vmem:[%s334 + $0x8] sm:$0xf]
        %v399 = vld [vmem:[%s334 + $0xc] sm:$0xf]
        %v400 = vld [vmem:[%s334 + $0x10] sm:$0xf]
        %v401 = vld [vmem:[%s334 + $0x14] sm:$0xf]
        %v402 = vld [vmem:[%s334 + $0x18] sm:$0xf]
        %v403 = vld [vmem:[%s334 + $0x1c] sm:$0xf]
        %v404 = vld [vmem:[%s334 + $0x20] sm:$0xf]
        %v405 = vld [vmem:[%s334 + $0x24] sm:$0xf]
        %v406 = vld [vmem:[%s334 + $0x28] sm:$0xf]
        %v407 = vld [vmem:[%s334 + $0x2c] sm:$0xf]
        %v408 = vld [vmem:[%s334 + $0x30] sm:$0xf]
        %v409 = vld [vmem:[%s334 + $0x34] sm:$0xf]
        %v410 = vld [vmem:[%s334 + $0x38] sm:$0xf]
        %v411 = vld [vmem:[%s334 + $0x3c] sm:$0xf]
        %v428 = vunpack.c.l.b16 %v380
        %v429 = vunpack.c.l.b16 %v381
        %v430 = vunpack.c.l.b16 %v382
        %v431 = vunpack.c.l.b16 %v383
        %v432 = vunpack.c.l.b16 %v384
        %v433 = vunpack.c.l.b16 %v385
        %v434 = vunpack.c.l.b16 %v386
        %v435 = vunpack.c.l.b16 %v387
        %v436 = vunpack.c.l.b16 %v388
        %v437 = vunpack.c.l.b16 %v389
        %v438 = vunpack.c.l.b16 %v390
        %v439 = vunpack.c.l.b16 %v391
        %v440 = vunpack.c.l.b16 %v392
        %v441 = vunpack.c.l.b16 %v393
        %v442 = vunpack.c.l.b16 %v394
        %v443 = vunpack.c.l.b16 %v395
        %v444 = vpack.c.b16 %v429, %v428
        %v445 = vpack.c.b16 %v431, %v430
        %v446 = vpack.c.b16 %v433, %v432
        %v447 = vpack.c.b16 %v435, %v434
        %v448 = vpack.c.b16 %v437, %v436
        %v449 = vpack.c.b16 %v439, %v438
        %v450 = vpack.c.b16 %v441, %v440
        %v451 = vpack.c.b16 %v443, %v442
        %v476 = vunpack.c.l.b16 %v396
        %v477 = vunpack.c.l.b16 %v397
        %v478 = vunpack.c.l.b16 %v398
        %v479 = vunpack.c.l.b16 %v399
        %v480 = vunpack.c.l.b16 %v400
        %v481 = vunpack.c.l.b16 %v401
        %v482 = vunpack.c.l.b16 %v402
        %v483 = vunpack.c.l.b16 %v403
        %v484 = vunpack.c.l.b16 %v404
        %v485 = vunpack.c.l.b16 %v405
        %v486 = vunpack.c.l.b16 %v406
        %v487 = vunpack.c.l.b16 %v407
        %v488 = vunpack.c.l.b16 %v408
        %v489 = vunpack.c.l.b16 %v409
        %v490 = vunpack.c.l.b16 %v410
        %v491 = vunpack.c.l.b16 %v411
        %v492 = vpack.c.b16 %v477, %v476
        %v493 = vpack.c.b16 %v479, %v478
        %v494 = vpack.c.b16 %v481, %v480
        %v495 = vpack.c.b16 %v483, %v482
        %v496 = vpack.c.b16 %v485, %v484
        %v497 = vpack.c.b16 %v487, %v486
        %v498 = vpack.c.b16 %v489, %v488
        %v499 = vpack.c.b16 %v491, %v490
        %508 = vmatpush.bf16.msra.mxu0 %v499
        %509 = vmatpush.bf16.msra.mxu0 %v498
        %510 = vmatpush.bf16.msra.mxu0 %v497
        %511 = vmatpush.bf16.msra.mxu0 %v496
        %512 = vmatpush.bf16.msra.mxu0 %v495
        %513 = vmatpush.bf16.msra.mxu0 %v494
        %514 = vmatpush.bf16.msra.mxu0 %v493
        %515 = vmatpush.bf16.msra.mxu0 %v492
        %516 = vmatmul.bf16.gmra.mxu0 %v444
        %v517 = vpop.f32.mrf.mxu0
        %v518 = vadd.f32 0.0, %v517
        %v519 = vpop.f32.mrf.mxu0
        %v520 = vadd.f32 0.0, %v519
        %521 = vmatmul.bf16.gmra.mxu0 %v445
        %v522 = vpop.f32.mrf.mxu0
        %v523 = vadd.f32 0.0, %v522
        %v524 = vpop.f32.mrf.mxu0
        %v525 = vadd.f32 0.0, %v524
        %526 = vmatmul.bf16.gmra.mxu0 %v446
        %v527 = vpop.f32.mrf.mxu0
        %v528 = vadd.f32 0.0, %v527
        %v529 = vpop.f32.mrf.mxu0
        %v530 = vadd.f32 0.0, %v529
        %531 = vmatmul.bf16.gmra.mxu0 %v447
        %v532 = vpop.f32.mrf.mxu0
        %v533 = vadd.f32 0.0, %v532
        %v534 = vpop.f32.mrf.mxu0
        %v535 = vadd.f32 0.0, %v534
        %536 = vmatmul.bf16.gmra.mxu0 %v448
        %v537 = vpop.f32.mrf.mxu0
        %v538 = vadd.f32 0.0, %v537
        %v539 = vpop.f32.mrf.mxu0
        %v540 = vadd.f32 0.0, %v539
        %541 = vmatmul.bf16.gmra.mxu0 %v449
        %v542 = vpop.f32.mrf.mxu0
        %v543 = vadd.f32 0.0, %v542
        %v544 = vpop.f32.mrf.mxu0
        %v545 = vadd.f32 0.0, %v544
        %546 = vmatmul.bf16.gmra.mxu0 %v450
        %v547 = vpop.f32.mrf.mxu0
        %v548 = vadd.f32 0.0, %v547
        %v549 = vpop.f32.mrf.mxu0
        %v550 = vadd.f32 0.0, %v549
        %551 = vmatmul.bf16.gmra.mxu0 %v451
        %v552 = vpop.f32.mrf.mxu0
        %v553 = vadd.f32 0.0, %v552
        %v554 = vpop.f32.mrf.mxu0
        %v555 = vadd.f32 0.0, %v554
        %556 = vdwg.mxu0
        %v557 = vadd.f32 %v364, %v518
        %v558 = vadd.f32 %v365, %v520
        %v559 = vadd.f32 %v366, %v523
        %v560 = vadd.f32 %v367, %v525
        %v561 = vadd.f32 %v368, %v528
        %v562 = vadd.f32 %v369, %v530
        %v563 = vadd.f32 %v370, %v533
        %v564 = vadd.f32 %v371, %v535
        %v565 = vadd.f32 %v372, %v538
        %v566 = vadd.f32 %v373, %v540
        %v567 = vadd.f32 %v374, %v543
        %v568 = vadd.f32 %v375, %v545
        %v569 = vadd.f32 %v376, %v548
        %v570 = vadd.f32 %v377, %v550
        %v571 = vadd.f32 %v378, %v553
        %v572 = vadd.f32 %v379, %v555
        %vm573 = vcmask 97280
        %574 = vst.msk [vmem:[#allocation2] sm:$0xff] %vm573, %v557
        %575 = vst.msk [vmem:[#allocation2 + $0x8] sm:$0xff] %vm573, %v558
        %576 = vst.msk [vmem:[#allocation2 + $0x10] sm:$0xff] %vm573, %v559
        %577 = vst.msk [vmem:[#allocation2 + $0x18] sm:$0xff] %vm573, %v560
        %578 = vst.msk [vmem:[#allocation2 + $0x20] sm:$0xff] %vm573, %v561
        %579 = vst.msk [vmem:[#allocation2 + $0x28] sm:$0xff] %vm573, %v562
        %580 = vst.msk [vmem:[#allocation2 + $0x30] sm:$0xff] %vm573, %v563
        %581 = vst.msk [vmem:[#allocation2 + $0x38] sm:$0xff] %vm573, %v564
        %582 = vst.msk [vmem:[#allocation2 + $0x40] sm:$0xff] %vm573, %v565
        %583 = vst.msk [vmem:[#allocation2 + $0x48] sm:$0xff] %vm573, %v566
        %584 = vst.msk [vmem:[#allocation2 + $0x50] sm:$0xff] %vm573, %v567
        %585 = vst.msk [vmem:[#allocation2 + $0x58] sm:$0xff] %vm573, %v568
        %586 = vst.msk [vmem:[#allocation2 + $0x60] sm:$0xff] %vm573, %v569
        %587 = vst.msk [vmem:[#allocation2 + $0x68] sm:$0xff] %vm573, %v570
        %588 = vst.msk [vmem:[#allocation2 + $0x70] sm:$0xff] %vm573, %v571
        %589 = vst.msk [vmem:[#allocation2 + $0x78] sm:$0xff] %vm573, %v572
        %p590 = scmp.eq.s32.totalorder %s20, 1
        // Predicated region
        $region82: #{xxsgcn_forward.7} parent=72 // pred_check
          %p591 = pneg %p590
        $region83: #{xxsgcn_forward.7} parent=72 // pred_check_branch
          %593 = sbr.rel (%p591) target = $region85
        $region84: #{xxsgcn_forward.7} parent=72 // pred_region
          %v594 = vld [vmem:[#allocation2] sm:$0xff]
          %v595 = vld [vmem:[#allocation2 + $0x8] sm:$0xff]
          %v596 = vld [vmem:[#allocation2 + $0x10] sm:$0xff]
          %v597 = vld [vmem:[#allocation2 + $0x18] sm:$0xff]
          %v598 = vld [vmem:[#allocation2 + $0x20] sm:$0xff]
          %v599 = vld [vmem:[#allocation2 + $0x28] sm:$0xff]
          %v600 = vld [vmem:[#allocation2 + $0x30] sm:$0xff]
          %v601 = vld [vmem:[#allocation2 + $0x38] sm:$0xff]
          %v602 = vld [vmem:[#allocation2 + $0x40] sm:$0xff]
          %v603 = vld [vmem:[#allocation2 + $0x48] sm:$0xff]
          %v604 = vld [vmem:[#allocation2 + $0x50] sm:$0xff]
          %v605 = vld [vmem:[#allocation2 + $0x58] sm:$0xff]
          %v606 = vld [vmem:[#allocation2 + $0x60] sm:$0xff]
          %v607 = vld [vmem:[#allocation2 + $0x68] sm:$0xff]
          %v608 = vld [vmem:[#allocation2 + $0x70] sm:$0xff]
          %v609 = vld [vmem:[#allocation2 + $0x78] sm:$0xff]
          %v610 = vpack.c.bf16 %v595, %v594
          %v611 = vpack.c.bf16 %v597, %v596
          %v612 = vpack.c.bf16 %v599, %v598
          %v613 = vpack.c.bf16 %v601, %v600
          %v614 = vpack.c.bf16 %v603, %v602
          %v615 = vpack.c.bf16 %v605, %v604
          %v616 = vpack.c.bf16 %v607, %v606
          %v617 = vpack.c.bf16 %v609, %v608
          %v618 = vld [vmem:[%s2] sm:$0xf]
          %v619 = vld [vmem:[%s2 + $0x4] sm:$0x3]
          %v620 = vld [vmem:[%s3] sm:$0x1]
          %v622 = vperm.slane %v620, 0
          %v626 = vunpack.c.l.b16 %v618
          %v627 = vunpack.c.l.b16 %v619
          %v628 = vpack.c.b16 %v627, %v626
          %v630 = vsel %vm573, %v610, 0
          %v633 = vsel %vm573, %v611, 0
          %v636 = vsel %vm573, %v612, 0
          %v639 = vsel %vm573, %v613, 0
          %v642 = vsel %vm573, %v614, 0
          %v645 = vsel %vm573, %v615, 0
          %v648 = vsel %vm573, %v616, 0
          %v651 = vsel %vm573, %v617, 0
          %vm653 = vcmask 1045504
          %v655 = vsel %vm653, %v628, 0
          %657 = vmatpush.bf16.msra.mxu0 0
          %658 = vmatpush.bf16.msra.mxu0 0
          %659 = vmatpush.bf16.msra.mxu0 0
          %660 = vmatpush.bf16.msra.mxu0 0
          %661 = vmatpush.bf16.msra.mxu0 0
          %662 = vmatpush.bf16.msra.mxu0 0
          %663 = vmatpush.bf16.msra.mxu0 0
          %664 = vmatpush.bf16.msra.mxu0 %v655
          %665 = vmatmul.bf16.gmra.mxu0 %v630
          %v666 = vpop.f32.mrf.mxu0
          %v667 = vadd.f32 %v622, %v666
          %v668 = vpop.f32.mrf.mxu0
          %v669 = vadd.f32 %v622, %v668
          %670 = vmatmul.bf16.gmra.mxu0 %v633
          %v671 = vpop.f32.mrf.mxu0
          %v672 = vadd.f32 %v622, %v671
          %v673 = vpop.f32.mrf.mxu0
          %v674 = vadd.f32 %v622, %v673
          %675 = vmatmul.bf16.gmra.mxu0 %v636
          %v676 = vpop.f32.mrf.mxu0
          %v677 = vadd.f32 %v622, %v676
          %v678 = vpop.f32.mrf.mxu0
          %v679 = vadd.f32 %v622, %v678
          %680 = vmatmul.bf16.gmra.mxu0 %v639
          %v681 = vpop.f32.mrf.mxu0
          %v682 = vadd.f32 %v622, %v681
          %v683 = vpop.f32.mrf.mxu0
          %v684 = vadd.f32 %v622, %v683
          %685 = vmatmul.bf16.gmra.mxu0 %v642
          %v686 = vpop.f32.mrf.mxu0
          %v687 = vadd.f32 %v622, %v686
          %v688 = vpop.f32.mrf.mxu0
          %v689 = vadd.f32 %v622, %v688
          %690 = vmatmul.bf16.gmra.mxu0 %v645
          %v691 = vpop.f32.mrf.mxu0
          %v692 = vadd.f32 %v622, %v691
          %v693 = vpop.f32.mrf.mxu0
          %v694 = vadd.f32 %v622, %v693
          %695 = vmatmul.bf16.gmra.mxu0 %v648
          %v696 = vpop.f32.mrf.mxu0
          %v697 = vadd.f32 %v622, %v696
          %v698 = vpop.f32.mrf.mxu0
          %v699 = vadd.f32 %v622, %v698
          %700 = vmatmul.bf16.gmra.mxu0 %v651
          %v701 = vpop.f32.mrf.mxu0
          %v702 = vadd.f32 %v622, %v701
          %v703 = vpop.f32.mrf.mxu0
          %v704 = vadd.f32 %v622, %v703
          %705 = vdwg.mxu0
          %v706 = vmax.f32 %v667, 0.0
          %v707 = vmax.f32 %v669, 0.0
          %v708 = vmax.f32 %v672, 0.0
          %v709 = vmax.f32 %v674, 0.0
          %v710 = vmax.f32 %v677, 0.0
          %v711 = vmax.f32 %v679, 0.0
          %v712 = vmax.f32 %v682, 0.0
          %v713 = vmax.f32 %v684, 0.0
          %v714 = vmax.f32 %v687, 0.0
          %v715 = vmax.f32 %v689, 0.0
          %v716 = vmax.f32 %v692, 0.0
          %v717 = vmax.f32 %v694, 0.0
          %v718 = vmax.f32 %v697, 0.0
          %v719 = vmax.f32 %v699, 0.0
          %v720 = vmax.f32 %v702, 0.0
          %v721 = vmax.f32 %v704, 0.0
          %v722 = vpack.c.bf16 %v706, %v706
          %v723 = vpack.c.bf16 %v707, %v707
          %v724 = vpack.c.bf16 %v708, %v708
          %v725 = vpack.c.bf16 %v709, %v709
          %v726 = vpack.c.bf16 %v710, %v710
          %v727 = vpack.c.bf16 %v711, %v711
          %v728 = vpack.c.bf16 %v712, %v712
          %v729 = vpack.c.bf16 %v713, %v713
          %v730 = vpack.c.bf16 %v714, %v714
          %v731 = vpack.c.bf16 %v715, %v715
          %v732 = vpack.c.bf16 %v716, %v716
          %v733 = vpack.c.bf16 %v717, %v717
          %v734 = vpack.c.bf16 %v718, %v718
          %v735 = vpack.c.bf16 %v719, %v719
          %v736 = vpack.c.bf16 %v720, %v720
          %v737 = vpack.c.bf16 %v721, %v721
          %vm738 = vcmask 191488
          %739 = vst.msk [vmem:[%s340] sm:$0xf] %vm738, %v722
          %740 = vst.msk [vmem:[%s340 + $0x4] sm:$0xf] %vm738, %v723
          %741 = vst.msk [vmem:[%s340 + $0x8] sm:$0xf] %vm738, %v724
          %742 = vst.msk [vmem:[%s340 + $0xc] sm:$0xf] %vm738, %v725
          %743 = vst.msk [vmem:[%s340 + $0x10] sm:$0xf] %vm738, %v726
          %744 = vst.msk [vmem:[%s340 + $0x14] sm:$0xf] %vm738, %v727
          %745 = vst.msk [vmem:[%s340 + $0x18] sm:$0xf] %vm738, %v728
          %746 = vst.msk [vmem:[%s340 + $0x1c] sm:$0xf] %vm738, %v729
          %747 = vst.msk [vmem:[%s340 + $0x20] sm:$0xf] %vm738, %v730
          %748 = vst.msk [vmem:[%s340 + $0x24] sm:$0xf] %vm738, %v731
          %749 = vst.msk [vmem:[%s340 + $0x28] sm:$0xf] %vm738, %v732
          %750 = vst.msk [vmem:[%s340 + $0x2c] sm:$0xf] %vm738, %v733
          %751 = vst.msk [vmem:[%s340 + $0x30] sm:$0xf] %vm738, %v734
          %752 = vst.msk [vmem:[%s340 + $0x34] sm:$0xf] %vm738, %v735
          %753 = vst.msk [vmem:[%s340 + $0x38] sm:$0xf] %vm738, %v736
          %754 = vst.msk [vmem:[%s340 + $0x3c] sm:$0xf] %vm738, %v737
        $region85: #{xxsgcn_forward.7} parent=72 // pred_fallthru
          _
        %s755 = smul.u32 16, %s19
        %p756 = scmp.lt.s32.totalorder %s755, 31
        %s757 = scalar_select %p756, %s755, 31
        %s758 = smul.addr %s757, 4
        %s759 = scalar_lea.vmem %s4, %s758
        // Predicated region
        $region86: #{xxsgcn_forward.7} parent=72 // pred_check
          %p760 = pneg %p141
        $region87: #{xxsgcn_forward.7} parent=72 // pred_check_branch
          %762 = sbr.rel (%p760) target = $region89
        $region88: #{xxsgcn_forward.7} parent=72 // pred_region
          %s763 = smul.u32 16, %s19
        $region89: #{xxsgcn_forward.7} parent=72 // pred_fallthru
          _
      $region73: #{xxsgcn_forward.7} parent=5 // pred_fallthru
        _
      %p764 = scmp.le.s32.totalorder 2, %s10
      // Predicated region
      $region90: #{xxsgcn_forward.7} parent=5 // pred_check
        %p765 = pneg %p764
      $region91: #{xxsgcn_forward.7} parent=5 // pred_check_branch
        %767 = sbr.rel (%p765) target = $region93
      $region92: #{xxsgcn_forward.7} parent=5 // pred_region
        %s768 = ssub.s32 %s10, 2
        // Predicated region
        $region94: #{xxsgcn_forward.7} parent=92 // pred_check
          %p769 = pneg %p147
        $region95: #{xxsgcn_forward.7} parent=92 // pred_check_branch
          %771 = sbr.rel (%p769) target = $region97
        $region96: #{xxsgcn_forward.7} parent=92 // pred_region
          %s772 = smul.u32 16, %s21
          %p773 = scmp.lt.s32.totalorder %s772, 31
          %s774 = scalar_select %p773, %s772, 31
          %s775 = smul.addr %s774, 4
          %s776 = scalar_lea.vmem %s4, %s775
        $region97: #{xxsgcn_forward.7} parent=92 // pred_fallthru
          _
      $region93: #{xxsgcn_forward.7} parent=5 // pred_fallthru
        _
    $region6: #{xxsgcn_forward.7} parent=1 // loop_footer
      %s14 = sadd.s32 1, %s10
    $region7: #{xxsgcn_forward.7} parent=1 // loop_footer_branch
      %9 = sbr.rel target = $region3
    $region8: #{xxsgcn_forward.7} parent=1 // loop_exit
      _

// kernel: xxsgcn_forward.5
$region0: #{xxsgcn_forward.5}
  #allocation0 [shape = 'u32[]', space=smem, size = 0x4, offset = 0x4, fixed_abs, tag = 'smem constant byte address 0x4 - core index']
  #allocation1 [shape = 'u32[72,128]{1,0:T(1,128)}', space=vmem, size = 0x9000, scoped, tag = 'internal scratch']
  #allocation2 [shape = 'f32[128,4]{1,0:T(8,128)}', space=vmem, size = 0x10000, scoped, tag = 'scratch operand']
  %s0 = inlined_call_operand.vmem [shape: bf16[256,256], index: 0, kind: input, shape index: {}]
  %s1 = inlined_call_operand.vmem [shape: bf16[256,4], index: 1, kind: input, shape index: {}]
  %s2 = inlined_call_operand.vmem [shape: bf16[4,6], index: 2, kind: input, shape index: {}]
  %s3 = inlined_call_operand.vmem [shape: f32[1,6], index: 3, kind: input, shape index: {}]
  %s4 = inlined_call_operand.vmem [shape: bf16[256,6], index: 4, kind: output, shape index: {}]
  %s5 = sld [smem:[#allocation0]]
  $region98: #{xxsgcn_forward.5} parent=0
    _
  %s7 = ssub.s32 1, %s5
  %s8 = scalar_select 0, %s7, %s5
  $region1: #{xxsgcn_forward.5} parent=0
    #allocation3 [shape = 'u8[65536]{0}', space=vmem, size = 0x10000, scoped, tag = 'input window, operand 0']
    loop: start=0, step=1, limit=6
    $region2: #{xxsgcn_forward.5} parent=1 // loop_pre_header
      _
    $region3: #{xxsgcn_forward.5} parent=1 // loop_header
      %s10 = sphi 0, %s14
      %p11 = scmp.ge.s32.totalorder %s10, 6
      %s17 = sphi 0, %s29
      %s18 = sphi 0, %s25
      %s19 = sphi 0, %s17
      %s20 = sphi 0, %s18
      %s21 = sphi 0, %s19
      %s22 = sphi 0, %s20
      %s34 = sphi 0, %s36
      %s37 = sphi 0, %s34
      %s38 = sphi 0, %s37
      %s54 = sphi 0, %s38
      %s60 = sphi 0, %s62
      %s63 = sphi 0, %s60
      %s64 = sphi 0, %s63
      %s80 = sphi 0, %s64
      %s84 = sphi 0, %s84
      %s86 = sphi 0, %s84
      %s87 = sphi 0, %s86
      %s101 = sphi 0, %s87
      %s105 = sphi 0, %s105
      %s107 = sphi 0, %s105
      %s108 = sphi 0, %s107
      %s122 = sphi 0, %s108
      %s128 = sphi 0, %s130
      %s131 = sphi 0, %s128
      %s132 = sphi 0, %s131
      %s148 = sphi 0, %s132
    $region4: #{xxsgcn_forward.5} parent=1 // loop_header_branch
      %13 = sbr.rel (%p11) target = $region8
    $region5: #{xxsgcn_forward.5} parent=1 // loop_body
      %s15 = ssub.s32 %s10, 1
      %s16 = ssub.s32 %s10, 2
      %s23 = sadd.s32 1, %s18
      %p24 = scmp.ge.s32.totalorder %s23, 2
      %s25 = scalar_select %p24, 0, %s23
      %s26 = sadd.s32 1, %s17
      %s27 = scalar_select %p24, %s26, %s17
      %p28 = scmp.ge.s32.totalorder %s27, 2
      %s29 = scalar_select %p28, 0, %s27
      %s30 = ssub.s32 %s17, %s29
      %s31 = ssub.s32 %s18, %s25
      %s32 = sor.u32 %s30, %s31
      %p33 = scmp.eq.s32.totalorder %s32, 0
      %s35 = sadd.s32 %s34, 1
      %s36 = scalar_select %p33, %s34, %s35
      %p39 = pneg %p33
      %p40 = scmp.eq.s32.totalorder %s10, 3
      %p41 = por %p39, %p40
      %p42 = scmp.ne.s32.totalorder %s34, %s37
      %p43 = scmp.eq.s32.totalorder %s10, 0
      %p44 = por %p42, %p43
      %p45 = scmp.ne.s32.totalorder %s34, %s37
      %p46 = scmp.eq.s32.totalorder %s15, 3
      %p47 = por %p45, %p46
      %p48 = scmp.ne.s32.totalorder %s37, %s38
      %p49 = scmp.eq.s32.totalorder %s15, 0
      %p50 = por %p48, %p49
      %p51 = scmp.ne.s32.totalorder %s37, %s38
      %p52 = scmp.eq.s32.totalorder %s16, 3
      %p53 = por %p51, %p52
      %p55 = scmp.ne.s32.totalorder %s38, %s54
      %p56 = scmp.eq.s32.totalorder %s16, 0
      %p57 = por %p55, %p56
      %s58 = ssub.s32 %s18, %s25
      %p59 = scmp.eq.s32.totalorder %s58, 0
      %s61 = sadd.s32 %s60, 1
      %s62 = scalar_select %p59, %s60, %s61
      %p65 = pneg %p59
      %p66 = scmp.eq.s32.totalorder %s10, 3
      %p67 = por %p65, %p66
      %p68 = scmp.ne.s32.totalorder %s60, %s63
      %p69 = scmp.eq.s32.totalorder %s10, 0
      %p70 = por %p68, %p69
      %p71 = scmp.ne.s32.totalorder %s60, %s63
      %p72 = scmp.eq.s32.totalorder %s15, 3
      %p73 = por %p71, %p72
      %p74 = scmp.ne.s32.totalorder %s63, %s64
      %p75 = scmp.eq.s32.totalorder %s15, 0
      %p76 = por %p74, %p75
      %p77 = scmp.ne.s32.totalorder %s63, %s64
      %p78 = scmp.eq.s32.totalorder %s16, 3
      %p79 = por %p77, %p78
      %p81 = scmp.ne.s32.totalorder %s64, %s80
      %p82 = scmp.eq.s32.totalorder %s16, 0
      %p83 = por %p81, %p82
      %s85 = sadd.s32 %s84, 1
      %p88 = scmp.eq.s32.totalorder %s10, 3
      %p89 = scmp.ne.s32.totalorder %s84, %s86
      %p90 = scmp.eq.s32.totalorder %s10, 0
      %p91 = por %p89, %p90
      %p92 = scmp.ne.s32.totalorder %s84, %s86
      %p93 = scmp.eq.s32.totalorder %s15, 3
      %p94 = por %p92, %p93
      %p95 = scmp.ne.s32.totalorder %s86, %s87
      %p96 = scmp.eq.s32.totalorder %s15, 0
      %p97 = por %p95, %p96
      %p98 = scmp.ne.s32.totalorder %s86, %s87
      %p99 = scmp.eq.s32.totalorder %s16, 3
      %p100 = por %p98, %p99
      %p102 = scmp.ne.s32.totalorder %s87, %s101
      %p103 = scmp.eq.s32.totalorder %s16, 0
      %p104 = por %p102, %p103
      %s106 = sadd.s32 %s105, 1
      %p109 = scmp.eq.s32.totalorder %s10, 3
      %p110 = scmp.ne.s32.totalorder %s105, %s107
      %p111 = scmp.eq.s32.totalorder %s10, 0
      %p112 = por %p110, %p111
      %p113 = scmp.ne.s32.totalorder %s105, %s107
      %p114 = scmp.eq.s32.totalorder %s15, 3
      %p115 = por %p113, %p114
      %p116 = scmp.ne.s32.totalorder %s107, %s108
      %p117 = scmp.eq.s32.totalorder %s15, 0
      %p118 = por %p116, %p117
      %p119 = scmp.ne.s32.totalorder %s107, %s108
      %p120 = scmp.eq.s32.totalorder %s16, 3
      %p121 = por %p119, %p120
      %p123 = scmp.ne.s32.totalorder %s108, %s122
      %p124 = scmp.eq.s32.totalorder %s16, 0
      %p125 = por %p123, %p124
      %s126 = ssub.s32 %s17, %s29
      %p127 = scmp.eq.s32.totalorder %s126, 0
      %s129 = sadd.s32 %s128, 1
      %s130 = scalar_select %p127, %s128, %s129
      %p133 = pneg %p127
      %p134 = scmp.eq.s32.totalorder %s10, 3
      %p135 = por %p133, %p134
      %p136 = scmp.ne.s32.totalorder %s128, %s131
      %p137 = scmp.eq.s32.totalorder %s10, 0
      %p138 = por %p136, %p137
      %p139 = scmp.ne.s32.totalorder %s128, %s131
      %p140 = scmp.eq.s32.totalorder %s15, 3
      %p141 = por %p139, %p140
      %p142 = scmp.ne.s32.totalorder %s131, %s132
      %p143 = scmp.eq.s32.totalorder %s15, 0
      %p144 = por %p142, %p143
      %p145 = scmp.ne.s32.totalorder %s131, %s132
      %p146 = scmp.eq.s32.totalorder %s16, 3
      %p147 = por %p145, %p146
      %p149 = scmp.ne.s32.totalorder %s132, %s148
      %p150 = scmp.eq.s32.totalorder %s16, 0
      %p151 = por %p149, %p150
      %p152 = scmp.le.s32.totalorder 1, %s10
      %p153 = scmp.lt.s32.totalorder %s10, 5
      %p154 = pnand %p152, %p153
      %p155 = pneg %p154
      // Predicated region
      $region9: #{xxsgcn_forward.5} parent=5 // pred_check
        _
      $region10: #{xxsgcn_forward.5} parent=5 // pred_check_branch
        %157 = sbr.rel (%p154) target = $region12
      $region11: #{xxsgcn_forward.5} parent=5 // pred_region
        %s158 = ssub.s32 %s10, 1
        // Predicated region
        $region13: #{xxsgcn_forward.5} parent=11 // pred_check
          %p159 = pneg %p97
        $region14: #{xxsgcn_forward.5} parent=11 // pred_check_branch
          %161 = sbr.rel (%p159) target = $region16
        $region15: #{xxsgcn_forward.5} parent=11 // pred_region
          _
        $region16: #{xxsgcn_forward.5} parent=11 // pred_fallthru
          _
        // Predicated region
        $region17: #{xxsgcn_forward.5} parent=11 // pred_check
          %p162 = pneg %p118
        $region18: #{xxsgcn_forward.5} parent=11 // pred_check_branch
          %164 = sbr.rel (%p162) target = $region20
        $region19: #{xxsgcn_forward.5} parent=11 // pred_region
          _
        $region20: #{xxsgcn_forward.5} parent=11 // pred_fallthru
          _
      $region12: #{xxsgcn_forward.5} parent=5 // pred_fallthru
        _
      %p165 = scmp.lt.s32.totalorder %s10, 4
      // Predicated region
      $region21: #{xxsgcn_forward.5} parent=5 // pred_check
        %p166 = pneg %p165
      $region22: #{xxsgcn_forward.5} parent=5 // pred_check_branch
        %168 = sbr.rel (%p166) target = $region24
      $region23: #{xxsgcn_forward.5} parent=5 // pred_region
        // Predicated region
        $region25: #{xxsgcn_forward.5} parent=23 // pred_check
          %p169 = pneg %p44
        $region26: #{xxsgcn_forward.5} parent=23 // pred_check_branch
          %171 = sbr.rel (%p169) target = $region28
        $region27: #{xxsgcn_forward.5} parent=23 // pred_region
          %s172 = sand.u32 %s34, 1
          %s173 = sand.u32 %s34, 1
          %s174 = smul.addr %s173, 64
          %s175 = scalar_lea.vmem [#allocation3], %s174
          %s176 = smul.u32 16, %s17
          %s177 = smul.addr %s176, 2
          %s178 = sadd.s32 %s18, %s177
          %s179 = smul.addr %s178, 4
          %s180 = scalar_lea.vmem %s0, %s179
          // Predicated region
          $region29: #{xxsgcn_forward.5} parent=27 // pred_check
            _
          $region30: #{xxsgcn_forward.5} parent=27 // pred_check_branch
            %182 = sbr.rel (0) target = $region32
          $region31: #{xxsgcn_forward.5} parent=27 // pred_region
            // Predicated region
            $region33: #{xxsgcn_forward.5} parent=31 // pred_check
              _
            $region34: #{xxsgcn_forward.5} parent=31 // pred_check_branch
              %184 = sbr.rel target = $region36
            $region35: #{xxsgcn_forward.5} parent=31 // pred_region
              // Predicated region
              $region48: #{xxsgcn_forward.5} parent=35 // pred_check
                _
              $region49: #{xxsgcn_forward.5} parent=35 // pred_check_branch
                %230 = sbr.rel (0) target = $region51
              $region50: #{xxsgcn_forward.5} parent=35 // pred_region
                loop: start=0, step=1, limit=1
                $region52: #{xxsgcn_forward.5} parent=50 // loop_pre_header
                  _
                $region53: #{xxsgcn_forward.5} parent=50 // loop_header
                  %s232 = sphi 0, %s236
                  %p233 = scmp.ge.s32.totalorder %s232, 1
                  %s237 = sphi %s180, %s180
                  %s238 = sphi %s175, %s175
                $region54: #{xxsgcn_forward.5} parent=50 // loop_header_branch
                  %235 = sbr.rel (%p233) target = $region58
                $region55: #{xxsgcn_forward.5} parent=50 // loop_body
                  _
                $region56: #{xxsgcn_forward.5} parent=50 // loop_footer
                  %s236 = sadd.s32 1, %s232
                $region57: #{xxsgcn_forward.5} parent=50 // loop_footer_branch
                  %231 = sbr.rel target = $region53
                $region58: #{xxsgcn_forward.5} parent=50 // loop_exit
                  _
                %s240 = ssub.s32 16, 1
                loop: start=0, step=1, limit=1
                $region59: #{xxsgcn_forward.5} parent=50 // loop_pre_header
                  _
                $region60: #{xxsgcn_forward.5} parent=50 // loop_header
                  %s242 = sphi 0, %s246
                  %p243 = scmp.ge.s32.totalorder %s242, 1
                  %s247 = sphi %s180, %s180
                  %s248 = sphi %s175, %s175
                $region61: #{xxsgcn_forward.5} parent=50 // loop_header_branch
                  %245 = sbr.rel (%p243) target = $region65
                $region62: #{xxsgcn_forward.5} parent=50 // loop_body
                  %v249 = vld [vmem:[%s247] sm:%s240]
                  %250 = vst [vmem:[%s248] sm:%s240] %v249
                  %v251 = vld [vmem:[%s247 + $0x8] sm:%s240]
                  %252 = vst [vmem:[%s248 + $0x4] sm:%s240] %v251
                  %v253 = vld [vmem:[%s247 + $0x10] sm:%s240]
                  %254 = vst [vmem:[%s248 + $0x8] sm:%s240] %v253
                  %v255 = vld [vmem:[%s247 + $0x18] sm:%s240]
                  %256 = vst [vmem:[%s248 + $0xc] sm:%s240] %v255
                  %v257 = vld [vmem:[%s247 + $0x20] sm:%s240]
                  %258 = vst [vmem:[%s248 + $0x10] sm:%s240] %v257
                  %v259 = vld [vmem:[%s247 + $0x28] sm:%s240]
                  %260 = vst [vmem:[%s248 + $0x14] sm:%s240] %v259
                  %v261 = vld [vmem:[%s247 + $0x30] sm:%s240]
                  %262 = vst [vmem:[%s248 + $0x18] sm:%s240] %v261
                  %v263 = vld [vmem:[%s247 + $0x38] sm:%s240]
                  %264 = vst [vmem:[%s248 + $0x1c] sm:%s240] %v263
                  %v265 = vld [vmem:[%s247 + $0x40] sm:%s240]
                  %266 = vst [vmem:[%s248 + $0x20] sm:%s240] %v265
                  %v267 = vld [vmem:[%s247 + $0x48] sm:%s240]
                  %268 = vst [vmem:[%s248 + $0x24] sm:%s240] %v267
                  %v269 = vld [vmem:[%s247 + $0x50] sm:%s240]
                  %270 = vst [vmem:[%s248 + $0x28] sm:%s240] %v269
                  %v271 = vld [vmem:[%s247 + $0x58] sm:%s240]
                  %272 = vst [vmem:[%s248 + $0x2c] sm:%s240] %v271
                  %v273 = vld [vmem:[%s247 + $0x60] sm:%s240]
                  %274 = vst [vmem:[%s248 + $0x30] sm:%s240] %v273
                  %v275 = vld [vmem:[%s247 + $0x68] sm:%s240]
                  %276 = vst [vmem:[%s248 + $0x34] sm:%s240] %v275
                  %v277 = vld [vmem:[%s247 + $0x70] sm:%s240]
                  %278 = vst [vmem:[%s248 + $0x38] sm:%s240] %v277
                  %v279 = vld [vmem:[%s247 + $0x78] sm:%s240]
                  %280 = vst [vmem:[%s248 + $0x3c] sm:%s240] %v279
                $region63: #{xxsgcn_forward.5} parent=50 // loop_footer
                  %s246 = sadd.s32 1, %s242
                $region64: #{xxsgcn_forward.5} parent=50 // loop_footer_branch
                  %241 = sbr.rel target = $region60
                $region65: #{xxsgcn_forward.5} parent=50 // loop_exit
                  _
              $region51: #{xxsgcn_forward.5} parent=35 // pred_fallthru
                _
            $region36: #{xxsgcn_forward.5} parent=31 // pred_fallthru
              _
            // Predicated region
            $region37: #{xxsgcn_forward.5} parent=31 // pred_check
              _
            $region38: #{xxsgcn_forward.5} parent=31 // pred_check_branch
              %186 = sbr.rel (0) target = $region40
            $region39: #{xxsgcn_forward.5} parent=31 // pred_region
              %s188 = ssub.s32 16, 1
              loop: start=0, step=1, limit=1
              $region41: #{xxsgcn_forward.5} parent=39 // loop_pre_header
                _
              $region42: #{xxsgcn_forward.5} parent=39 // loop_header
                %s190 = sphi 0, %s194
                %p191 = scmp.ge.s32.totalorder %s190, 1
                %s195 = sphi %s180, %s180
                %s196 = sphi %s175, %s175
              $region43: #{xxsgcn_forward.5} parent=39 // loop_header_branch
                %193 = sbr.rel (%p191) target = $region47
              $region44: #{xxsgcn_forward.5} parent=39 // loop_body
                %v197 = vld [vmem:[%s195] sm:%s188]
                %198 = vst [vmem:[%s196] sm:%s188] %v197
                %v199 = vld [vmem:[%s195 + $0x8] sm:%s188]
                %200 = vst [vmem:[%s196 + $0x4] sm:%s188] %v199
                %v201 = vld [vmem:[%s195 + $0x10] sm:%s188]
                %202 = vst [vmem:[%s196 + $0x8] sm:%s188] %v201
                %v203 = vld [vmem:[%s195 + $0x18] sm:%s188]
                %204 = vst [vmem:[%s196 + $0xc] sm:%s188] %v203
                %v205 = vld [vmem:[%s195 + $0x20] sm:%s188]
                %206 = vst [vmem:[%s196 + $0x10] sm:%s188] %v205
                %v207 = vld [vmem:[%s195 + $0x28] sm:%s188]
                %208 = vst [vmem:[%s196 + $0x14] sm:%s188] %v207
                %v209 = vld [vmem:[%s195 + $0x30] sm:%s188]
                %210 = vst [vmem:[%s196 + $0x18] sm:%s188] %v209
                %v211 = vld [vmem:[%s195 + $0x38] sm:%s188]
                %212 = vst [vmem:[%s196 + $0x1c] sm:%s188] %v211
                %v213 = vld [vmem:[%s195 + $0x40] sm:%s188]
                %214 = vst [vmem:[%s196 + $0x20] sm:%s188] %v213
                %v215 = vld [vmem:[%s195 + $0x48] sm:%s188]
                %216 = vst [vmem:[%s196 + $0x24] sm:%s188] %v215
                %v217 = vld [vmem:[%s195 + $0x50] sm:%s188]
                %218 = vst [vmem:[%s196 + $0x28] sm:%s188] %v217
                %v219 = vld [vmem:[%s195 + $0x58] sm:%s188]
                %220 = vst [vmem:[%s196 + $0x2c] sm:%s188] %v219
                %v221 = vld [vmem:[%s195 + $0x60] sm:%s188]
                %222 = vst [vmem:[%s196 + $0x30] sm:%s188] %v221
                %v223 = vld [vmem:[%s195 + $0x68] sm:%s188]
                %224 = vst [vmem:[%s196 + $0x34] sm:%s188] %v223
                %v225 = vld [vmem:[%s195 + $0x70] sm:%s188]
                %226 = vst [vmem:[%s196 + $0x38] sm:%s188] %v225
                %v227 = vld [vmem:[%s195 + $0x78] sm:%s188]
                %228 = vst [vmem:[%s196 + $0x3c] sm:%s188] %v227
              $region45: #{xxsgcn_forward.5} parent=39 // loop_footer
                %s194 = sadd.s32 1, %s190
              $region46: #{xxsgcn_forward.5} parent=39 // loop_footer_branch
                %189 = sbr.rel target = $region42
              $region47: #{xxsgcn_forward.5} parent=39 // loop_exit
                _
            $region40: #{xxsgcn_forward.5} parent=31 // pred_fallthru
              _
          $region32: #{xxsgcn_forward.5} parent=27 // pred_fallthru
            _
          %281 = vnop
        $region28: #{xxsgcn_forward.5} parent=23 // pred_fallthru
          _
        // Predicated region
        $region66: #{xxsgcn_forward.5} parent=23 // pred_check
          %p282 = pneg %p70
        $region67: #{xxsgcn_forward.5} parent=23 // pred_check_branch
          %284 = sbr.rel (%p282) target = $region69
        $region68: #{xxsgcn_forward.5} parent=23 // pred_region
          %s285 = smul.u32 16, %s18
          %p286 = scmp.lt.s32.totalorder %s285, 31
          %s287 = scalar_select %p286, %s285, 31
          %s288 = smul.addr %s287, 4
          %s289 = scalar_lea.vmem %s1, %s288
          %s290 = smul.u32 16, %s18
        $region69: #{xxsgcn_forward.5} parent=23 // pred_fallthru
          _
      $region24: #{xxsgcn_forward.5} parent=5 // pred_fallthru
        _
      %p291 = scmp.le.s32.totalorder 1, %s10
      %p292 = scmp.lt.s32.totalorder %s10, 5
      %p293 = pnand %p291, %p292
      %p294 = pneg %p293
      // Predicated region
      $region70: #{xxsgcn_forward.5} parent=5 // pred_check
        _
      $region71: #{xxsgcn_forward.5} parent=5 // pred_check_branch
        %296 = sbr.rel (%p293) target = $region73
      $region72: #{xxsgcn_forward.5} parent=5 // pred_region
        %s297 = ssub.s32 %s10, 1
        %s298 = sand.u32 %s37, 1
        %s299 = sand.u32 %s37, 1
        %s300 = smul.addr %s299, 64
        %s301 = scalar_lea.vmem [#allocation3], %s300
        // Predicated region
        $region74: #{xxsgcn_forward.5} parent=72 // pred_check
          %p302 = pneg %p50
        $region75: #{xxsgcn_forward.5} parent=72 // pred_check_branch
          %304 = sbr.rel (%p302) target = $region77
        $region76: #{xxsgcn_forward.5} parent=72 // pred_region
          _
        $region77: #{xxsgcn_forward.5} parent=72 // pred_fallthru
          _
        %s305 = sand.u32 %s37, 1
        %s306 = sand.u32 %s37, 1
        %s307 = smul.addr %s306, 64
        %s308 = scalar_lea.vmem [#allocation3], %s307
        %p309 = pneg %p50
        %p310 = pneg %p47
        %s311 = smul.u32 16, %s20
        %p312 = scmp.lt.s32.totalorder %s311, 31
        %s313 = scalar_select %p312, %s311, 31
        %s314 = smul.addr %s313, 4
        %s315 = scalar_lea.vmem %s1, %s314
        %p316 = pneg %p76
        %p317 = pneg %p73
        %p318 = pneg %p97
        %p319 = pneg %p94
        %p320 = pneg %p118
        %p321 = pneg %p115
        %p322 = pneg %p144
        %p323 = pneg %p141
        %s324 = smul.u32 16, %s19
        %p325 = scmp.lt.s32.totalorder %s324, 31
        %s326 = scalar_select %p325, %s324, 31
        %s327 = smul.addr %s326, 4
        %s328 = scalar_lea.vmem %s4, %s327
        %s329 = smul.u32 16, %s19
        %s330 = smul.u32 16, %s20
        %p331 = scmp.lt.s32.totalorder %s330, 31
        %s332 = scalar_select %p331, %s330, 31
        %s333 = smul.addr %s332, 4
        %s334 = scalar_lea.vmem %s1, %s333
        %s335 = smul.u32 16, %s20
        %s336 = smul.u32 16, %s19
        %p337 = scmp.lt.s32.totalorder %s336, 31
        %s338 = scalar_select %p337, %s336, 31
        %s339 = smul.addr %s338, 4
        %s340 = scalar_lea.vmem %s4, %s339
        %s341 = smul.u32 16, %s19
        %p343 = scmp.eq.s32.totalorder %s20, 0
        // Predicated region
        $region78: #{xxsgcn_forward.5} parent=72 // pred_check
          %p344 = pneg %p343
        $region79: #{xxsgcn_forward.5} parent=72 // pred_check_branch
          %346 = sbr.rel (%p344) target = $region81
        $region80: #{xxsgcn_forward.5} parent=72 // pred_region
          %vm347 = vcmask 31744
          %348 = vst.msk [vmem:[#allocation2] sm:$0xff] %vm347, 0.0
          %349 = vst.msk [vmem:[#allocation2 + $0x8] sm:$0xff] %vm347, 0.0
          %350 = vst.msk [vmem:[#allocation2 + $0x10] sm:$0xff] %vm347, 0.0
          %351 = vst.msk [vmem:[#allocation2 + $0x18] sm:$0xff] %vm347, 0.0
          %352 = vst.msk [vmem:[#allocation2 + $0x20] sm:$0xff] %vm347, 0.0
          %353 = vst.msk [vmem:[#allocation2 + $0x28] sm:$0xff] %vm347, 0.0
          %354 = vst.msk [vmem:[#allocation2 + $0x30] sm:$0xff] %vm347, 0.0
          %355 = vst.msk [vmem:[#allocation2 + $0x38] sm:$0xff] %vm347, 0.0
          %356 = vst.msk [vmem:[#allocation2 + $0x40] sm:$0xff] %vm347, 0.0
          %357 = vst.msk [vmem:[#allocation2 + $0x48] sm:$0xff] %vm347, 0.0
          %358 = vst.msk [vmem:[#allocation2 + $0x50] sm:$0xff] %vm347, 0.0
          %359 = vst.msk [vmem:[#allocation2 + $0x58] sm:$0xff] %vm347, 0.0
          %360 = vst.msk [vmem:[#allocation2 + $0x60] sm:$0xff] %vm347, 0.0
          %361 = vst.msk [vmem:[#allocation2 + $0x68] sm:$0xff] %vm347, 0.0
          %362 = vst.msk [vmem:[#allocation2 + $0x70] sm:$0xff] %vm347, 0.0
          %363 = vst.msk [vmem:[#allocation2 + $0x78] sm:$0xff] %vm347, 0.0
        $region81: #{xxsgcn_forward.5} parent=72 // pred_fallthru
          _
        %v364 = vld [vmem:[#allocation2] sm:$0xff]
        %v365 = vld [vmem:[#allocation2 + $0x8] sm:$0xff]
        %v366 = vld [vmem:[#allocation2 + $0x10] sm:$0xff]
        %v367 = vld [vmem:[#allocation2 + $0x18] sm:$0xff]
        %v368 = vld [vmem:[#allocation2 + $0x20] sm:$0xff]
        %v369 = vld [vmem:[#allocation2 + $0x28] sm:$0xff]
        %v370 = vld [vmem:[#allocation2 + $0x30] sm:$0xff]
        %v371 = vld [vmem:[#allocation2 + $0x38] sm:$0xff]
        %v372 = vld [vmem:[#allocation2 + $0x40] sm:$0xff]
        %v373 = vld [vmem:[#allocation2 + $0x48] sm:$0xff]
        %v374 = vld [vmem:[#allocation2 + $0x50] sm:$0xff]
        %v375 = vld [vmem:[#allocation2 + $0x58] sm:$0xff]
        %v376 = vld [vmem:[#allocation2 + $0x60] sm:$0xff]
        %v377 = vld [vmem:[#allocation2 + $0x68] sm:$0xff]
        %v378 = vld [vmem:[#allocation2 + $0x70] sm:$0xff]
        %v379 = vld [vmem:[#allocation2 + $0x78] sm:$0xff]
        %v380 = vld [vmem:[%s301] sm:$0xf]
        %v381 = vld [vmem:[%s301 + $0x4] sm:$0xf]
        %v382 = vld [vmem:[%s301 + $0x8] sm:$0xf]
        %v383 = vld [vmem:[%s301 + $0xc] sm:$0xf]
        %v384 = vld [vmem:[%s301 + $0x10] sm:$0xf]
        %v385 = vld [vmem:[%s301 + $0x14] sm:$0xf]
        %v386 = vld [vmem:[%s301 + $0x18] sm:$0xf]
        %v387 = vld [vmem:[%s301 + $0x1c] sm:$0xf]
        %v388 = vld [vmem:[%s301 + $0x20] sm:$0xf]
        %v389 = vld [vmem:[%s301 + $0x24] sm:$0xf]
        %v390 = vld [vmem:[%s301 + $0x28] sm:$0xf]
        %v391 = vld [vmem:[%s301 + $0x2c] sm:$0xf]
        %v392 = vld [vmem:[%s301 + $0x30] sm:$0xf]
        %v393 = vld [vmem:[%s301 + $0x34] sm:$0xf]
        %v394 = vld [vmem:[%s301 + $0x38] sm:$0xf]
        %v395 = vld [vmem:[%s301 + $0x3c] sm:$0xf]
        %v396 = vld [vmem:[%s334] sm:$0xf]
        %v397 = vld [vmem:[%s334 + $0x4] sm:$0xf]
        %v398 = vld [vmem:[%s334 + $0x8] sm:$0xf]
        %v399 = vld [vmem:[%s334 + $0xc] sm:$0xf]
        %v400 = vld [vmem:[%s334 + $0x10] sm:$0xf]
        %v401 = vld [vmem:[%s334 + $0x14] sm:$0xf]
        %v402 = vld [vmem:[%s334 + $0x18] sm:$0xf]
        %v403 = vld [vmem:[%s334 + $0x1c] sm:$0xf]
        %v404 = vld [vmem:[%s334 + $0x20] sm:$0xf]
        %v405 = vld [vmem:[%s334 + $0x24] sm:$0xf]
        %v406 = vld [vmem:[%s334 + $0x28] sm:$0xf]
        %v407 = vld [vmem:[%s334 + $0x2c] sm:$0xf]
        %v408 = vld [vmem:[%s334 + $0x30] sm:$0xf]
        %v409 = vld [vmem:[%s334 + $0x34] sm:$0xf]
        %v410 = vld [vmem:[%s334 + $0x38] sm:$0xf]
        %v411 = vld [vmem:[%s334 + $0x3c] sm:$0xf]
        %v428 = vunpack.c.l.b16 %v380
        %v429 = vunpack.c.l.b16 %v381
        %v430 = vunpack.c.l.b16 %v382
        %v431 = vunpack.c.l.b16 %v383
        %v432 = vunpack.c.l.b16 %v384
        %v433 = vunpack.c.l.b16 %v385
        %v434 = vunpack.c.l.b16 %v386
        %v435 = vunpack.c.l.b16 %v387
        %v436 = vunpack.c.l.b16 %v388
        %v437 = vunpack.c.l.b16 %v389
        %v438 = vunpack.c.l.b16 %v390
        %v439 = vunpack.c.l.b16 %v391
        %v440 = vunpack.c.l.b16 %v392
        %v441 = vunpack.c.l.b16 %v393
        %v442 = vunpack.c.l.b16 %v394
        %v443 = vunpack.c.l.b16 %v395
        %v444 = vpack.c.b16 %v429, %v428
        %v445 = vpack.c.b16 %v431, %v430
        %v446 = vpack.c.b16 %v433, %v432
        %v447 = vpack.c.b16 %v435, %v434
        %v448 = vpack.c.b16 %v437, %v436
        %v449 = vpack.c.b16 %v439, %v438
        %v450 = vpack.c.b16 %v441, %v440
        %v451 = vpack.c.b16 %v443, %v442
        %v476 = vunpack.c.l.b16 %v396
        %v477 = vunpack.c.l.b16 %v397
        %v478 = vunpack.c.l.b16 %v398
        %v479 = vunpack.c.l.b16 %v399
        %v480 = vunpack.c.l.b16 %v400
        %v481 = vunpack.c.l.b16 %v401
        %v482 = vunpack.c.l.b16 %v402
        %v483 = vunpack.c.l.b16 %v403
        %v484 = vunpack.c.l.b16 %v404
        %v485 = vunpack.c.l.b16 %v405
        %v486 = vunpack.c.l.b16 %v406
        %v487 = vunpack.c.l.b16 %v407
        %v488 = vunpack.c.l.b16 %v408
        %v489 = vunpack.c.l.b16 %v409
        %v490 = vunpack.c.l.b16 %v410
        %v491 = vunpack.c.l.b16 %v411
        %v492 = vpack.c.b16 %v477, %v476
        %v493 = vpack.c.b16 %v479, %v478
        %v494 = vpack.c.b16 %v481, %v480
        %v495 = vpack.c.b16 %v483, %v482
        %v496 = vpack.c.b16 %v485, %v484
        %v497 = vpack.c.b16 %v487, %v486
        %v498 = vpack.c.b16 %v489, %v488
        %v499 = vpack.c.b16 %v491, %v490
        %508 = vmatpush.bf16.msra.mxu0 %v499
        %509 = vmatpush.bf16.msra.mxu0 %v498
        %510 = vmatpush.bf16.msra.mxu0 %v497
        %511 = vmatpush.bf16.msra.mxu0 %v496
        %512 = vmatpush.bf16.msra.mxu0 %v495
        %513 = vmatpush.bf16.msra.mxu0 %v494
        %514 = vmatpush.bf16.msra.mxu0 %v493
        %515 = vmatpush.bf16.msra.mxu0 %v492
        %516 = vmatmul.bf16.gmra.mxu0 %v444
        %v517 = vpop.f32.mrf.mxu0
        %v518 = vadd.f32 0.0, %v517
        %v519 = vpop.f32.mrf.mxu0
        %v520 = vadd.f32 0.0, %v519
        %521 = vmatmul.bf16.gmra.mxu0 %v445
        %v522 = vpop.f32.mrf.mxu0
        %v523 = vadd.f32 0.0, %v522
        %v524 = vpop.f32.mrf.mxu0
        %v525 = vadd.f32 0.0, %v524
        %526 = vmatmul.bf16.gmra.mxu0 %v446
        %v527 = vpop.f32.mrf.mxu0
        %v528 = vadd.f32 0.0, %v527
        %v529 = vpop.f32.mrf.mxu0
        %v530 = vadd.f32 0.0, %v529
        %531 = vmatmul.bf16.gmra.mxu0 %v447
        %v532 = vpop.f32.mrf.mxu0
        %v533 = vadd.f32 0.0, %v532
        %v534 = vpop.f32.mrf.mxu0
        %v535 = vadd.f32 0.0, %v534
        %536 = vmatmul.bf16.gmra.mxu0 %v448
        %v537 = vpop.f32.mrf.mxu0
        %v538 = vadd.f32 0.0, %v537
        %v539 = vpop.f32.mrf.mxu0
        %v540 = vadd.f32 0.0, %v539
        %541 = vmatmul.bf16.gmra.mxu0 %v449
        %v542 = vpop.f32.mrf.mxu0
        %v543 = vadd.f32 0.0, %v542
        %v544 = vpop.f32.mrf.mxu0
        %v545 = vadd.f32 0.0, %v544
        %546 = vmatmul.bf16.gmra.mxu0 %v450
        %v547 = vpop.f32.mrf.mxu0
        %v548 = vadd.f32 0.0, %v547
        %v549 = vpop.f32.mrf.mxu0
        %v550 = vadd.f32 0.0, %v549
        %551 = vmatmul.bf16.gmra.mxu0 %v451
        %v552 = vpop.f32.mrf.mxu0
        %v553 = vadd.f32 0.0, %v552
        %v554 = vpop.f32.mrf.mxu0
        %v555 = vadd.f32 0.0, %v554
        %556 = vdwg.mxu0
        %v557 = vadd.f32 %v364, %v518
        %v558 = vadd.f32 %v365, %v520
        %v559 = vadd.f32 %v366, %v523
        %v560 = vadd.f32 %v367, %v525
        %v561 = vadd.f32 %v368, %v528
        %v562 = vadd.f32 %v369, %v530
        %v563 = vadd.f32 %v370, %v533
        %v564 = vadd.f32 %v371, %v535
        %v565 = vadd.f32 %v372, %v538
        %v566 = vadd.f32 %v373, %v540
        %v567 = vadd.f32 %v374, %v543
        %v568 = vadd.f32 %v375, %v545
        %v569 = vadd.f32 %v376, %v548
        %v570 = vadd.f32 %v377, %v550
        %v571 = vadd.f32 %v378, %v553
        %v572 = vadd.f32 %v379, %v555
        %vm573 = vcmask 31744
        %574 = vst.msk [vmem:[#allocation2] sm:$0xff] %vm573, %v557
        %575 = vst.msk [vmem:[#allocation2 + $0x8] sm:$0xff] %vm573, %v558
        %576 = vst.msk [vmem:[#allocation2 + $0x10] sm:$0xff] %vm573, %v559
        %577 = vst.msk [vmem:[#allocation2 + $0x18] sm:$0xff] %vm573, %v560
        %578 = vst.msk [vmem:[#allocation2 + $0x20] sm:$0xff] %vm573, %v561
        %579 = vst.msk [vmem:[#allocation2 + $0x28] sm:$0xff] %vm573, %v562
        %580 = vst.msk [vmem:[#allocation2 + $0x30] sm:$0xff] %vm573, %v563
        %581 = vst.msk [vmem:[#allocation2 + $0x38] sm:$0xff] %vm573, %v564
        %582 = vst.msk [vmem:[#allocation2 + $0x40] sm:$0xff] %vm573, %v565
        %583 = vst.msk [vmem:[#allocation2 + $0x48] sm:$0xff] %vm573, %v566
        %584 = vst.msk [vmem:[#allocation2 + $0x50] sm:$0xff] %vm573, %v567
        %585 = vst.msk [vmem:[#allocation2 + $0x58] sm:$0xff] %vm573, %v568
        %586 = vst.msk [vmem:[#allocation2 + $0x60] sm:$0xff] %vm573, %v569
        %587 = vst.msk [vmem:[#allocation2 + $0x68] sm:$0xff] %vm573, %v570
        %588 = vst.msk [vmem:[#allocation2 + $0x70] sm:$0xff] %vm573, %v571
        %589 = vst.msk [vmem:[#allocation2 + $0x78] sm:$0xff] %vm573, %v572
        %p590 = scmp.eq.s32.totalorder %s20, 1
        // Predicated region
        $region82: #{xxsgcn_forward.5} parent=72 // pred_check
          %p591 = pneg %p590
        $region83: #{xxsgcn_forward.5} parent=72 // pred_check_branch
          %593 = sbr.rel (%p591) target = $region85
        $region84: #{xxsgcn_forward.5} parent=72 // pred_region
          %v594 = vld [vmem:[#allocation2] sm:$0xff]
          %v595 = vld [vmem:[#allocation2 + $0x8] sm:$0xff]
          %v596 = vld [vmem:[#allocation2 + $0x10] sm:$0xff]
          %v597 = vld [vmem:[#allocation2 + $0x18] sm:$0xff]
          %v598 = vld [vmem:[#allocation2 + $0x20] sm:$0xff]
          %v599 = vld [vmem:[#allocation2 + $0x28] sm:$0xff]
          %v600 = vld [vmem:[#allocation2 + $0x30] sm:$0xff]
          %v601 = vld [vmem:[#allocation2 + $0x38] sm:$0xff]
          %v602 = vld [vmem:[#allocation2 + $0x40] sm:$0xff]
          %v603 = vld [vmem:[#allocation2 + $0x48] sm:$0xff]
          %v604 = vld [vmem:[#allocation2 + $0x50] sm:$0xff]
          %v605 = vld [vmem:[#allocation2 + $0x58] sm:$0xff]
          %v606 = vld [vmem:[#allocation2 + $0x60] sm:$0xff]
          %v607 = vld [vmem:[#allocation2 + $0x68] sm:$0xff]
          %v608 = vld [vmem:[#allocation2 + $0x70] sm:$0xff]
          %v609 = vld [vmem:[#allocation2 + $0x78] sm:$0xff]
          %v610 = vpack.c.bf16 %v595, %v594
          %v611 = vpack.c.bf16 %v597, %v596
          %v612 = vpack.c.bf16 %v599, %v598
          %v613 = vpack.c.bf16 %v601, %v600
          %v614 = vpack.c.bf16 %v603, %v602
          %v615 = vpack.c.bf16 %v605, %v604
          %v616 = vpack.c.bf16 %v607, %v606
          %v617 = vpack.c.bf16 %v609, %v608
          %v618 = vld [vmem:[%s2] sm:$0x3]
          %v619 = vld [vmem:[%s3] sm:$0x1]
          %v621 = vperm.slane %v619, 0
          %v624 = vsel %vm573, %v610, 0
          %v627 = vsel %vm573, %v611, 0
          %v630 = vsel %vm573, %v612, 0
          %v633 = vsel %vm573, %v613, 0
          %v636 = vsel %vm573, %v614, 0
          %v639 = vsel %vm573, %v615, 0
          %v642 = vsel %vm573, %v616, 0
          %v645 = vsel %vm573, %v617, 0
          %vm647 = vcmask 1041408
          %v649 = vsel %vm647, %v618, 0
          %651 = vmatpush.bf16.msra.mxu0 0
          %652 = vmatpush.bf16.msra.mxu0 0
          %653 = vmatpush.bf16.msra.mxu0 0
          %654 = vmatpush.bf16.msra.mxu0 0
          %655 = vmatpush.bf16.msra.mxu0 0
          %656 = vmatpush.bf16.msra.mxu0 0
          %657 = vmatpush.bf16.msra.mxu0 0
          %658 = vmatpush.bf16.msra.mxu0 %v649
          %659 = vmatmul.bf16.gmra.mxu0 %v624
          %v660 = vpop.f32.mrf.mxu0
          %v661 = vadd.f32 %v621, %v660
          %v662 = vpop.f32.mrf.mxu0
          %v663 = vadd.f32 %v621, %v662
          %664 = vmatmul.bf16.gmra.mxu0 %v627
          %v665 = vpop.f32.mrf.mxu0
          %v666 = vadd.f32 %v621, %v665
          %v667 = vpop.f32.mrf.mxu0
          %v668 = vadd.f32 %v621, %v667
          %669 = vmatmul.bf16.gmra.mxu0 %v630
          %v670 = vpop.f32.mrf.mxu0
          %v671 = vadd.f32 %v621, %v670
          %v672 = vpop.f32.mrf.mxu0
          %v673 = vadd.f32 %v621, %v672
          %674 = vmatmul.bf16.gmra.mxu0 %v633
          %v675 = vpop.f32.mrf.mxu0
          %v676 = vadd.f32 %v621, %v675
          %v677 = vpop.f32.mrf.mxu0
          %v678 = vadd.f32 %v621, %v677
          %679 = vmatmul.bf16.gmra.mxu0 %v636
          %v680 = vpop.f32.mrf.mxu0
          %v681 = vadd.f32 %v621, %v680
          %v682 = vpop.f32.mrf.mxu0
          %v683 = vadd.f32 %v621, %v682
          %684 = vmatmul.bf16.gmra.mxu0 %v639
          %v685 = vpop.f32.mrf.mxu0
          %v686 = vadd.f32 %v621, %v685
          %v687 = vpop.f32.mrf.mxu0
          %v688 = vadd.f32 %v621, %v687
          %689 = vmatmul.bf16.gmra.mxu0 %v642
          %v690 = vpop.f32.mrf.mxu0
          %v691 = vadd.f32 %v621, %v690
          %v692 = vpop.f32.mrf.mxu0
          %v693 = vadd.f32 %v621, %v692
          %694 = vmatmul.bf16.gmra.mxu0 %v645
          %v695 = vpop.f32.mrf.mxu0
          %v696 = vadd.f32 %v621, %v695
          %v697 = vpop.f32.mrf.mxu0
          %v698 = vadd.f32 %v621, %v697
          %699 = vdwg.mxu0
          %v700 = vmax.f32 %v661, 0.0
          %v701 = vmax.f32 %v663, 0.0
          %v702 = vmax.f32 %v666, 0.0
          %v703 = vmax.f32 %v668, 0.0
          %v704 = vmax.f32 %v671, 0.0
          %v705 = vmax.f32 %v673, 0.0
          %v706 = vmax.f32 %v676, 0.0
          %v707 = vmax.f32 %v678, 0.0
          %v708 = vmax.f32 %v681, 0.0
          %v709 = vmax.f32 %v683, 0.0
          %v710 = vmax.f32 %v686, 0.0
          %v711 = vmax.f32 %v688, 0.0
          %v712 = vmax.f32 %v691, 0.0
          %v713 = vmax.f32 %v693, 0.0
          %v714 = vmax.f32 %v696, 0.0
          %v715 = vmax.f32 %v698, 0.0
          %v716 = vpack.c.bf16 %v700, %v700
          %v717 = vpack.c.bf16 %v701, %v701
          %v718 = vpack.c.bf16 %v702, %v702
          %v719 = vpack.c.bf16 %v703, %v703
          %v720 = vpack.c.bf16 %v704, %v704
          %v721 = vpack.c.bf16 %v705, %v705
          %v722 = vpack.c.bf16 %v706, %v706
          %v723 = vpack.c.bf16 %v707, %v707
          %v724 = vpack.c.bf16 %v708, %v708
          %v725 = vpack.c.bf16 %v709, %v709
          %v726 = vpack.c.bf16 %v710, %v710
          %v727 = vpack.c.bf16 %v711, %v711
          %v728 = vpack.c.bf16 %v712, %v712
          %v729 = vpack.c.bf16 %v713, %v713
          %v730 = vpack.c.bf16 %v714, %v714
          %v731 = vpack.c.bf16 %v715, %v715
          %vm732 = vcmask 44032
          %733 = vst.msk [vmem:[%s340] sm:$0xf] %vm732, %v716
          %734 = vst.msk [vmem:[%s340 + $0x4] sm:$0xf] %vm732, %v717
          %735 = vst.msk [vmem:[%s340 + $0x8] sm:$0xf] %vm732, %v718
          %736 = vst.msk [vmem:[%s340 + $0xc] sm:$0xf] %vm732, %v719
          %737 = vst.msk [vmem:[%s340 + $0x10] sm:$0xf] %vm732, %v720
          %738 = vst.msk [vmem:[%s340 + $0x14] sm:$0xf] %vm732, %v721
          %739 = vst.msk [vmem:[%s340 + $0x18] sm:$0xf] %vm732, %v722
          %740 = vst.msk [vmem:[%s340 + $0x1c] sm:$0xf] %vm732, %v723
          %741 = vst.msk [vmem:[%s340 + $0x20] sm:$0xf] %vm732, %v724
          %742 = vst.msk [vmem:[%s340 + $0x24] sm:$0xf] %vm732, %v725
          %743 = vst.msk [vmem:[%s340 + $0x28] sm:$0xf] %vm732, %v726
          %744 = vst.msk [vmem:[%s340 + $0x2c] sm:$0xf] %vm732, %v727
          %745 = vst.msk [vmem:[%s340 + $0x30] sm:$0xf] %vm732, %v728
          %746 = vst.msk [vmem:[%s340 + $0x34] sm:$0xf] %vm732, %v729
          %747 = vst.msk [vmem:[%s340 + $0x38] sm:$0xf] %vm732, %v730
          %748 = vst.msk [vmem:[%s340 + $0x3c] sm:$0xf] %vm732, %v731
        $region85: #{xxsgcn_forward.5} parent=72 // pred_fallthru
          _
        %s749 = smul.u32 16, %s19
        %p750 = scmp.lt.s32.totalorder %s749, 31
        %s751 = scalar_select %p750, %s749, 31
        %s752 = smul.addr %s751, 4
        %s753 = scalar_lea.vmem %s4, %s752
        // Predicated region
        $region86: #{xxsgcn_forward.5} parent=72 // pred_check
          %p754 = pneg %p141
        $region87: #{xxsgcn_forward.5} parent=72 // pred_check_branch
          %756 = sbr.rel (%p754) target = $region89
        $region88: #{xxsgcn_forward.5} parent=72 // pred_region
          %s757 = smul.u32 16, %s19
        $region89: #{xxsgcn_forward.5} parent=72 // pred_fallthru
          _
      $region73: #{xxsgcn_forward.5} parent=5 // pred_fallthru
        _
      %p758 = scmp.le.s32.totalorder 2, %s10
      // Predicated region
      $region90: #{xxsgcn_forward.5} parent=5 // pred_check
        %p759 = pneg %p758
      $region91: #{xxsgcn_forward.5} parent=5 // pred_check_branch
        %761 = sbr.rel (%p759) target = $region93
      $region92: #{xxsgcn_forward.5} parent=5 // pred_region
        %s762 = ssub.s32 %s10, 2
        // Predicated region
        $region94: #{xxsgcn_forward.5} parent=92 // pred_check
          %p763 = pneg %p147
        $region95: #{xxsgcn_forward.5} parent=92 // pred_check_branch
          %765 = sbr.rel (%p763) target = $region97
        $region96: #{xxsgcn_forward.5} parent=92 // pred_region
          %s766 = smul.u32 16, %s21
          %p767 = scmp.lt.s32.totalorder %s766, 31
          %s768 = scalar_select %p767, %s766, 31
          %s769 = smul.addr %s768, 4
          %s770 = scalar_lea.vmem %s4, %s769
        $region97: #{xxsgcn_forward.5} parent=92 // pred_fallthru
          _
      $region93: #{xxsgcn_forward.5} parent=5 // pred_fallthru
        _
    $region6: #{xxsgcn_forward.5} parent=1 // loop_footer
      %s14 = sadd.s32 1, %s10
    $region7: #{xxsgcn_forward.5} parent=1 // loop_footer_branch
      %9 = sbr.rel target = $region3
    $region8: #{xxsgcn_forward.5} parent=1 // loop_exit
      _

// kernel: xxsgcn_forward.6
$region0: #{xxsgcn_forward.6}
  #allocation0 [shape = 'u32[]', space=smem, size = 0x4, offset = 0x4, fixed_abs, tag = 'smem constant byte address 0x4 - core index']
  #allocation1 [shape = 'u32[72,128]{1,0:T(1,128)}', space=vmem, size = 0x9000, scoped, tag = 'internal scratch']
  #allocation2 [shape = 'f32[128,6]{1,0:T(8,128)}', space=vmem, size = 0x10000, scoped, tag = 'scratch operand']
  %s0 = inlined_call_operand.vmem [shape: bf16[256,256], index: 0, kind: input, shape index: {}]
  %s1 = inlined_call_operand.vmem [shape: bf16[256,6], index: 1, kind: input, shape index: {}]
  %s2 = inlined_call_operand.vmem [shape: bf16[6,12], index: 2, kind: input, shape index: {}]
  %s3 = inlined_call_operand.vmem [shape: f32[1,12], index: 3, kind: input, shape index: {}]
  %s4 = inlined_call_operand.vmem [shape: bf16[256,12], index: 4, kind: output, shape index: {}]
  %s5 = sld [smem:[#allocation0]]
  $region98: #{xxsgcn_forward.6} parent=0
    _
  %s7 = ssub.s32 1, %s5
  %s8 = scalar_select 0, %s7, %s5
  $region1: #{xxsgcn_forward.6} parent=0
    #allocation3 [shape = 'u8[65536]{0}', space=vmem, size = 0x10000, scoped, tag = 'input window, operand 0']
    loop: start=0, step=1, limit=6
    $region2: #{xxsgcn_forward.6} parent=1 // loop_pre_header
      _
    $region3: #{xxsgcn_forward.6} parent=1 // loop_header
      %s10 = sphi 0, %s14
      %p11 = scmp.ge.s32.totalorder %s10, 6
      %s17 = sphi 0, %s29
      %s18 = sphi 0, %s25
      %s19 = sphi 0, %s17
      %s20 = sphi 0, %s18
      %s21 = sphi 0, %s19
      %s22 = sphi 0, %s20
      %s34 = sphi 0, %s36
      %s37 = sphi 0, %s34
      %s38 = sphi 0, %s37
      %s54 = sphi 0, %s38
      %s60 = sphi 0, %s62
      %s63 = sphi 0, %s60
      %s64 = sphi 0, %s63
      %s80 = sphi 0, %s64
      %s84 = sphi 0, %s84
      %s86 = sphi 0, %s84
      %s87 = sphi 0, %s86
      %s101 = sphi 0, %s87
      %s105 = sphi 0, %s105
      %s107 = sphi 0, %s105
      %s108 = sphi 0, %s107
      %s122 = sphi 0, %s108
      %s128 = sphi 0, %s130
      %s131 = sphi 0, %s128
      %s132 = sphi 0, %s131
      %s148 = sphi 0, %s132
    $region4: #{xxsgcn_forward.6} parent=1 // loop_header_branch
      %13 = sbr.rel (%p11) target = $region8
    $region5: #{xxsgcn_forward.6} parent=1 // loop_body
      %s15 = ssub.s32 %s10, 1
      %s16 = ssub.s32 %s10, 2
      %s23 = sadd.s32 1, %s18
      %p24 = scmp.ge.s32.totalorder %s23, 2
      %s25 = scalar_select %p24, 0, %s23
      %s26 = sadd.s32 1, %s17
      %s27 = scalar_select %p24, %s26, %s17
      %p28 = scmp.ge.s32.totalorder %s27, 2
      %s29 = scalar_select %p28, 0, %s27
      %s30 = ssub.s32 %s17, %s29
      %s31 = ssub.s32 %s18, %s25
      %s32 = sor.u32 %s30, %s31
      %p33 = scmp.eq.s32.totalorder %s32, 0
      %s35 = sadd.s32 %s34, 1
      %s36 = scalar_select %p33, %s34, %s35
      %p39 = pneg %p33
      %p40 = scmp.eq.s32.totalorder %s10, 3
      %p41 = por %p39, %p40
      %p42 = scmp.ne.s32.totalorder %s34, %s37
      %p43 = scmp.eq.s32.totalorder %s10, 0
      %p44 = por %p42, %p43
      %p45 = scmp.ne.s32.totalorder %s34, %s37
      %p46 = scmp.eq.s32.totalorder %s15, 3
      %p47 = por %p45, %p46
      %p48 = scmp.ne.s32.totalorder %s37, %s38
      %p49 = scmp.eq.s32.totalorder %s15, 0
      %p50 = por %p48, %p49
      %p51 = scmp.ne.s32.totalorder %s37, %s38
      %p52 = scmp.eq.s32.totalorder %s16, 3
      %p53 = por %p51, %p52
      %p55 = scmp.ne.s32.totalorder %s38, %s54
      %p56 = scmp.eq.s32.totalorder %s16, 0
      %p57 = por %p55, %p56
      %s58 = ssub.s32 %s18, %s25
      %p59 = scmp.eq.s32.totalorder %s58, 0
      %s61 = sadd.s32 %s60, 1
      %s62 = scalar_select %p59, %s60, %s61
      %p65 = pneg %p59
      %p66 = scmp.eq.s32.totalorder %s10, 3
      %p67 = por %p65, %p66
      %p68 = scmp.ne.s32.totalorder %s60, %s63
      %p69 = scmp.eq.s32.totalorder %s10, 0
      %p70 = por %p68, %p69
      %p71 = scmp.ne.s32.totalorder %s60, %s63
      %p72 = scmp.eq.s32.totalorder %s15, 3
      %p73 = por %p71, %p72
      %p74 = scmp.ne.s32.totalorder %s63, %s64
      %p75 = scmp.eq.s32.totalorder %s15, 0
      %p76 = por %p74, %p75
      %p77 = scmp.ne.s32.totalorder %s63, %s64
      %p78 = scmp.eq.s32.totalorder %s16, 3
      %p79 = por %p77, %p78
      %p81 = scmp.ne.s32.totalorder %s64, %s80
      %p82 = scmp.eq.s32.totalorder %s16, 0
      %p83 = por %p81, %p82
      %s85 = sadd.s32 %s84, 1
      %p88 = scmp.eq.s32.totalorder %s10, 3
      %p89 = scmp.ne.s32.totalorder %s84, %s86
      %p90 = scmp.eq.s32.totalorder %s10, 0
      %p91 = por %p89, %p90
      %p92 = scmp.ne.s32.totalorder %s84, %s86
      %p93 = scmp.eq.s32.totalorder %s15, 3
      %p94 = por %p92, %p93
      %p95 = scmp.ne.s32.totalorder %s86, %s87
      %p96 = scmp.eq.s32.totalorder %s15, 0
      %p97 = por %p95, %p96
      %p98 = scmp.ne.s32.totalorder %s86, %s87
      %p99 = scmp.eq.s32.totalorder %s16, 3
      %p100 = por %p98, %p99
      %p102 = scmp.ne.s32.totalorder %s87, %s101
      %p103 = scmp.eq.s32.totalorder %s16, 0
      %p104 = por %p102, %p103
      %s106 = sadd.s32 %s105, 1
      %p109 = scmp.eq.s32.totalorder %s10, 3
      %p110 = scmp.ne.s32.totalorder %s105, %s107
      %p111 = scmp.eq.s32.totalorder %s10, 0
      %p112 = por %p110, %p111
      %p113 = scmp.ne.s32.totalorder %s105, %s107
      %p114 = scmp.eq.s32.totalorder %s15, 3
      %p115 = por %p113, %p114
      %p116 = scmp.ne.s32.totalorder %s107, %s108
      %p117 = scmp.eq.s32.totalorder %s15, 0
      %p118 = por %p116, %p117
      %p119 = scmp.ne.s32.totalorder %s107, %s108
      %p120 = scmp.eq.s32.totalorder %s16, 3
      %p121 = por %p119, %p120
      %p123 = scmp.ne.s32.totalorder %s108, %s122
      %p124 = scmp.eq.s32.totalorder %s16, 0
      %p125 = por %p123, %p124
      %s126 = ssub.s32 %s17, %s29
      %p127 = scmp.eq.s32.totalorder %s126, 0
      %s129 = sadd.s32 %s128, 1
      %s130 = scalar_select %p127, %s128, %s129
      %p133 = pneg %p127
      %p134 = scmp.eq.s32.totalorder %s10, 3
      %p135 = por %p133, %p134
      %p136 = scmp.ne.s32.totalorder %s128, %s131
      %p137 = scmp.eq.s32.totalorder %s10, 0
      %p138 = por %p136, %p137
      %p139 = scmp.ne.s32.totalorder %s128, %s131
      %p140 = scmp.eq.s32.totalorder %s15, 3
      %p141 = por %p139, %p140
      %p142 = scmp.ne.s32.totalorder %s131, %s132
      %p143 = scmp.eq.s32.totalorder %s15, 0
      %p144 = por %p142, %p143
      %p145 = scmp.ne.s32.totalorder %s131, %s132
      %p146 = scmp.eq.s32.totalorder %s16, 3
      %p147 = por %p145, %p146
      %p149 = scmp.ne.s32.totalorder %s132, %s148
      %p150 = scmp.eq.s32.totalorder %s16, 0
      %p151 = por %p149, %p150
      %p152 = scmp.le.s32.totalorder 1, %s10
      %p153 = scmp.lt.s32.totalorder %s10, 5
      %p154 = pnand %p152, %p153
      %p155 = pneg %p154
      // Predicated region
      $region9: #{xxsgcn_forward.6} parent=5 // pred_check
        _
      $region10: #{xxsgcn_forward.6} parent=5 // pred_check_branch
        %157 = sbr.rel (%p154) target = $region12
      $region11: #{xxsgcn_forward.6} parent=5 // pred_region
        %s158 = ssub.s32 %s10, 1
        // Predicated region
        $region13: #{xxsgcn_forward.6} parent=11 // pred_check
          %p159 = pneg %p97
        $region14: #{xxsgcn_forward.6} parent=11 // pred_check_branch
          %161 = sbr.rel (%p159) target = $region16
        $region15: #{xxsgcn_forward.6} parent=11 // pred_region
          _
        $region16: #{xxsgcn_forward.6} parent=11 // pred_fallthru
          _
        // Predicated region
        $region17: #{xxsgcn_forward.6} parent=11 // pred_check
          %p162 = pneg %p118
        $region18: #{xxsgcn_forward.6} parent=11 // pred_check_branch
          %164 = sbr.rel (%p162) target = $region20
        $region19: #{xxsgcn_forward.6} parent=11 // pred_region
          _
        $region20: #{xxsgcn_forward.6} parent=11 // pred_fallthru
          _
      $region12: #{xxsgcn_forward.6} parent=5 // pred_fallthru
        _
      %p165 = scmp.lt.s32.totalorder %s10, 4
      // Predicated region
      $region21: #{xxsgcn_forward.6} parent=5 // pred_check
        %p166 = pneg %p165
      $region22: #{xxsgcn_forward.6} parent=5 // pred_check_branch
        %168 = sbr.rel (%p166) target = $region24
      $region23: #{xxsgcn_forward.6} parent=5 // pred_region
        // Predicated region
        $region25: #{xxsgcn_forward.6} parent=23 // pred_check
          %p169 = pneg %p44
        $region26: #{xxsgcn_forward.6} parent=23 // pred_check_branch
          %171 = sbr.rel (%p169) target = $region28
        $region27: #{xxsgcn_forward.6} parent=23 // pred_region
          %s172 = sand.u32 %s34, 1
          %s173 = sand.u32 %s34, 1
          %s174 = smul.addr %s173, 64
          %s175 = scalar_lea.vmem [#allocation3], %s174
          %s176 = smul.u32 16, %s17
          %s177 = smul.addr %s176, 2
          %s178 = sadd.s32 %s18, %s177
          %s179 = smul.addr %s178, 4
          %s180 = scalar_lea.vmem %s0, %s179
          // Predicated region
          $region29: #{xxsgcn_forward.6} parent=27 // pred_check
            _
          $region30: #{xxsgcn_forward.6} parent=27 // pred_check_branch
            %182 = sbr.rel (0) target = $region32
          $region31: #{xxsgcn_forward.6} parent=27 // pred_region
            // Predicated region
            $region33: #{xxsgcn_forward.6} parent=31 // pred_check
              _
            $region34: #{xxsgcn_forward.6} parent=31 // pred_check_branch
              %184 = sbr.rel target = $region36
            $region35: #{xxsgcn_forward.6} parent=31 // pred_region
              // Predicated region
              $region48: #{xxsgcn_forward.6} parent=35 // pred_check
                _
              $region49: #{xxsgcn_forward.6} parent=35 // pred_check_branch
                %230 = sbr.rel (0) target = $region51
              $region50: #{xxsgcn_forward.6} parent=35 // pred_region
                loop: start=0, step=1, limit=1
                $region52: #{xxsgcn_forward.6} parent=50 // loop_pre_header
                  _
                $region53: #{xxsgcn_forward.6} parent=50 // loop_header
                  %s232 = sphi 0, %s236
                  %p233 = scmp.ge.s32.totalorder %s232, 1
                  %s237 = sphi %s180, %s180
                  %s238 = sphi %s175, %s175
                $region54: #{xxsgcn_forward.6} parent=50 // loop_header_branch
                  %235 = sbr.rel (%p233) target = $region58
                $region55: #{xxsgcn_forward.6} parent=50 // loop_body
                  _
                $region56: #{xxsgcn_forward.6} parent=50 // loop_footer
                  %s236 = sadd.s32 1, %s232
                $region57: #{xxsgcn_forward.6} parent=50 // loop_footer_branch
                  %231 = sbr.rel target = $region53
                $region58: #{xxsgcn_forward.6} parent=50 // loop_exit
                  _
                %s240 = ssub.s32 16, 1
                loop: start=0, step=1, limit=1
                $region59: #{xxsgcn_forward.6} parent=50 // loop_pre_header
                  _
                $region60: #{xxsgcn_forward.6} parent=50 // loop_header
                  %s242 = sphi 0, %s246
                  %p243 = scmp.ge.s32.totalorder %s242, 1
                  %s247 = sphi %s180, %s180
                  %s248 = sphi %s175, %s175
                $region61: #{xxsgcn_forward.6} parent=50 // loop_header_branch
                  %245 = sbr.rel (%p243) target = $region65
                $region62: #{xxsgcn_forward.6} parent=50 // loop_body
                  %v249 = vld [vmem:[%s247] sm:%s240]
                  %250 = vst [vmem:[%s248] sm:%s240] %v249
                  %v251 = vld [vmem:[%s247 + $0x8] sm:%s240]
                  %252 = vst [vmem:[%s248 + $0x4] sm:%s240] %v251
                  %v253 = vld [vmem:[%s247 + $0x10] sm:%s240]
                  %254 = vst [vmem:[%s248 + $0x8] sm:%s240] %v253
                  %v255 = vld [vmem:[%s247 + $0x18] sm:%s240]
                  %256 = vst [vmem:[%s248 + $0xc] sm:%s240] %v255
                  %v257 = vld [vmem:[%s247 + $0x20] sm:%s240]
                  %258 = vst [vmem:[%s248 + $0x10] sm:%s240] %v257
                  %v259 = vld [vmem:[%s247 + $0x28] sm:%s240]
                  %260 = vst [vmem:[%s248 + $0x14] sm:%s240] %v259
                  %v261 = vld [vmem:[%s247 + $0x30] sm:%s240]
                  %262 = vst [vmem:[%s248 + $0x18] sm:%s240] %v261
                  %v263 = vld [vmem:[%s247 + $0x38] sm:%s240]
                  %264 = vst [vmem:[%s248 + $0x1c] sm:%s240] %v263
                  %v265 = vld [vmem:[%s247 + $0x40] sm:%s240]
                  %266 = vst [vmem:[%s248 + $0x20] sm:%s240] %v265
                  %v267 = vld [vmem:[%s247 + $0x48] sm:%s240]
                  %268 = vst [vmem:[%s248 + $0x24] sm:%s240] %v267
                  %v269 = vld [vmem:[%s247 + $0x50] sm:%s240]
                  %270 = vst [vmem:[%s248 + $0x28] sm:%s240] %v269
                  %v271 = vld [vmem:[%s247 + $0x58] sm:%s240]
                  %272 = vst [vmem:[%s248 + $0x2c] sm:%s240] %v271
                  %v273 = vld [vmem:[%s247 + $0x60] sm:%s240]
                  %274 = vst [vmem:[%s248 + $0x30] sm:%s240] %v273
                  %v275 = vld [vmem:[%s247 + $0x68] sm:%s240]
                  %276 = vst [vmem:[%s248 + $0x34] sm:%s240] %v275
                  %v277 = vld [vmem:[%s247 + $0x70] sm:%s240]
                  %278 = vst [vmem:[%s248 + $0x38] sm:%s240] %v277
                  %v279 = vld [vmem:[%s247 + $0x78] sm:%s240]
                  %280 = vst [vmem:[%s248 + $0x3c] sm:%s240] %v279
                $region63: #{xxsgcn_forward.6} parent=50 // loop_footer
                  %s246 = sadd.s32 1, %s242
                $region64: #{xxsgcn_forward.6} parent=50 // loop_footer_branch
                  %241 = sbr.rel target = $region60
                $region65: #{xxsgcn_forward.6} parent=50 // loop_exit
                  _
              $region51: #{xxsgcn_forward.6} parent=35 // pred_fallthru
                _
            $region36: #{xxsgcn_forward.6} parent=31 // pred_fallthru
              _
            // Predicated region
            $region37: #{xxsgcn_forward.6} parent=31 // pred_check
              _
            $region38: #{xxsgcn_forward.6} parent=31 // pred_check_branch
              %186 = sbr.rel (0) target = $region40
            $region39: #{xxsgcn_forward.6} parent=31 // pred_region
              %s188 = ssub.s32 16, 1
              loop: start=0, step=1, limit=1
              $region41: #{xxsgcn_forward.6} parent=39 // loop_pre_header
                _
              $region42: #{xxsgcn_forward.6} parent=39 // loop_header
                %s190 = sphi 0, %s194
                %p191 = scmp.ge.s32.totalorder %s190, 1
                %s195 = sphi %s180, %s180
                %s196 = sphi %s175, %s175
              $region43: #{xxsgcn_forward.6} parent=39 // loop_header_branch
                %193 = sbr.rel (%p191) target = $region47
              $region44: #{xxsgcn_forward.6} parent=39 // loop_body
                %v197 = vld [vmem:[%s195] sm:%s188]
                %198 = vst [vmem:[%s196] sm:%s188] %v197
                %v199 = vld [vmem:[%s195 + $0x8] sm:%s188]
                %200 = vst [vmem:[%s196 + $0x4] sm:%s188] %v199
                %v201 = vld [vmem:[%s195 + $0x10] sm:%s188]
                %202 = vst [vmem:[%s196 + $0x8] sm:%s188] %v201
                %v203 = vld [vmem:[%s195 + $0x18] sm:%s188]
                %204 = vst [vmem:[%s196 + $0xc] sm:%s188] %v203
                %v205 = vld [vmem:[%s195 + $0x20] sm:%s188]
                %206 = vst [vmem:[%s196 + $0x10] sm:%s188] %v205
                %v207 = vld [vmem:[%s195 + $0x28] sm:%s188]
                %208 = vst [vmem:[%s196 + $0x14] sm:%s188] %v207
                %v209 = vld [vmem:[%s195 + $0x30] sm:%s188]
                %210 = vst [vmem:[%s196 + $0x18] sm:%s188] %v209
                %v211 = vld [vmem:[%s195 + $0x38] sm:%s188]
                %212 = vst [vmem:[%s196 + $0x1c] sm:%s188] %v211
                %v213 = vld [vmem:[%s195 + $0x40] sm:%s188]
                %214 = vst [vmem:[%s196 + $0x20] sm:%s188] %v213
                %v215 = vld [vmem:[%s195 + $0x48] sm:%s188]
                %216 = vst [vmem:[%s196 + $0x24] sm:%s188] %v215
                %v217 = vld [vmem:[%s195 + $0x50] sm:%s188]
                %218 = vst [vmem:[%s196 + $0x28] sm:%s188] %v217
                %v219 = vld [vmem:[%s195 + $0x58] sm:%s188]
                %220 = vst [vmem:[%s196 + $0x2c] sm:%s188] %v219
                %v221 = vld [vmem:[%s195 + $0x60] sm:%s188]
                %222 = vst [vmem:[%s196 + $0x30] sm:%s188] %v221
                %v223 = vld [vmem:[%s195 + $0x68] sm:%s188]
                %224 = vst [vmem:[%s196 + $0x34] sm:%s188] %v223
                %v225 = vld [vmem:[%s195 + $0x70] sm:%s188]
                %226 = vst [vmem:[%s196 + $0x38] sm:%s188] %v225
                %v227 = vld [vmem:[%s195 + $0x78] sm:%s188]
                %228 = vst [vmem:[%s196 + $0x3c] sm:%s188] %v227
              $region45: #{xxsgcn_forward.6} parent=39 // loop_footer
                %s194 = sadd.s32 1, %s190
              $region46: #{xxsgcn_forward.6} parent=39 // loop_footer_branch
                %189 = sbr.rel target = $region42
              $region47: #{xxsgcn_forward.6} parent=39 // loop_exit
                _
            $region40: #{xxsgcn_forward.6} parent=31 // pred_fallthru
              _
          $region32: #{xxsgcn_forward.6} parent=27 // pred_fallthru
            _
          %281 = vnop
        $region28: #{xxsgcn_forward.6} parent=23 // pred_fallthru
          _
        // Predicated region
        $region66: #{xxsgcn_forward.6} parent=23 // pred_check
          %p282 = pneg %p70
        $region67: #{xxsgcn_forward.6} parent=23 // pred_check_branch
          %284 = sbr.rel (%p282) target = $region69
        $region68: #{xxsgcn_forward.6} parent=23 // pred_region
          %s285 = smul.u32 16, %s18
          %p286 = scmp.lt.s32.totalorder %s285, 31
          %s287 = scalar_select %p286, %s285, 31
          %s288 = smul.addr %s287, 4
          %s289 = scalar_lea.vmem %s1, %s288
          %s290 = smul.u32 16, %s18
        $region69: #{xxsgcn_forward.6} parent=23 // pred_fallthru
          _
      $region24: #{xxsgcn_forward.6} parent=5 // pred_fallthru
        _
      %p291 = scmp.le.s32.totalorder 1, %s10
      %p292 = scmp.lt.s32.totalorder %s10, 5
      %p293 = pnand %p291, %p292
      %p294 = pneg %p293
      // Predicated region
      $region70: #{xxsgcn_forward.6} parent=5 // pred_check
        _
      $region71: #{xxsgcn_forward.6} parent=5 // pred_check_branch
        %296 = sbr.rel (%p293) target = $region73
      $region72: #{xxsgcn_forward.6} parent=5 // pred_region
        %s297 = ssub.s32 %s10, 1
        %s298 = sand.u32 %s37, 1
        %s299 = sand.u32 %s37, 1
        %s300 = smul.addr %s299, 64
        %s301 = scalar_lea.vmem [#allocation3], %s300
        // Predicated region
        $region74: #{xxsgcn_forward.6} parent=72 // pred_check
          %p302 = pneg %p50
        $region75: #{xxsgcn_forward.6} parent=72 // pred_check_branch
          %304 = sbr.rel (%p302) target = $region77
        $region76: #{xxsgcn_forward.6} parent=72 // pred_region
          _
        $region77: #{xxsgcn_forward.6} parent=72 // pred_fallthru
          _
        %s305 = sand.u32 %s37, 1
        %s306 = sand.u32 %s37, 1
        %s307 = smul.addr %s306, 64
        %s308 = scalar_lea.vmem [#allocation3], %s307
        %p309 = pneg %p50
        %p310 = pneg %p47
        %s311 = smul.u32 16, %s20
        %p312 = scmp.lt.s32.totalorder %s311, 31
        %s313 = scalar_select %p312, %s311, 31
        %s314 = smul.addr %s313, 4
        %s315 = scalar_lea.vmem %s1, %s314
        %p316 = pneg %p76
        %p317 = pneg %p73
        %p318 = pneg %p97
        %p319 = pneg %p94
        %p320 = pneg %p118
        %p321 = pneg %p115
        %p322 = pneg %p144
        %p323 = pneg %p141
        %s324 = smul.u32 16, %s19
        %p325 = scmp.lt.s32.totalorder %s324, 31
        %s326 = scalar_select %p325, %s324, 31
        %s327 = smul.addr %s326, 4
        %s328 = scalar_lea.vmem %s4, %s327
        %s329 = smul.u32 16, %s19
        %s330 = smul.u32 16, %s20
        %p331 = scmp.lt.s32.totalorder %s330, 31
        %s332 = scalar_select %p331, %s330, 31
        %s333 = smul.addr %s332, 4
        %s334 = scalar_lea.vmem %s1, %s333
        %s335 = smul.u32 16, %s20
        %s336 = smul.u32 16, %s19
        %p337 = scmp.lt.s32.totalorder %s336, 31
        %s338 = scalar_select %p337, %s336, 31
        %s339 = smul.addr %s338, 4
        %s340 = scalar_lea.vmem %s4, %s339
        %s341 = smul.u32 16, %s19
        %p343 = scmp.eq.s32.totalorder %s20, 0
        // Predicated region
        $region78: #{xxsgcn_forward.6} parent=72 // pred_check
          %p344 = pneg %p343
        $region79: #{xxsgcn_forward.6} parent=72 // pred_check_branch
          %346 = sbr.rel (%p344) target = $region81
        $region80: #{xxsgcn_forward.6} parent=72 // pred_region
          %vm347 = vcmask 48128
          %348 = vst.msk [vmem:[#allocation2] sm:$0xff] %vm347, 0.0
          %349 = vst.msk [vmem:[#allocation2 + $0x8] sm:$0xff] %vm347, 0.0
          %350 = vst.msk [vmem:[#allocation2 + $0x10] sm:$0xff] %vm347, 0.0
          %351 = vst.msk [vmem:[#allocation2 + $0x18] sm:$0xff] %vm347, 0.0
          %352 = vst.msk [vmem:[#allocation2 + $0x20] sm:$0xff] %vm347, 0.0
          %353 = vst.msk [vmem:[#allocation2 + $0x28] sm:$0xff] %vm347, 0.0
          %354 = vst.msk [vmem:[#allocation2 + $0x30] sm:$0xff] %vm347, 0.0
          %355 = vst.msk [vmem:[#allocation2 + $0x38] sm:$0xff] %vm347, 0.0
          %356 = vst.msk [vmem:[#allocation2 + $0x40] sm:$0xff] %vm347, 0.0
          %357 = vst.msk [vmem:[#allocation2 + $0x48] sm:$0xff] %vm347, 0.0
          %358 = vst.msk [vmem:[#allocation2 + $0x50] sm:$0xff] %vm347, 0.0
          %359 = vst.msk [vmem:[#allocation2 + $0x58] sm:$0xff] %vm347, 0.0
          %360 = vst.msk [vmem:[#allocation2 + $0x60] sm:$0xff] %vm347, 0.0
          %361 = vst.msk [vmem:[#allocation2 + $0x68] sm:$0xff] %vm347, 0.0
          %362 = vst.msk [vmem:[#allocation2 + $0x70] sm:$0xff] %vm347, 0.0
          %363 = vst.msk [vmem:[#allocation2 + $0x78] sm:$0xff] %vm347, 0.0
        $region81: #{xxsgcn_forward.6} parent=72 // pred_fallthru
          _
        %v364 = vld [vmem:[#allocation2] sm:$0xff]
        %v365 = vld [vmem:[#allocation2 + $0x8] sm:$0xff]
        %v366 = vld [vmem:[#allocation2 + $0x10] sm:$0xff]
        %v367 = vld [vmem:[#allocation2 + $0x18] sm:$0xff]
        %v368 = vld [vmem:[#allocation2 + $0x20] sm:$0xff]
        %v369 = vld [vmem:[#allocation2 + $0x28] sm:$0xff]
        %v370 = vld [vmem:[#allocation2 + $0x30] sm:$0xff]
        %v371 = vld [vmem:[#allocation2 + $0x38] sm:$0xff]
        %v372 = vld [vmem:[#allocation2 + $0x40] sm:$0xff]
        %v373 = vld [vmem:[#allocation2 + $0x48] sm:$0xff]
        %v374 = vld [vmem:[#allocation2 + $0x50] sm:$0xff]
        %v375 = vld [vmem:[#allocation2 + $0x58] sm:$0xff]
        %v376 = vld [vmem:[#allocation2 + $0x60] sm:$0xff]
        %v377 = vld [vmem:[#allocation2 + $0x68] sm:$0xff]
        %v378 = vld [vmem:[#allocation2 + $0x70] sm:$0xff]
        %v379 = vld [vmem:[#allocation2 + $0x78] sm:$0xff]
        %v380 = vld [vmem:[%s301] sm:$0xf]
        %v381 = vld [vmem:[%s301 + $0x4] sm:$0xf]
        %v382 = vld [vmem:[%s301 + $0x8] sm:$0xf]
        %v383 = vld [vmem:[%s301 + $0xc] sm:$0xf]
        %v384 = vld [vmem:[%s301 + $0x10] sm:$0xf]
        %v385 = vld [vmem:[%s301 + $0x14] sm:$0xf]
        %v386 = vld [vmem:[%s301 + $0x18] sm:$0xf]
        %v387 = vld [vmem:[%s301 + $0x1c] sm:$0xf]
        %v388 = vld [vmem:[%s301 + $0x20] sm:$0xf]
        %v389 = vld [vmem:[%s301 + $0x24] sm:$0xf]
        %v390 = vld [vmem:[%s301 + $0x28] sm:$0xf]
        %v391 = vld [vmem:[%s301 + $0x2c] sm:$0xf]
        %v392 = vld [vmem:[%s301 + $0x30] sm:$0xf]
        %v393 = vld [vmem:[%s301 + $0x34] sm:$0xf]
        %v394 = vld [vmem:[%s301 + $0x38] sm:$0xf]
        %v395 = vld [vmem:[%s301 + $0x3c] sm:$0xf]
        %v396 = vld [vmem:[%s334] sm:$0xf]
        %v397 = vld [vmem:[%s334 + $0x4] sm:$0xf]
        %v398 = vld [vmem:[%s334 + $0x8] sm:$0xf]
        %v399 = vld [vmem:[%s334 + $0xc] sm:$0xf]
        %v400 = vld [vmem:[%s334 + $0x10] sm:$0xf]
        %v401 = vld [vmem:[%s334 + $0x14] sm:$0xf]
        %v402 = vld [vmem:[%s334 + $0x18] sm:$0xf]
        %v403 = vld [vmem:[%s334 + $0x1c] sm:$0xf]
        %v404 = vld [vmem:[%s334 + $0x20] sm:$0xf]
        %v405 = vld [vmem:[%s334 + $0x24] sm:$0xf]
        %v406 = vld [vmem:[%s334 + $0x28] sm:$0xf]
        %v407 = vld [vmem:[%s334 + $0x2c] sm:$0xf]
        %v408 = vld [vmem:[%s334 + $0x30] sm:$0xf]
        %v409 = vld [vmem:[%s334 + $0x34] sm:$0xf]
        %v410 = vld [vmem:[%s334 + $0x38] sm:$0xf]
        %v411 = vld [vmem:[%s334 + $0x3c] sm:$0xf]
        %v428 = vunpack.c.l.b16 %v380
        %v429 = vunpack.c.l.b16 %v381
        %v430 = vunpack.c.l.b16 %v382
        %v431 = vunpack.c.l.b16 %v383
        %v432 = vunpack.c.l.b16 %v384
        %v433 = vunpack.c.l.b16 %v385
        %v434 = vunpack.c.l.b16 %v386
        %v435 = vunpack.c.l.b16 %v387
        %v436 = vunpack.c.l.b16 %v388
        %v437 = vunpack.c.l.b16 %v389
        %v438 = vunpack.c.l.b16 %v390
        %v439 = vunpack.c.l.b16 %v391
        %v440 = vunpack.c.l.b16 %v392
        %v441 = vunpack.c.l.b16 %v393
        %v442 = vunpack.c.l.b16 %v394
        %v443 = vunpack.c.l.b16 %v395
        %v444 = vpack.c.b16 %v429, %v428
        %v445 = vpack.c.b16 %v431, %v430
        %v446 = vpack.c.b16 %v433, %v432
        %v447 = vpack.c.b16 %v435, %v434
        %v448 = vpack.c.b16 %v437, %v436
        %v449 = vpack.c.b16 %v439, %v438
        %v450 = vpack.c.b16 %v441, %v440
        %v451 = vpack.c.b16 %v443, %v442
        %v476 = vunpack.c.l.b16 %v396
        %v477 = vunpack.c.l.b16 %v397
        %v478 = vunpack.c.l.b16 %v398
        %v479 = vunpack.c.l.b16 %v399
        %v480 = vunpack.c.l.b16 %v400
        %v481 = vunpack.c.l.b16 %v401
        %v482 = vunpack.c.l.b16 %v402
        %v483 = vunpack.c.l.b16 %v403
        %v484 = vunpack.c.l.b16 %v404
        %v485 = vunpack.c.l.b16 %v405
        %v486 = vunpack.c.l.b16 %v406
        %v487 = vunpack.c.l.b16 %v407
        %v488 = vunpack.c.l.b16 %v408
        %v489 = vunpack.c.l.b16 %v409
        %v490 = vunpack.c.l.b16 %v410
        %v491 = vunpack.c.l.b16 %v411
        %v492 = vpack.c.b16 %v477, %v476
        %v493 = vpack.c.b16 %v479, %v478
        %v494 = vpack.c.b16 %v481, %v480
        %v495 = vpack.c.b16 %v483, %v482
        %v496 = vpack.c.b16 %v485, %v484
        %v497 = vpack.c.b16 %v487, %v486
        %v498 = vpack.c.b16 %v489, %v488
        %v499 = vpack.c.b16 %v491, %v490
        %508 = vmatpush.bf16.msra.mxu0 %v499
        %509 = vmatpush.bf16.msra.mxu0 %v498
        %510 = vmatpush.bf16.msra.mxu0 %v497
        %511 = vmatpush.bf16.msra.mxu0 %v496
        %512 = vmatpush.bf16.msra.mxu0 %v495
        %513 = vmatpush.bf16.msra.mxu0 %v494
        %514 = vmatpush.bf16.msra.mxu0 %v493
        %515 = vmatpush.bf16.msra.mxu0 %v492
        %516 = vmatmul.bf16.gmra.mxu0 %v444
        %v517 = vpop.f32.mrf.mxu0
        %v518 = vadd.f32 0.0, %v517
        %v519 = vpop.f32.mrf.mxu0
        %v520 = vadd.f32 0.0, %v519
        %521 = vmatmul.bf16.gmra.mxu0 %v445
        %v522 = vpop.f32.mrf.mxu0
        %v523 = vadd.f32 0.0, %v522
        %v524 = vpop.f32.mrf.mxu0
        %v525 = vadd.f32 0.0, %v524
        %526 = vmatmul.bf16.gmra.mxu0 %v446
        %v527 = vpop.f32.mrf.mxu0
        %v528 = vadd.f32 0.0, %v527
        %v529 = vpop.f32.mrf.mxu0
        %v530 = vadd.f32 0.0, %v529
        %531 = vmatmul.bf16.gmra.mxu0 %v447
        %v532 = vpop.f32.mrf.mxu0
        %v533 = vadd.f32 0.0, %v532
        %v534 = vpop.f32.mrf.mxu0
        %v535 = vadd.f32 0.0, %v534
        %536 = vmatmul.bf16.gmra.mxu0 %v448
        %v537 = vpop.f32.mrf.mxu0
        %v538 = vadd.f32 0.0, %v537
        %v539 = vpop.f32.mrf.mxu0
        %v540 = vadd.f32 0.0, %v539
        %541 = vmatmul.bf16.gmra.mxu0 %v449
        %v542 = vpop.f32.mrf.mxu0
        %v543 = vadd.f32 0.0, %v542
        %v544 = vpop.f32.mrf.mxu0
        %v545 = vadd.f32 0.0, %v544
        %546 = vmatmul.bf16.gmra.mxu0 %v450
        %v547 = vpop.f32.mrf.mxu0
        %v548 = vadd.f32 0.0, %v547
        %v549 = vpop.f32.mrf.mxu0
        %v550 = vadd.f32 0.0, %v549
        %551 = vmatmul.bf16.gmra.mxu0 %v451
        %v552 = vpop.f32.mrf.mxu0
        %v553 = vadd.f32 0.0, %v552
        %v554 = vpop.f32.mrf.mxu0
        %v555 = vadd.f32 0.0, %v554
        %556 = vdwg.mxu0
        %v557 = vadd.f32 %v364, %v518
        %v558 = vadd.f32 %v365, %v520
        %v559 = vadd.f32 %v366, %v523
        %v560 = vadd.f32 %v367, %v525
        %v561 = vadd.f32 %v368, %v528
        %v562 = vadd.f32 %v369, %v530
        %v563 = vadd.f32 %v370, %v533
        %v564 = vadd.f32 %v371, %v535
        %v565 = vadd.f32 %v372, %v538
        %v566 = vadd.f32 %v373, %v540
        %v567 = vadd.f32 %v374, %v543
        %v568 = vadd.f32 %v375, %v545
        %v569 = vadd.f32 %v376, %v548
        %v570 = vadd.f32 %v377, %v550
        %v571 = vadd.f32 %v378, %v553
        %v572 = vadd.f32 %v379, %v555
        %vm573 = vcmask 48128
        %574 = vst.msk [vmem:[#allocation2] sm:$0xff] %vm573, %v557
        %575 = vst.msk [vmem:[#allocation2 + $0x8] sm:$0xff] %vm573, %v558
        %576 = vst.msk [vmem:[#allocation2 + $0x10] sm:$0xff] %vm573, %v559
        %577 = vst.msk [vmem:[#allocation2 + $0x18] sm:$0xff] %vm573, %v560
        %578 = vst.msk [vmem:[#allocation2 + $0x20] sm:$0xff] %vm573, %v561
        %579 = vst.msk [vmem:[#allocation2 + $0x28] sm:$0xff] %vm573, %v562
        %580 = vst.msk [vmem:[#allocation2 + $0x30] sm:$0xff] %vm573, %v563
        %581 = vst.msk [vmem:[#allocation2 + $0x38] sm:$0xff] %vm573, %v564
        %582 = vst.msk [vmem:[#allocation2 + $0x40] sm:$0xff] %vm573, %v565
        %583 = vst.msk [vmem:[#allocation2 + $0x48] sm:$0xff] %vm573, %v566
        %584 = vst.msk [vmem:[#allocation2 + $0x50] sm:$0xff] %vm573, %v567
        %585 = vst.msk [vmem:[#allocation2 + $0x58] sm:$0xff] %vm573, %v568
        %586 = vst.msk [vmem:[#allocation2 + $0x60] sm:$0xff] %vm573, %v569
        %587 = vst.msk [vmem:[#allocation2 + $0x68] sm:$0xff] %vm573, %v570
        %588 = vst.msk [vmem:[#allocation2 + $0x70] sm:$0xff] %vm573, %v571
        %589 = vst.msk [vmem:[#allocation2 + $0x78] sm:$0xff] %vm573, %v572
        %p590 = scmp.eq.s32.totalorder %s20, 1
        // Predicated region
        $region82: #{xxsgcn_forward.6} parent=72 // pred_check
          %p591 = pneg %p590
        $region83: #{xxsgcn_forward.6} parent=72 // pred_check_branch
          %593 = sbr.rel (%p591) target = $region85
        $region84: #{xxsgcn_forward.6} parent=72 // pred_region
          %v594 = vld [vmem:[#allocation2] sm:$0xff]
          %v595 = vld [vmem:[#allocation2 + $0x8] sm:$0xff]
          %v596 = vld [vmem:[#allocation2 + $0x10] sm:$0xff]
          %v597 = vld [vmem:[#allocation2 + $0x18] sm:$0xff]
          %v598 = vld [vmem:[#allocation2 + $0x20] sm:$0xff]
          %v599 = vld [vmem:[#allocation2 + $0x28] sm:$0xff]
          %v600 = vld [vmem:[#allocation2 + $0x30] sm:$0xff]
          %v601 = vld [vmem:[#allocation2 + $0x38] sm:$0xff]
          %v602 = vld [vmem:[#allocation2 + $0x40] sm:$0xff]
          %v603 = vld [vmem:[#allocation2 + $0x48] sm:$0xff]
          %v604 = vld [vmem:[#allocation2 + $0x50] sm:$0xff]
          %v605 = vld [vmem:[#allocation2 + $0x58] sm:$0xff]
          %v606 = vld [vmem:[#allocation2 + $0x60] sm:$0xff]
          %v607 = vld [vmem:[#allocation2 + $0x68] sm:$0xff]
          %v608 = vld [vmem:[#allocation2 + $0x70] sm:$0xff]
          %v609 = vld [vmem:[#allocation2 + $0x78] sm:$0xff]
          %v610 = vpack.c.bf16 %v595, %v594
          %v611 = vpack.c.bf16 %v597, %v596
          %v612 = vpack.c.bf16 %v599, %v598
          %v613 = vpack.c.bf16 %v601, %v600
          %v614 = vpack.c.bf16 %v603, %v602
          %v615 = vpack.c.bf16 %v605, %v604
          %v616 = vpack.c.bf16 %v607, %v606
          %v617 = vpack.c.bf16 %v609, %v608
          %v618 = vld [vmem:[%s2] sm:$0x7]
          %v619 = vld [vmem:[%s3] sm:$0x1]
          %v621 = vperm.slane %v619, 0
          %v624 = vsel %vm573, %v610, 0
          %v627 = vsel %vm573, %v611, 0
          %v630 = vsel %vm573, %v612, 0
          %v633 = vsel %vm573, %v613, 0
          %v636 = vsel %vm573, %v614, 0
          %v639 = vsel %vm573, %v615, 0
          %v642 = vsel %vm573, %v616, 0
          %v645 = vsel %vm573, %v617, 0
          %vm647 = vcmask 1042432
          %v649 = vsel %vm647, %v618, 0
          %651 = vmatpush.bf16.msra.mxu0 0
          %652 = vmatpush.bf16.msra.mxu0 0
          %653 = vmatpush.bf16.msra.mxu0 0
          %654 = vmatpush.bf16.msra.mxu0 0
          %655 = vmatpush.bf16.msra.mxu0 0
          %656 = vmatpush.bf16.msra.mxu0 0
          %657 = vmatpush.bf16.msra.mxu0 0
          %658 = vmatpush.bf16.msra.mxu0 %v649
          %659 = vmatmul.bf16.gmra.mxu0 %v624
          %v660 = vpop.f32.mrf.mxu0
          %v661 = vadd.f32 %v621, %v660
          %v662 = vpop.f32.mrf.mxu0
          %v663 = vadd.f32 %v621, %v662
          %664 = vmatmul.bf16.gmra.mxu0 %v627
          %v665 = vpop.f32.mrf.mxu0
          %v666 = vadd.f32 %v621, %v665
          %v667 = vpop.f32.mrf.mxu0
          %v668 = vadd.f32 %v621, %v667
          %669 = vmatmul.bf16.gmra.mxu0 %v630
          %v670 = vpop.f32.mrf.mxu0
          %v671 = vadd.f32 %v621, %v670
          %v672 = vpop.f32.mrf.mxu0
          %v673 = vadd.f32 %v621, %v672
          %674 = vmatmul.bf16.gmra.mxu0 %v633
          %v675 = vpop.f32.mrf.mxu0
          %v676 = vadd.f32 %v621, %v675
          %v677 = vpop.f32.mrf.mxu0
          %v678 = vadd.f32 %v621, %v677
          %679 = vmatmul.bf16.gmra.mxu0 %v636
          %v680 = vpop.f32.mrf.mxu0
          %v681 = vadd.f32 %v621, %v680
          %v682 = vpop.f32.mrf.mxu0
          %v683 = vadd.f32 %v621, %v682
          %684 = vmatmul.bf16.gmra.mxu0 %v639
          %v685 = vpop.f32.mrf.mxu0
          %v686 = vadd.f32 %v621, %v685
          %v687 = vpop.f32.mrf.mxu0
          %v688 = vadd.f32 %v621, %v687
          %689 = vmatmul.bf16.gmra.mxu0 %v642
          %v690 = vpop.f32.mrf.mxu0
          %v691 = vadd.f32 %v621, %v690
          %v692 = vpop.f32.mrf.mxu0
          %v693 = vadd.f32 %v621, %v692
          %694 = vmatmul.bf16.gmra.mxu0 %v645
          %v695 = vpop.f32.mrf.mxu0
          %v696 = vadd.f32 %v621, %v695
          %v697 = vpop.f32.mrf.mxu0
          %v698 = vadd.f32 %v621, %v697
          %699 = vdwg.mxu0
          %v700 = vmax.f32 %v661, 0.0
          %v701 = vmax.f32 %v663, 0.0
          %v702 = vmax.f32 %v666, 0.0
          %v703 = vmax.f32 %v668, 0.0
          %v704 = vmax.f32 %v671, 0.0
          %v705 = vmax.f32 %v673, 0.0
          %v706 = vmax.f32 %v676, 0.0
          %v707 = vmax.f32 %v678, 0.0
          %v708 = vmax.f32 %v681, 0.0
          %v709 = vmax.f32 %v683, 0.0
          %v710 = vmax.f32 %v686, 0.0
          %v711 = vmax.f32 %v688, 0.0
          %v712 = vmax.f32 %v691, 0.0
          %v713 = vmax.f32 %v693, 0.0
          %v714 = vmax.f32 %v696, 0.0
          %v715 = vmax.f32 %v698, 0.0
          %v716 = vpack.c.bf16 %v700, %v700
          %v717 = vpack.c.bf16 %v701, %v701
          %v718 = vpack.c.bf16 %v702, %v702
          %v719 = vpack.c.bf16 %v703, %v703
          %v720 = vpack.c.bf16 %v704, %v704
          %v721 = vpack.c.bf16 %v705, %v705
          %v722 = vpack.c.bf16 %v706, %v706
          %v723 = vpack.c.bf16 %v707, %v707
          %v724 = vpack.c.bf16 %v708, %v708
          %v725 = vpack.c.bf16 %v709, %v709
          %v726 = vpack.c.bf16 %v710, %v710
          %v727 = vpack.c.bf16 %v711, %v711
          %v728 = vpack.c.bf16 %v712, %v712
          %v729 = vpack.c.bf16 %v713, %v713
          %v730 = vpack.c.bf16 %v714, %v714
          %v731 = vpack.c.bf16 %v715, %v715
          %vm732 = vcmask 93184
          %733 = vst.msk [vmem:[%s340] sm:$0xf] %vm732, %v716
          %734 = vst.msk [vmem:[%s340 + $0x4] sm:$0xf] %vm732, %v717
          %735 = vst.msk [vmem:[%s340 + $0x8] sm:$0xf] %vm732, %v718
          %736 = vst.msk [vmem:[%s340 + $0xc] sm:$0xf] %vm732, %v719
          %737 = vst.msk [vmem:[%s340 + $0x10] sm:$0xf] %vm732, %v720
          %738 = vst.msk [vmem:[%s340 + $0x14] sm:$0xf] %vm732, %v721
          %739 = vst.msk [vmem:[%s340 + $0x18] sm:$0xf] %vm732, %v722
          %740 = vst.msk [vmem:[%s340 + $0x1c] sm:$0xf] %vm732, %v723
          %741 = vst.msk [vmem:[%s340 + $0x20] sm:$0xf] %vm732, %v724
          %742 = vst.msk [vmem:[%s340 + $0x24] sm:$0xf] %vm732, %v725
          %743 = vst.msk [vmem:[%s340 + $0x28] sm:$0xf] %vm732, %v726
          %744 = vst.msk [vmem:[%s340 + $0x2c] sm:$0xf] %vm732, %v727
          %745 = vst.msk [vmem:[%s340 + $0x30] sm:$0xf] %vm732, %v728
          %746 = vst.msk [vmem:[%s340 + $0x34] sm:$0xf] %vm732, %v729
          %747 = vst.msk [vmem:[%s340 + $0x38] sm:$0xf] %vm732, %v730
          %748 = vst.msk [vmem:[%s340 + $0x3c] sm:$0xf] %vm732, %v731
        $region85: #{xxsgcn_forward.6} parent=72 // pred_fallthru
          _
        %s749 = smul.u32 16, %s19
        %p750 = scmp.lt.s32.totalorder %s749, 31
        %s751 = scalar_select %p750, %s749, 31
        %s752 = smul.addr %s751, 4
        %s753 = scalar_lea.vmem %s4, %s752
        // Predicated region
        $region86: #{xxsgcn_forward.6} parent=72 // pred_check
          %p754 = pneg %p141
        $region87: #{xxsgcn_forward.6} parent=72 // pred_check_branch
          %756 = sbr.rel (%p754) target = $region89
        $region88: #{xxsgcn_forward.6} parent=72 // pred_region
          %s757 = smul.u32 16, %s19
        $region89: #{xxsgcn_forward.6} parent=72 // pred_fallthru
          _
      $region73: #{xxsgcn_forward.6} parent=5 // pred_fallthru
        _
      %p758 = scmp.le.s32.totalorder 2, %s10
      // Predicated region
      $region90: #{xxsgcn_forward.6} parent=5 // pred_check
        %p759 = pneg %p758
      $region91: #{xxsgcn_forward.6} parent=5 // pred_check_branch
        %761 = sbr.rel (%p759) target = $region93
      $region92: #{xxsgcn_forward.6} parent=5 // pred_region
        %s762 = ssub.s32 %s10, 2
        // Predicated region
        $region94: #{xxsgcn_forward.6} parent=92 // pred_check
          %p763 = pneg %p147
        $region95: #{xxsgcn_forward.6} parent=92 // pred_check_branch
          %765 = sbr.rel (%p763) target = $region97
        $region96: #{xxsgcn_forward.6} parent=92 // pred_region
          %s766 = smul.u32 16, %s21
          %p767 = scmp.lt.s32.totalorder %s766, 31
          %s768 = scalar_select %p767, %s766, 31
          %s769 = smul.addr %s768, 4
          %s770 = scalar_lea.vmem %s4, %s769
        $region97: #{xxsgcn_forward.6} parent=92 // pred_fallthru
          _
      $region93: #{xxsgcn_forward.6} parent=5 // pred_fallthru
        _
    $region6: #{xxsgcn_forward.6} parent=1 // loop_footer
      %s14 = sadd.s32 1, %s10
    $region7: #{xxsgcn_forward.6} parent=1 // loop_footer_branch
      %9 = sbr.rel target = $region3
    $region8: #{xxsgcn_forward.6} parent=1 // loop_exit
      _

// kernel: xxsgcn_forward.8
$region0: #{xxsgcn_forward.8}
  #allocation0 [shape = 'u32[]', space=smem, size = 0x4, offset = 0x4, fixed_abs, tag = 'smem constant byte address 0x4 - core index']
  #allocation1 [shape = 'u32[72,128]{1,0:T(1,128)}', space=vmem, size = 0x9000, scoped, tag = 'internal scratch']
  #allocation2 [shape = 'f32[128,24]{1,0:T(8,128)}', space=vmem, size = 0x10000, scoped, tag = 'scratch operand']
  %s0 = inlined_call_operand.vmem [shape: bf16[256,256], index: 0, kind: input, shape index: {}]
  %s1 = inlined_call_operand.vmem [shape: bf16[256,24], index: 1, kind: input, shape index: {}]
  %s2 = inlined_call_operand.vmem [shape: bf16[24,48], index: 2, kind: input, shape index: {}]
  %s3 = inlined_call_operand.vmem [shape: f32[1,48], index: 3, kind: input, shape index: {}]
  %s4 = inlined_call_operand.vmem [shape: bf16[256,48], index: 4, kind: output, shape index: {}]
  %s5 = sld [smem:[#allocation0]]
  $region98: #{xxsgcn_forward.8} parent=0
    _
  %s7 = ssub.s32 1, %s5
  %s8 = scalar_select 0, %s7, %s5
  $region1: #{xxsgcn_forward.8} parent=0
    #allocation3 [shape = 'u8[65536]{0}', space=vmem, size = 0x10000, scoped, tag = 'input window, operand 0']
    loop: start=0, step=1, limit=6
    $region2: #{xxsgcn_forward.8} parent=1 // loop_pre_header
      _
    $region3: #{xxsgcn_forward.8} parent=1 // loop_header
      %s10 = sphi 0, %s14
      %p11 = scmp.ge.s32.totalorder %s10, 6
      %s17 = sphi 0, %s29
      %s18 = sphi 0, %s25
      %s19 = sphi 0, %s17
      %s20 = sphi 0, %s18
      %s21 = sphi 0, %s19
      %s22 = sphi 0, %s20
      %s34 = sphi 0, %s36
      %s37 = sphi 0, %s34
      %s38 = sphi 0, %s37
      %s54 = sphi 0, %s38
      %s60 = sphi 0, %s62
      %s63 = sphi 0, %s60
      %s64 = sphi 0, %s63
      %s80 = sphi 0, %s64
      %s84 = sphi 0, %s84
      %s86 = sphi 0, %s84
      %s87 = sphi 0, %s86
      %s101 = sphi 0, %s87
      %s105 = sphi 0, %s105
      %s107 = sphi 0, %s105
      %s108 = sphi 0, %s107
      %s122 = sphi 0, %s108
      %s128 = sphi 0, %s130
      %s131 = sphi 0, %s128
      %s132 = sphi 0, %s131
      %s148 = sphi 0, %s132
    $region4: #{xxsgcn_forward.8} parent=1 // loop_header_branch
      %13 = sbr.rel (%p11) target = $region8
    $region5: #{xxsgcn_forward.8} parent=1 // loop_body
      %s15 = ssub.s32 %s10, 1
      %s16 = ssub.s32 %s10, 2
      %s23 = sadd.s32 1, %s18
      %p24 = scmp.ge.s32.totalorder %s23, 2
      %s25 = scalar_select %p24, 0, %s23
      %s26 = sadd.s32 1, %s17
      %s27 = scalar_select %p24, %s26, %s17
      %p28 = scmp.ge.s32.totalorder %s27, 2
      %s29 = scalar_select %p28, 0, %s27
      %s30 = ssub.s32 %s17, %s29
      %s31 = ssub.s32 %s18, %s25
      %s32 = sor.u32 %s30, %s31
      %p33 = scmp.eq.s32.totalorder %s32, 0
      %s35 = sadd.s32 %s34, 1
      %s36 = scalar_select %p33, %s34, %s35
      %p39 = pneg %p33
      %p40 = scmp.eq.s32.totalorder %s10, 3
      %p41 = por %p39, %p40
      %p42 = scmp.ne.s32.totalorder %s34, %s37
      %p43 = scmp.eq.s32.totalorder %s10, 0
      %p44 = por %p42, %p43
      %p45 = scmp.ne.s32.totalorder %s34, %s37
      %p46 = scmp.eq.s32.totalorder %s15, 3
      %p47 = por %p45, %p46
      %p48 = scmp.ne.s32.totalorder %s37, %s38
      %p49 = scmp.eq.s32.totalorder %s15, 0
      %p50 = por %p48, %p49
      %p51 = scmp.ne.s32.totalorder %s37, %s38
      %p52 = scmp.eq.s32.totalorder %s16, 3
      %p53 = por %p51, %p52
      %p55 = scmp.ne.s32.totalorder %s38, %s54
      %p56 = scmp.eq.s32.totalorder %s16, 0
      %p57 = por %p55, %p56
      %s58 = ssub.s32 %s18, %s25
      %p59 = scmp.eq.s32.totalorder %s58, 0
      %s61 = sadd.s32 %s60, 1
      %s62 = scalar_select %p59, %s60, %s61
      %p65 = pneg %p59
      %p66 = scmp.eq.s32.totalorder %s10, 3
      %p67 = por %p65, %p66
      %p68 = scmp.ne.s32.totalorder %s60, %s63
      %p69 = scmp.eq.s32.totalorder %s10, 0
      %p70 = por %p68, %p69
      %p71 = scmp.ne.s32.totalorder %s60, %s63
      %p72 = scmp.eq.s32.totalorder %s15, 3
      %p73 = por %p71, %p72
      %p74 = scmp.ne.s32.totalorder %s63, %s64
      %p75 = scmp.eq.s32.totalorder %s15, 0
      %p76 = por %p74, %p75
      %p77 = scmp.ne.s32.totalorder %s63, %s64
      %p78 = scmp.eq.s32.totalorder %s16, 3
      %p79 = por %p77, %p78
      %p81 = scmp.ne.s32.totalorder %s64, %s80
      %p82 = scmp.eq.s32.totalorder %s16, 0
      %p83 = por %p81, %p82
      %s85 = sadd.s32 %s84, 1
      %p88 = scmp.eq.s32.totalorder %s10, 3
      %p89 = scmp.ne.s32.totalorder %s84, %s86
      %p90 = scmp.eq.s32.totalorder %s10, 0
      %p91 = por %p89, %p90
      %p92 = scmp.ne.s32.totalorder %s84, %s86
      %p93 = scmp.eq.s32.totalorder %s15, 3
      %p94 = por %p92, %p93
      %p95 = scmp.ne.s32.totalorder %s86, %s87
      %p96 = scmp.eq.s32.totalorder %s15, 0
      %p97 = por %p95, %p96
      %p98 = scmp.ne.s32.totalorder %s86, %s87
      %p99 = scmp.eq.s32.totalorder %s16, 3
      %p100 = por %p98, %p99
      %p102 = scmp.ne.s32.totalorder %s87, %s101
      %p103 = scmp.eq.s32.totalorder %s16, 0
      %p104 = por %p102, %p103
      %s106 = sadd.s32 %s105, 1
      %p109 = scmp.eq.s32.totalorder %s10, 3
      %p110 = scmp.ne.s32.totalorder %s105, %s107
      %p111 = scmp.eq.s32.totalorder %s10, 0
      %p112 = por %p110, %p111
      %p113 = scmp.ne.s32.totalorder %s105, %s107
      %p114 = scmp.eq.s32.totalorder %s15, 3
      %p115 = por %p113, %p114
      %p116 = scmp.ne.s32.totalorder %s107, %s108
      %p117 = scmp.eq.s32.totalorder %s15, 0
      %p118 = por %p116, %p117
      %p119 = scmp.ne.s32.totalorder %s107, %s108
      %p120 = scmp.eq.s32.totalorder %s16, 3
      %p121 = por %p119, %p120
      %p123 = scmp.ne.s32.totalorder %s108, %s122
      %p124 = scmp.eq.s32.totalorder %s16, 0
      %p125 = por %p123, %p124
      %s126 = ssub.s32 %s17, %s29
      %p127 = scmp.eq.s32.totalorder %s126, 0
      %s129 = sadd.s32 %s128, 1
      %s130 = scalar_select %p127, %s128, %s129
      %p133 = pneg %p127
      %p134 = scmp.eq.s32.totalorder %s10, 3
      %p135 = por %p133, %p134
      %p136 = scmp.ne.s32.totalorder %s128, %s131
      %p137 = scmp.eq.s32.totalorder %s10, 0
      %p138 = por %p136, %p137
      %p139 = scmp.ne.s32.totalorder %s128, %s131
      %p140 = scmp.eq.s32.totalorder %s15, 3
      %p141 = por %p139, %p140
      %p142 = scmp.ne.s32.totalorder %s131, %s132
      %p143 = scmp.eq.s32.totalorder %s15, 0
      %p144 = por %p142, %p143
      %p145 = scmp.ne.s32.totalorder %s131, %s132
      %p146 = scmp.eq.s32.totalorder %s16, 3
      %p147 = por %p145, %p146
      %p149 = scmp.ne.s32.totalorder %s132, %s148
      %p150 = scmp.eq.s32.totalorder %s16, 0
      %p151 = por %p149, %p150
      %p152 = scmp.le.s32.totalorder 1, %s10
      %p153 = scmp.lt.s32.totalorder %s10, 5
      %p154 = pnand %p152, %p153
      %p155 = pneg %p154
      // Predicated region
      $region9: #{xxsgcn_forward.8} parent=5 // pred_check
        _
      $region10: #{xxsgcn_forward.8} parent=5 // pred_check_branch
        %157 = sbr.rel (%p154) target = $region12
      $region11: #{xxsgcn_forward.8} parent=5 // pred_region
        %s158 = ssub.s32 %s10, 1
        // Predicated region
        $region13: #{xxsgcn_forward.8} parent=11 // pred_check
          %p159 = pneg %p97
        $region14: #{xxsgcn_forward.8} parent=11 // pred_check_branch
          %161 = sbr.rel (%p159) target = $region16
        $region15: #{xxsgcn_forward.8} parent=11 // pred_region
          _
        $region16: #{xxsgcn_forward.8} parent=11 // pred_fallthru
          _
        // Predicated region
        $region17: #{xxsgcn_forward.8} parent=11 // pred_check
          %p162 = pneg %p118
        $region18: #{xxsgcn_forward.8} parent=11 // pred_check_branch
          %164 = sbr.rel (%p162) target = $region20
        $region19: #{xxsgcn_forward.8} parent=11 // pred_region
          _
        $region20: #{xxsgcn_forward.8} parent=11 // pred_fallthru
          _
      $region12: #{xxsgcn_forward.8} parent=5 // pred_fallthru
        _
      %p165 = scmp.lt.s32.totalorder %s10, 4
      // Predicated region
      $region21: #{xxsgcn_forward.8} parent=5 // pred_check
        %p166 = pneg %p165
      $region22: #{xxsgcn_forward.8} parent=5 // pred_check_branch
        %168 = sbr.rel (%p166) target = $region24
      $region23: #{xxsgcn_forward.8} parent=5 // pred_region
        // Predicated region
        $region25: #{xxsgcn_forward.8} parent=23 // pred_check
          %p169 = pneg %p44
        $region26: #{xxsgcn_forward.8} parent=23 // pred_check_branch
          %171 = sbr.rel (%p169) target = $region28
        $region27: #{xxsgcn_forward.8} parent=23 // pred_region
          %s172 = sand.u32 %s34, 1
          %s173 = sand.u32 %s34, 1
          %s174 = smul.addr %s173, 64
          %s175 = scalar_lea.vmem [#allocation3], %s174
          %s176 = smul.u32 16, %s17
          %s177 = smul.addr %s176, 2
          %s178 = sadd.s32 %s18, %s177
          %s179 = smul.addr %s178, 4
          %s180 = scalar_lea.vmem %s0, %s179
          // Predicated region
          $region29: #{xxsgcn_forward.8} parent=27 // pred_check
            _
          $region30: #{xxsgcn_forward.8} parent=27 // pred_check_branch
            %182 = sbr.rel (0) target = $region32
          $region31: #{xxsgcn_forward.8} parent=27 // pred_region
            // Predicated region
            $region33: #{xxsgcn_forward.8} parent=31 // pred_check
              _
            $region34: #{xxsgcn_forward.8} parent=31 // pred_check_branch
              %184 = sbr.rel target = $region36
            $region35: #{xxsgcn_forward.8} parent=31 // pred_region
              // Predicated region
              $region48: #{xxsgcn_forward.8} parent=35 // pred_check
                _
              $region49: #{xxsgcn_forward.8} parent=35 // pred_check_branch
                %230 = sbr.rel (0) target = $region51
              $region50: #{xxsgcn_forward.8} parent=35 // pred_region
                loop: start=0, step=1, limit=1
                $region52: #{xxsgcn_forward.8} parent=50 // loop_pre_header
                  _
                $region53: #{xxsgcn_forward.8} parent=50 // loop_header
                  %s232 = sphi 0, %s236
                  %p233 = scmp.ge.s32.totalorder %s232, 1
                  %s237 = sphi %s180, %s180
                  %s238 = sphi %s175, %s175
                $region54: #{xxsgcn_forward.8} parent=50 // loop_header_branch
                  %235 = sbr.rel (%p233) target = $region58
                $region55: #{xxsgcn_forward.8} parent=50 // loop_body
                  _
                $region56: #{xxsgcn_forward.8} parent=50 // loop_footer
                  %s236 = sadd.s32 1, %s232
                $region57: #{xxsgcn_forward.8} parent=50 // loop_footer_branch
                  %231 = sbr.rel target = $region53
                $region58: #{xxsgcn_forward.8} parent=50 // loop_exit
                  _
                %s240 = ssub.s32 16, 1
                loop: start=0, step=1, limit=1
                $region59: #{xxsgcn_forward.8} parent=50 // loop_pre_header
                  _
                $region60: #{xxsgcn_forward.8} parent=50 // loop_header
                  %s242 = sphi 0, %s246
                  %p243 = scmp.ge.s32.totalorder %s242, 1
                  %s247 = sphi %s180, %s180
                  %s248 = sphi %s175, %s175
                $region61: #{xxsgcn_forward.8} parent=50 // loop_header_branch
                  %245 = sbr.rel (%p243) target = $region65
                $region62: #{xxsgcn_forward.8} parent=50 // loop_body
                  %v249 = vld [vmem:[%s247] sm:%s240]
                  %250 = vst [vmem:[%s248] sm:%s240] %v249
                  %v251 = vld [vmem:[%s247 + $0x8] sm:%s240]
                  %252 = vst [vmem:[%s248 + $0x4] sm:%s240] %v251
                  %v253 = vld [vmem:[%s247 + $0x10] sm:%s240]
                  %254 = vst [vmem:[%s248 + $0x8] sm:%s240] %v253
                  %v255 = vld [vmem:[%s247 + $0x18] sm:%s240]
                  %256 = vst [vmem:[%s248 + $0xc] sm:%s240] %v255
                  %v257 = vld [vmem:[%s247 + $0x20] sm:%s240]
                  %258 = vst [vmem:[%s248 + $0x10] sm:%s240] %v257
                  %v259 = vld [vmem:[%s247 + $0x28] sm:%s240]
                  %260 = vst [vmem:[%s248 + $0x14] sm:%s240] %v259
                  %v261 = vld [vmem:[%s247 + $0x30] sm:%s240]
                  %262 = vst [vmem:[%s248 + $0x18] sm:%s240] %v261
                  %v263 = vld [vmem:[%s247 + $0x38] sm:%s240]
                  %264 = vst [vmem:[%s248 + $0x1c] sm:%s240] %v263
                  %v265 = vld [vmem:[%s247 + $0x40] sm:%s240]
                  %266 = vst [vmem:[%s248 + $0x20] sm:%s240] %v265
                  %v267 = vld [vmem:[%s247 + $0x48] sm:%s240]
                  %268 = vst [vmem:[%s248 + $0x24] sm:%s240] %v267
                  %v269 = vld [vmem:[%s247 + $0x50] sm:%s240]
                  %270 = vst [vmem:[%s248 + $0x28] sm:%s240] %v269
                  %v271 = vld [vmem:[%s247 + $0x58] sm:%s240]
                  %272 = vst [vmem:[%s248 + $0x2c] sm:%s240] %v271
                  %v273 = vld [vmem:[%s247 + $0x60] sm:%s240]
                  %274 = vst [vmem:[%s248 + $0x30] sm:%s240] %v273
                  %v275 = vld [vmem:[%s247 + $0x68] sm:%s240]
                  %276 = vst [vmem:[%s248 + $0x34] sm:%s240] %v275
                  %v277 = vld [vmem:[%s247 + $0x70] sm:%s240]
                  %278 = vst [vmem:[%s248 + $0x38] sm:%s240] %v277
                  %v279 = vld [vmem:[%s247 + $0x78] sm:%s240]
                  %280 = vst [vmem:[%s248 + $0x3c] sm:%s240] %v279
                $region63: #{xxsgcn_forward.8} parent=50 // loop_footer
                  %s246 = sadd.s32 1, %s242
                $region64: #{xxsgcn_forward.8} parent=50 // loop_footer_branch
                  %241 = sbr.rel target = $region60
                $region65: #{xxsgcn_forward.8} parent=50 // loop_exit
                  _
              $region51: #{xxsgcn_forward.8} parent=35 // pred_fallthru
                _
            $region36: #{xxsgcn_forward.8} parent=31 // pred_fallthru
              _
            // Predicated region
            $region37: #{xxsgcn_forward.8} parent=31 // pred_check
              _
            $region38: #{xxsgcn_forward.8} parent=31 // pred_check_branch
              %186 = sbr.rel (0) target = $region40
            $region39: #{xxsgcn_forward.8} parent=31 // pred_region
              %s188 = ssub.s32 16, 1
              loop: start=0, step=1, limit=1
              $region41: #{xxsgcn_forward.8} parent=39 // loop_pre_header
                _
              $region42: #{xxsgcn_forward.8} parent=39 // loop_header
                %s190 = sphi 0, %s194
                %p191 = scmp.ge.s32.totalorder %s190, 1
                %s195 = sphi %s180, %s180
                %s196 = sphi %s175, %s175
              $region43: #{xxsgcn_forward.8} parent=39 // loop_header_branch
                %193 = sbr.rel (%p191) target = $region47
              $region44: #{xxsgcn_forward.8} parent=39 // loop_body
                %v197 = vld [vmem:[%s195] sm:%s188]
                %198 = vst [vmem:[%s196] sm:%s188] %v197
                %v199 = vld [vmem:[%s195 + $0x8] sm:%s188]
                %200 = vst [vmem:[%s196 + $0x4] sm:%s188] %v199
                %v201 = vld [vmem:[%s195 + $0x10] sm:%s188]
                %202 = vst [vmem:[%s196 + $0x8] sm:%s188] %v201
                %v203 = vld [vmem:[%s195 + $0x18] sm:%s188]
                %204 = vst [vmem:[%s196 + $0xc] sm:%s188] %v203
                %v205 = vld [vmem:[%s195 + $0x20] sm:%s188]
                %206 = vst [vmem:[%s196 + $0x10] sm:%s188] %v205
                %v207 = vld [vmem:[%s195 + $0x28] sm:%s188]
                %208 = vst [vmem:[%s196 + $0x14] sm:%s188] %v207
                %v209 = vld [vmem:[%s195 + $0x30] sm:%s188]
                %210 = vst [vmem:[%s196 + $0x18] sm:%s188] %v209
                %v211 = vld [vmem:[%s195 + $0x38] sm:%s188]
                %212 = vst [vmem:[%s196 + $0x1c] sm:%s188] %v211
                %v213 = vld [vmem:[%s195 + $0x40] sm:%s188]
                %214 = vst [vmem:[%s196 + $0x20] sm:%s188] %v213
                %v215 = vld [vmem:[%s195 + $0x48] sm:%s188]
                %216 = vst [vmem:[%s196 + $0x24] sm:%s188] %v215
                %v217 = vld [vmem:[%s195 + $0x50] sm:%s188]
                %218 = vst [vmem:[%s196 + $0x28] sm:%s188] %v217
                %v219 = vld [vmem:[%s195 + $0x58] sm:%s188]
                %220 = vst [vmem:[%s196 + $0x2c] sm:%s188] %v219
                %v221 = vld [vmem:[%s195 + $0x60] sm:%s188]
                %222 = vst [vmem:[%s196 + $0x30] sm:%s188] %v221
                %v223 = vld [vmem:[%s195 + $0x68] sm:%s188]
                %224 = vst [vmem:[%s196 + $0x34] sm:%s188] %v223
                %v225 = vld [vmem:[%s195 + $0x70] sm:%s188]
                %226 = vst [vmem:[%s196 + $0x38] sm:%s188] %v225
                %v227 = vld [vmem:[%s195 + $0x78] sm:%s188]
                %228 = vst [vmem:[%s196 + $0x3c] sm:%s188] %v227
              $region45: #{xxsgcn_forward.8} parent=39 // loop_footer
                %s194 = sadd.s32 1, %s190
              $region46: #{xxsgcn_forward.8} parent=39 // loop_footer_branch
                %189 = sbr.rel target = $region42
              $region47: #{xxsgcn_forward.8} parent=39 // loop_exit
                _
            $region40: #{xxsgcn_forward.8} parent=31 // pred_fallthru
              _
          $region32: #{xxsgcn_forward.8} parent=27 // pred_fallthru
            _
          %281 = vnop
        $region28: #{xxsgcn_forward.8} parent=23 // pred_fallthru
          _
        // Predicated region
        $region66: #{xxsgcn_forward.8} parent=23 // pred_check
          %p282 = pneg %p70
        $region67: #{xxsgcn_forward.8} parent=23 // pred_check_branch
          %284 = sbr.rel (%p282) target = $region69
        $region68: #{xxsgcn_forward.8} parent=23 // pred_region
          %s285 = smul.u32 16, %s18
          %p286 = scmp.lt.s32.totalorder %s285, 31
          %s287 = scalar_select %p286, %s285, 31
          %s288 = smul.addr %s287, 4
          %s289 = scalar_lea.vmem %s1, %s288
          %s290 = smul.u32 16, %s18
        $region69: #{xxsgcn_forward.8} parent=23 // pred_fallthru
          _
      $region24: #{xxsgcn_forward.8} parent=5 // pred_fallthru
        _
      %p291 = scmp.le.s32.totalorder 1, %s10
      %p292 = scmp.lt.s32.totalorder %s10, 5
      %p293 = pnand %p291, %p292
      %p294 = pneg %p293
      // Predicated region
      $region70: #{xxsgcn_forward.8} parent=5 // pred_check
        _
      $region71: #{xxsgcn_forward.8} parent=5 // pred_check_branch
        %296 = sbr.rel (%p293) target = $region73
      $region72: #{xxsgcn_forward.8} parent=5 // pred_region
        %s297 = ssub.s32 %s10, 1
        %s298 = sand.u32 %s37, 1
        %s299 = sand.u32 %s37, 1
        %s300 = smul.addr %s299, 64
        %s301 = scalar_lea.vmem [#allocation3], %s300
        // Predicated region
        $region74: #{xxsgcn_forward.8} parent=72 // pred_check
          %p302 = pneg %p50
        $region75: #{xxsgcn_forward.8} parent=72 // pred_check_branch
          %304 = sbr.rel (%p302) target = $region77
        $region76: #{xxsgcn_forward.8} parent=72 // pred_region
          _
        $region77: #{xxsgcn_forward.8} parent=72 // pred_fallthru
          _
        %s305 = sand.u32 %s37, 1
        %s306 = sand.u32 %s37, 1
        %s307 = smul.addr %s306, 64
        %s308 = scalar_lea.vmem [#allocation3], %s307
        %p309 = pneg %p50
        %p310 = pneg %p47
        %s311 = smul.u32 16, %s20
        %p312 = scmp.lt.s32.totalorder %s311, 31
        %s313 = scalar_select %p312, %s311, 31
        %s314 = smul.addr %s313, 4
        %s315 = scalar_lea.vmem %s1, %s314
        %p316 = pneg %p76
        %p317 = pneg %p73
        %p318 = pneg %p97
        %p319 = pneg %p94
        %p320 = pneg %p118
        %p321 = pneg %p115
        %p322 = pneg %p144
        %p323 = pneg %p141
        %s324 = smul.u32 16, %s19
        %p325 = scmp.lt.s32.totalorder %s324, 31
        %s326 = scalar_select %p325, %s324, 31
        %s327 = smul.addr %s326, 4
        %s328 = scalar_lea.vmem %s4, %s327
        %s329 = smul.u32 16, %s19
        %s330 = smul.u32 16, %s20
        %p331 = scmp.lt.s32.totalorder %s330, 31
        %s332 = scalar_select %p331, %s330, 31
        %s333 = smul.addr %s332, 4
        %s334 = scalar_lea.vmem %s1, %s333
        %s335 = smul.u32 16, %s20
        %s336 = smul.u32 16, %s19
        %p337 = scmp.lt.s32.totalorder %s336, 31
        %s338 = scalar_select %p337, %s336, 31
        %s339 = smul.addr %s338, 4
        %s340 = scalar_lea.vmem %s4, %s339
        %s341 = smul.u32 16, %s19
        %p343 = scmp.eq.s32.totalorder %s20, 0
        // Predicated region
        $region78: #{xxsgcn_forward.8} parent=72 // pred_check
          %p344 = pneg %p343
        $region79: #{xxsgcn_forward.8} parent=72 // pred_check_branch
          %346 = sbr.rel (%p344) target = $region81
        $region80: #{xxsgcn_forward.8} parent=72 // pred_region
          %vm347 = vcmask 195584
          %348 = vst.msk [vmem:[#allocation2] sm:$0xff] %vm347, 0.0
          %349 = vst.msk [vmem:[#allocation2 + $0x8] sm:$0xff] %vm347, 0.0
          %350 = vst.msk [vmem:[#allocation2 + $0x10] sm:$0xff] %vm347, 0.0
          %351 = vst.msk [vmem:[#allocation2 + $0x18] sm:$0xff] %vm347, 0.0
          %352 = vst.msk [vmem:[#allocation2 + $0x20] sm:$0xff] %vm347, 0.0
          %353 = vst.msk [vmem:[#allocation2 + $0x28] sm:$0xff] %vm347, 0.0
          %354 = vst.msk [vmem:[#allocation2 + $0x30] sm:$0xff] %vm347, 0.0
          %355 = vst.msk [vmem:[#allocation2 + $0x38] sm:$0xff] %vm347, 0.0
          %356 = vst.msk [vmem:[#allocation2 + $0x40] sm:$0xff] %vm347, 0.0
          %357 = vst.msk [vmem:[#allocation2 + $0x48] sm:$0xff] %vm347, 0.0
          %358 = vst.msk [vmem:[#allocation2 + $0x50] sm:$0xff] %vm347, 0.0
          %359 = vst.msk [vmem:[#allocation2 + $0x58] sm:$0xff] %vm347, 0.0
          %360 = vst.msk [vmem:[#allocation2 + $0x60] sm:$0xff] %vm347, 0.0
          %361 = vst.msk [vmem:[#allocation2 + $0x68] sm:$0xff] %vm347, 0.0
          %362 = vst.msk [vmem:[#allocation2 + $0x70] sm:$0xff] %vm347, 0.0
          %363 = vst.msk [vmem:[#allocation2 + $0x78] sm:$0xff] %vm347, 0.0
        $region81: #{xxsgcn_forward.8} parent=72 // pred_fallthru
          _
        %v364 = vld [vmem:[#allocation2] sm:$0xff]
        %v365 = vld [vmem:[#allocation2 + $0x8] sm:$0xff]
        %v366 = vld [vmem:[#allocation2 + $0x10] sm:$0xff]
        %v367 = vld [vmem:[#allocation2 + $0x18] sm:$0xff]
        %v368 = vld [vmem:[#allocation2 + $0x20] sm:$0xff]
        %v369 = vld [vmem:[#allocation2 + $0x28] sm:$0xff]
        %v370 = vld [vmem:[#allocation2 + $0x30] sm:$0xff]
        %v371 = vld [vmem:[#allocation2 + $0x38] sm:$0xff]
        %v372 = vld [vmem:[#allocation2 + $0x40] sm:$0xff]
        %v373 = vld [vmem:[#allocation2 + $0x48] sm:$0xff]
        %v374 = vld [vmem:[#allocation2 + $0x50] sm:$0xff]
        %v375 = vld [vmem:[#allocation2 + $0x58] sm:$0xff]
        %v376 = vld [vmem:[#allocation2 + $0x60] sm:$0xff]
        %v377 = vld [vmem:[#allocation2 + $0x68] sm:$0xff]
        %v378 = vld [vmem:[#allocation2 + $0x70] sm:$0xff]
        %v379 = vld [vmem:[#allocation2 + $0x78] sm:$0xff]
        %v380 = vld [vmem:[%s301] sm:$0xf]
        %v381 = vld [vmem:[%s301 + $0x4] sm:$0xf]
        %v382 = vld [vmem:[%s301 + $0x8] sm:$0xf]
        %v383 = vld [vmem:[%s301 + $0xc] sm:$0xf]
        %v384 = vld [vmem:[%s301 + $0x10] sm:$0xf]
        %v385 = vld [vmem:[%s301 + $0x14] sm:$0xf]
        %v386 = vld [vmem:[%s301 + $0x18] sm:$0xf]
        %v387 = vld [vmem:[%s301 + $0x1c] sm:$0xf]
        %v388 = vld [vmem:[%s301 + $0x20] sm:$0xf]
        %v389 = vld [vmem:[%s301 + $0x24] sm:$0xf]
        %v390 = vld [vmem:[%s301 + $0x28] sm:$0xf]
        %v391 = vld [vmem:[%s301 + $0x2c] sm:$0xf]
        %v392 = vld [vmem:[%s301 + $0x30] sm:$0xf]
        %v393 = vld [vmem:[%s301 + $0x34] sm:$0xf]
        %v394 = vld [vmem:[%s301 + $0x38] sm:$0xf]
        %v395 = vld [vmem:[%s301 + $0x3c] sm:$0xf]
        %v396 = vld [vmem:[%s334] sm:$0xf]
        %v397 = vld [vmem:[%s334 + $0x4] sm:$0xf]
        %v398 = vld [vmem:[%s334 + $0x8] sm:$0xf]
        %v399 = vld [vmem:[%s334 + $0xc] sm:$0xf]
        %v400 = vld [vmem:[%s334 + $0x10] sm:$0xf]
        %v401 = vld [vmem:[%s334 + $0x14] sm:$0xf]
        %v402 = vld [vmem:[%s334 + $0x18] sm:$0xf]
        %v403 = vld [vmem:[%s334 + $0x1c] sm:$0xf]
        %v404 = vld [vmem:[%s334 + $0x20] sm:$0xf]
        %v405 = vld [vmem:[%s334 + $0x24] sm:$0xf]
        %v406 = vld [vmem:[%s334 + $0x28] sm:$0xf]
        %v407 = vld [vmem:[%s334 + $0x2c] sm:$0xf]
        %v408 = vld [vmem:[%s334 + $0x30] sm:$0xf]
        %v409 = vld [vmem:[%s334 + $0x34] sm:$0xf]
        %v410 = vld [vmem:[%s334 + $0x38] sm:$0xf]
        %v411 = vld [vmem:[%s334 + $0x3c] sm:$0xf]
        %v428 = vunpack.c.l.b16 %v380
        %v429 = vunpack.c.l.b16 %v381
        %v430 = vunpack.c.l.b16 %v382
        %v431 = vunpack.c.l.b16 %v383
        %v432 = vunpack.c.l.b16 %v384
        %v433 = vunpack.c.l.b16 %v385
        %v434 = vunpack.c.l.b16 %v386
        %v435 = vunpack.c.l.b16 %v387
        %v436 = vunpack.c.l.b16 %v388
        %v437 = vunpack.c.l.b16 %v389
        %v438 = vunpack.c.l.b16 %v390
        %v439 = vunpack.c.l.b16 %v391
        %v440 = vunpack.c.l.b16 %v392
        %v441 = vunpack.c.l.b16 %v393
        %v442 = vunpack.c.l.b16 %v394
        %v443 = vunpack.c.l.b16 %v395
        %v444 = vpack.c.b16 %v429, %v428
        %v445 = vpack.c.b16 %v431, %v430
        %v446 = vpack.c.b16 %v433, %v432
        %v447 = vpack.c.b16 %v435, %v434
        %v448 = vpack.c.b16 %v437, %v436
        %v449 = vpack.c.b16 %v439, %v438
        %v450 = vpack.c.b16 %v441, %v440
        %v451 = vpack.c.b16 %v443, %v442
        %v476 = vunpack.c.l.b16 %v396
        %v477 = vunpack.c.l.b16 %v397
        %v478 = vunpack.c.l.b16 %v398
        %v479 = vunpack.c.l.b16 %v399
        %v480 = vunpack.c.l.b16 %v400
        %v481 = vunpack.c.l.b16 %v401
        %v482 = vunpack.c.l.b16 %v402
        %v483 = vunpack.c.l.b16 %v403
        %v484 = vunpack.c.l.b16 %v404
        %v485 = vunpack.c.l.b16 %v405
        %v486 = vunpack.c.l.b16 %v406
        %v487 = vunpack.c.l.b16 %v407
        %v488 = vunpack.c.l.b16 %v408
        %v489 = vunpack.c.l.b16 %v409
        %v490 = vunpack.c.l.b16 %v410
        %v491 = vunpack.c.l.b16 %v411
        %v492 = vpack.c.b16 %v477, %v476
        %v493 = vpack.c.b16 %v479, %v478
        %v494 = vpack.c.b16 %v481, %v480
        %v495 = vpack.c.b16 %v483, %v482
        %v496 = vpack.c.b16 %v485, %v484
        %v497 = vpack.c.b16 %v487, %v486
        %v498 = vpack.c.b16 %v489, %v488
        %v499 = vpack.c.b16 %v491, %v490
        %508 = vmatpush.bf16.msra.mxu0 %v499
        %509 = vmatpush.bf16.msra.mxu0 %v498
        %510 = vmatpush.bf16.msra.mxu0 %v497
        %511 = vmatpush.bf16.msra.mxu0 %v496
        %512 = vmatpush.bf16.msra.mxu0 %v495
        %513 = vmatpush.bf16.msra.mxu0 %v494
        %514 = vmatpush.bf16.msra.mxu0 %v493
        %515 = vmatpush.bf16.msra.mxu0 %v492
        %516 = vmatmul.bf16.gmra.mxu0 %v444
        %v517 = vpop.f32.mrf.mxu0
        %v518 = vadd.f32 0.0, %v517
        %v519 = vpop.f32.mrf.mxu0
        %v520 = vadd.f32 0.0, %v519
        %521 = vmatmul.bf16.gmra.mxu0 %v445
        %v522 = vpop.f32.mrf.mxu0
        %v523 = vadd.f32 0.0, %v522
        %v524 = vpop.f32.mrf.mxu0
        %v525 = vadd.f32 0.0, %v524
        %526 = vmatmul.bf16.gmra.mxu0 %v446
        %v527 = vpop.f32.mrf.mxu0
        %v528 = vadd.f32 0.0, %v527
        %v529 = vpop.f32.mrf.mxu0
        %v530 = vadd.f32 0.0, %v529
        %531 = vmatmul.bf16.gmra.mxu0 %v447
        %v532 = vpop.f32.mrf.mxu0
        %v533 = vadd.f32 0.0, %v532
        %v534 = vpop.f32.mrf.mxu0
        %v535 = vadd.f32 0.0, %v534
        %536 = vmatmul.bf16.gmra.mxu0 %v448
        %v537 = vpop.f32.mrf.mxu0
        %v538 = vadd.f32 0.0, %v537
        %v539 = vpop.f32.mrf.mxu0
        %v540 = vadd.f32 0.0, %v539
        %541 = vmatmul.bf16.gmra.mxu0 %v449
        %v542 = vpop.f32.mrf.mxu0
        %v543 = vadd.f32 0.0, %v542
        %v544 = vpop.f32.mrf.mxu0
        %v545 = vadd.f32 0.0, %v544
        %546 = vmatmul.bf16.gmra.mxu0 %v450
        %v547 = vpop.f32.mrf.mxu0
        %v548 = vadd.f32 0.0, %v547
        %v549 = vpop.f32.mrf.mxu0
        %v550 = vadd.f32 0.0, %v549
        %551 = vmatmul.bf16.gmra.mxu0 %v451
        %v552 = vpop.f32.mrf.mxu0
        %v553 = vadd.f32 0.0, %v552
        %v554 = vpop.f32.mrf.mxu0
        %v555 = vadd.f32 0.0, %v554
        %556 = vdwg.mxu0
        %v557 = vadd.f32 %v364, %v518
        %v558 = vadd.f32 %v365, %v520
        %v559 = vadd.f32 %v366, %v523
        %v560 = vadd.f32 %v367, %v525
        %v561 = vadd.f32 %v368, %v528
        %v562 = vadd.f32 %v369, %v530
        %v563 = vadd.f32 %v370, %v533
        %v564 = vadd.f32 %v371, %v535
        %v565 = vadd.f32 %v372, %v538
        %v566 = vadd.f32 %v373, %v540
        %v567 = vadd.f32 %v374, %v543
        %v568 = vadd.f32 %v375, %v545
        %v569 = vadd.f32 %v376, %v548
        %v570 = vadd.f32 %v377, %v550
        %v571 = vadd.f32 %v378, %v553
        %v572 = vadd.f32 %v379, %v555
        %vm573 = vcmask 195584
        %574 = vst.msk [vmem:[#allocation2] sm:$0xff] %vm573, %v557
        %575 = vst.msk [vmem:[#allocation2 + $0x8] sm:$0xff] %vm573, %v558
        %576 = vst.msk [vmem:[#allocation2 + $0x10] sm:$0xff] %vm573, %v559
        %577 = vst.msk [vmem:[#allocation2 + $0x18] sm:$0xff] %vm573, %v560
        %578 = vst.msk [vmem:[#allocation2 + $0x20] sm:$0xff] %vm573, %v561
        %579 = vst.msk [vmem:[#allocation2 + $0x28] sm:$0xff] %vm573, %v562
        %580 = vst.msk [vmem:[#allocation2 + $0x30] sm:$0xff] %vm573, %v563
        %581 = vst.msk [vmem:[#allocation2 + $0x38] sm:$0xff] %vm573, %v564
        %582 = vst.msk [vmem:[#allocation2 + $0x40] sm:$0xff] %vm573, %v565
        %583 = vst.msk [vmem:[#allocation2 + $0x48] sm:$0xff] %vm573, %v566
        %584 = vst.msk [vmem:[#allocation2 + $0x50] sm:$0xff] %vm573, %v567
        %585 = vst.msk [vmem:[#allocation2 + $0x58] sm:$0xff] %vm573, %v568
        %586 = vst.msk [vmem:[#allocation2 + $0x60] sm:$0xff] %vm573, %v569
        %587 = vst.msk [vmem:[#allocation2 + $0x68] sm:$0xff] %vm573, %v570
        %588 = vst.msk [vmem:[#allocation2 + $0x70] sm:$0xff] %vm573, %v571
        %589 = vst.msk [vmem:[#allocation2 + $0x78] sm:$0xff] %vm573, %v572
        %p590 = scmp.eq.s32.totalorder %s20, 1
        // Predicated region
        $region82: #{xxsgcn_forward.8} parent=72 // pred_check
          %p591 = pneg %p590
        $region83: #{xxsgcn_forward.8} parent=72 // pred_check_branch
          %593 = sbr.rel (%p591) target = $region85
        $region84: #{xxsgcn_forward.8} parent=72 // pred_region
          %v594 = vld [vmem:[#allocation2] sm:$0xff]
          %v595 = vld [vmem:[#allocation2 + $0x8] sm:$0xff]
          %v596 = vld [vmem:[#allocation2 + $0x10] sm:$0xff]
          %v597 = vld [vmem:[#allocation2 + $0x18] sm:$0xff]
          %v598 = vld [vmem:[#allocation2 + $0x20] sm:$0xff]
          %v599 = vld [vmem:[#allocation2 + $0x28] sm:$0xff]
          %v600 = vld [vmem:[#allocation2 + $0x30] sm:$0xff]
          %v601 = vld [vmem:[#allocation2 + $0x38] sm:$0xff]
          %v602 = vld [vmem:[#allocation2 + $0x40] sm:$0xff]
          %v603 = vld [vmem:[#allocation2 + $0x48] sm:$0xff]
          %v604 = vld [vmem:[#allocation2 + $0x50] sm:$0xff]
          %v605 = vld [vmem:[#allocation2 + $0x58] sm:$0xff]
          %v606 = vld [vmem:[#allocation2 + $0x60] sm:$0xff]
          %v607 = vld [vmem:[#allocation2 + $0x68] sm:$0xff]
          %v608 = vld [vmem:[#allocation2 + $0x70] sm:$0xff]
          %v609 = vld [vmem:[#allocation2 + $0x78] sm:$0xff]
          %v610 = vpack.c.bf16 %v595, %v594
          %v611 = vpack.c.bf16 %v597, %v596
          %v612 = vpack.c.bf16 %v599, %v598
          %v613 = vpack.c.bf16 %v601, %v600
          %v614 = vpack.c.bf16 %v603, %v602
          %v615 = vpack.c.bf16 %v605, %v604
          %v616 = vpack.c.bf16 %v607, %v606
          %v617 = vpack.c.bf16 %v609, %v608
          %v618 = vld [vmem:[%s2] sm:$0xf]
          %v619 = vld [vmem:[%s2 + $0x4] sm:$0xf]
          %v620 = vld [vmem:[%s2 + $0x8] sm:$0xf]
          %v621 = vld [vmem:[%s3] sm:$0x1]
          %v623 = vperm.slane %v621, 0
          %v628 = vunpack.c.l.b16 %v618
          %v629 = vunpack.c.l.b16 %v619
          %v630 = vunpack.c.l.b16 %v620
          %v631 = vpack.c.b16 %v629, %v628
          %v632 = vpack.c.b16 %v630, %v630
          %v635 = vsel %vm573, %v610, 0
          %v638 = vsel %vm573, %v611, 0
          %v641 = vsel %vm573, %v612, 0
          %v644 = vsel %vm573, %v613, 0
          %v647 = vsel %vm573, %v614, 0
          %v650 = vsel %vm573, %v615, 0
          %v653 = vsel %vm573, %v616, 0
          %v656 = vsel %vm573, %v617, 0
          %vm658 = vcmask 1043456
          %v660 = vsel %vm658, %v632, 0
          %662 = vmatpush.bf16.msra.mxu0 0
          %663 = vmatpush.bf16.msra.mxu0 0
          %664 = vmatpush.bf16.msra.mxu0 0
          %665 = vmatpush.bf16.msra.mxu0 0
          %666 = vmatpush.bf16.msra.mxu0 0
          %667 = vmatpush.bf16.msra.mxu0 0
          %668 = vmatpush.bf16.msra.mxu0 %v660
          %669 = vmatpush.bf16.msra.mxu0 %v631
          %670 = vmatmul.bf16.gmra.mxu0 %v635
          %v671 = vpop.f32.mrf.mxu0
          %v672 = vadd.f32 %v623, %v671
          %v673 = vpop.f32.mrf.mxu0
          %v674 = vadd.f32 %v623, %v673
          %675 = vmatmul.bf16.gmra.mxu0 %v638
          %v676 = vpop.f32.mrf.mxu0
          %v677 = vadd.f32 %v623, %v676
          %v678 = vpop.f32.mrf.mxu0
          %v679 = vadd.f32 %v623, %v678
          %680 = vmatmul.bf16.gmra.mxu0 %v641
          %v681 = vpop.f32.mrf.mxu0
          %v682 = vadd.f32 %v623, %v681
          %v683 = vpop.f32.mrf.mxu0
          %v684 = vadd.f32 %v623, %v683
          %685 = vmatmul.bf16.gmra.mxu0 %v644
          %v686 = vpop.f32.mrf.mxu0
          %v687 = vadd.f32 %v623, %v686
          %v688 = vpop.f32.mrf.mxu0
          %v689 = vadd.f32 %v623, %v688
          %690 = vmatmul.bf16.gmra.mxu0 %v647
          %v691 = vpop.f32.mrf.mxu0
          %v692 = vadd.f32 %v623, %v691
          %v693 = vpop.f32.mrf.mxu0
          %v694 = vadd.f32 %v623, %v693
          %695 = vmatmul.bf16.gmra.mxu0 %v650
          %v696 = vpop.f32.mrf.mxu0
          %v697 = vadd.f32 %v623, %v696
          %v698 = vpop.f32.mrf.mxu0
          %v699 = vadd.f32 %v623, %v698
          %700 = vmatmul.bf16.gmra.mxu0 %v653
          %v701 = vpop.f32.mrf.mxu0
          %v702 = vadd.f32 %v623, %v701
          %v703 = vpop.f32.mrf.mxu0
          %v704 = vadd.f32 %v623, %v703
          %705 = vmatmul.bf16.gmra.mxu0 %v656
          %v706 = vpop.f32.mrf.mxu0
          %v707 = vadd.f32 %v623, %v706
          %v708 = vpop.f32.mrf.mxu0
          %v709 = vadd.f32 %v623, %v708
          %710 = vdwg.mxu0
          %v711 = vmax.f32 %v672, 0.0
          %v712 = vmax.f32 %v674, 0.0
          %v713 = vmax.f32 %v677, 0.0
          %v714 = vmax.f32 %v679, 0.0
          %v715 = vmax.f32 %v682, 0.0
          %v716 = vmax.f32 %v684, 0.0
          %v717 = vmax.f32 %v687, 0.0
          %v718 = vmax.f32 %v689, 0.0
          %v719 = vmax.f32 %v692, 0.0
          %v720 = vmax.f32 %v694, 0.0
          %v721 = vmax.f32 %v697, 0.0
          %v722 = vmax.f32 %v699, 0.0
          %v723 = vmax.f32 %v702, 0.0
          %v724 = vmax.f32 %v704, 0.0
          %v725 = vmax.f32 %v707, 0.0
          %v726 = vmax.f32 %v709, 0.0
          %v727 = vpack.c.bf16 %v711, %v711
          %v728 = vpack.c.bf16 %v712, %v712
          %v729 = vpack.c.bf16 %v713, %v713
          %v730 = vpack.c.bf16 %v714, %v714
          %v731 = vpack.c.bf16 %v715, %v715
          %v732 = vpack.c.bf16 %v716, %v716
          %v733 = vpack.c.bf16 %v717, %v717
          %v734 = vpack.c.bf16 %v718, %v718
          %v735 = vpack.c.bf16 %v719, %v719
          %v736 = vpack.c.bf16 %v720, %v720
          %v737 = vpack.c.bf16 %v721, %v721
          %v738 = vpack.c.bf16 %v722, %v722
          %v739 = vpack.c.bf16 %v723, %v723
          %v740 = vpack.c.bf16 %v724, %v724
          %v741 = vpack.c.bf16 %v725, %v725
          %v742 = vpack.c.bf16 %v726, %v726
          %vm743 = vcmask 388096
          %744 = vst.msk [vmem:[%s340] sm:$0xf] %vm743, %v727
          %745 = vst.msk [vmem:[%s340 + $0x4] sm:$0xf] %vm743, %v728
          %746 = vst.msk [vmem:[%s340 + $0x8] sm:$0xf] %vm743, %v729
          %747 = vst.msk [vmem:[%s340 + $0xc] sm:$0xf] %vm743, %v730
          %748 = vst.msk [vmem:[%s340 + $0x10] sm:$0xf] %vm743, %v731
          %749 = vst.msk [vmem:[%s340 + $0x14] sm:$0xf] %vm743, %v732
          %750 = vst.msk [vmem:[%s340 + $0x18] sm:$0xf] %vm743, %v733
          %751 = vst.msk [vmem:[%s340 + $0x1c] sm:$0xf] %vm743, %v734
          %752 = vst.msk [vmem:[%s340 + $0x20] sm:$0xf] %vm743, %v735
          %753 = vst.msk [vmem:[%s340 + $0x24] sm:$0xf] %vm743, %v736
          %754 = vst.msk [vmem:[%s340 + $0x28] sm:$0xf] %vm743, %v737
          %755 = vst.msk [vmem:[%s340 + $0x2c] sm:$0xf] %vm743, %v738
          %756 = vst.msk [vmem:[%s340 + $0x30] sm:$0xf] %vm743, %v739
          %757 = vst.msk [vmem:[%s340 + $0x34] sm:$0xf] %vm743, %v740
          %758 = vst.msk [vmem:[%s340 + $0x38] sm:$0xf] %vm743, %v741
          %759 = vst.msk [vmem:[%s340 + $0x3c] sm:$0xf] %vm743, %v742
        $region85: #{xxsgcn_forward.8} parent=72 // pred_fallthru
          _
        %s760 = smul.u32 16, %s19
        %p761 = scmp.lt.s32.totalorder %s760, 31
        %s762 = scalar_select %p761, %s760, 31
        %s763 = smul.addr %s762, 4
        %s764 = scalar_lea.vmem %s4, %s763
        // Predicated region
        $region86: #{xxsgcn_forward.8} parent=72 // pred_check
          %p765 = pneg %p141
        $region87: #{xxsgcn_forward.8} parent=72 // pred_check_branch
          %767 = sbr.rel (%p765) target = $region89
        $region88: #{xxsgcn_forward.8} parent=72 // pred_region
          %s768 = smul.u32 16, %s19
        $region89: #{xxsgcn_forward.8} parent=72 // pred_fallthru
          _
      $region73: #{xxsgcn_forward.8} parent=5 // pred_fallthru
        _
      %p769 = scmp.le.s32.totalorder 2, %s10
      // Predicated region
      $region90: #{xxsgcn_forward.8} parent=5 // pred_check
        %p770 = pneg %p769
      $region91: #{xxsgcn_forward.8} parent=5 // pred_check_branch
        %772 = sbr.rel (%p770) target = $region93
      $region92: #{xxsgcn_forward.8} parent=5 // pred_region
        %s773 = ssub.s32 %s10, 2
        // Predicated region
        $region94: #{xxsgcn_forward.8} parent=92 // pred_check
          %p774 = pneg %p147
        $region95: #{xxsgcn_forward.8} parent=92 // pred_check_branch
          %776 = sbr.rel (%p774) target = $region97
        $region96: #{xxsgcn_forward.8} parent=92 // pred_region
          %s777 = smul.u32 16, %s21
          %p778 = scmp.lt.s32.totalorder %s777, 31
          %s779 = scalar_select %p778, %s777, 31
          %s780 = smul.addr %s779, 4
          %s781 = scalar_lea.vmem %s4, %s780
        $region97: #{xxsgcn_forward.8} parent=92 // pred_fallthru
          _
      $region93: #{xxsgcn_forward.8} parent=5 // pred_fallthru
        _
    $region6: #{xxsgcn_forward.8} parent=1 // loop_footer
      %s14 = sadd.s32 1, %s10
    $region7: #{xxsgcn_forward.8} parent=1 // loop_footer_branch
      %9 = sbr.rel target = $region3
    $region8: #{xxsgcn_forward.8} parent=1 // loop_exit
      _

// kernel: xxsgcn_forward.9
$region0: #{xxsgcn_forward.9}
  #allocation0 [shape = 'u32[]', space=smem, size = 0x4, offset = 0x4, fixed_abs, tag = 'smem constant byte address 0x4 - core index']
  #allocation1 [shape = 'u32[72,128]{1,0:T(1,128)}', space=vmem, size = 0x9000, scoped, tag = 'internal scratch']
  #allocation2 [shape = 'f32[8,48]{1,0:T(8,128)}', space=vmem, size = 0x1000, scoped, tag = 'scratch operand']
  %s0 = inlined_call_operand.vmem [shape: bf16[8,256], index: 0, kind: input, shape index: {}]
  %s1 = inlined_call_operand.vmem [shape: bf16[256,48], index: 1, kind: input, shape index: {}]
  %s2 = inlined_call_operand.vmem [shape: f32[96,24], index: 2, kind: input, shape index: {}]
  %s3 = inlined_call_operand.vmem [shape: f32[32,24], index: 3, kind: input, shape index: {}]
  %s4 = inlined_call_operand.vmem [shape: f32[8,2], index: 4, kind: output, shape index: {}]
  %s5 = sld [smem:[#allocation0]]
  $region57: #{xxsgcn_forward.9} parent=0
    _
  %s7 = ssub.s32 1, %s5
  %s8 = scalar_select 0, %s7, %s5
  loop: start=0, step=1, limit=4
  $region2: #{xxsgcn_forward.9} parent=0 // loop_pre_header
    _
  $region3: #{xxsgcn_forward.9} parent=0 // loop_header
    %s10 = sphi 0, %s14
    %p11 = scmp.ge.s32.totalorder %s10, 4
    %s20 = sphi 0, %s22
    %s23 = sphi 0, %s20
    %s24 = sphi 0, %s23
    %s40 = sphi 0, %s24
    %s46 = sphi 0, %s48
    %s49 = sphi 0, %s46
    %s50 = sphi 0, %s49
    %s66 = sphi 0, %s50
    %s70 = sphi 0, %s70
    %s72 = sphi 0, %s70
    %s73 = sphi 0, %s72
    %s87 = sphi 0, %s73
    %s91 = sphi 0, %s91
    %s93 = sphi 0, %s91
    %s94 = sphi 0, %s93
    %s108 = sphi 0, %s94
    %s112 = sphi 0, %s112
    %s114 = sphi 0, %s112
    %s115 = sphi 0, %s114
    %s129 = sphi 0, %s115
  $region4: #{xxsgcn_forward.9} parent=0 // loop_header_branch
    %13 = sbr.rel (%p11) target = $region8
  $region5: #{xxsgcn_forward.9} parent=0 // loop_body
    %s15 = ssub.s32 %s10, 1
    %s16 = ssub.s32 %s10, 2
    %s17 = sadd.s32 %s10, 1
    %s18 = ssub.s32 %s10, %s17
    %p19 = scmp.eq.s32.totalorder %s18, 0
    %s21 = sadd.s32 %s20, 1
    %s22 = scalar_select %p19, %s20, %s21
    %p25 = pneg %p19
    %p26 = scmp.eq.s32.totalorder %s10, 1
    %p27 = por %p25, %p26
    %p28 = scmp.ne.s32.totalorder %s20, %s23
    %p29 = scmp.eq.s32.totalorder %s10, 0
    %p30 = por %p28, %p29
    %p31 = scmp.ne.s32.totalorder %s20, %s23
    %p32 = scmp.eq.s32.totalorder %s15, 1
    %p33 = por %p31, %p32
    %p34 = scmp.ne.s32.totalorder %s23, %s24
    %p35 = scmp.eq.s32.totalorder %s15, 0
    %p36 = por %p34, %p35
    %p37 = scmp.ne.s32.totalorder %s23, %s24
    %p38 = scmp.eq.s32.totalorder %s16, 1
    %p39 = por %p37, %p38
    %p41 = scmp.ne.s32.totalorder %s24, %s40
    %p42 = scmp.eq.s32.totalorder %s16, 0
    %p43 = por %p41, %p42
    %s44 = ssub.s32 %s10, %s17
    %p45 = scmp.eq.s32.totalorder %s44, 0
    %s47 = sadd.s32 %s46, 1
    %s48 = scalar_select %p45, %s46, %s47
    %p51 = pneg %p45
    %p52 = scmp.eq.s32.totalorder %s10, 1
    %p53 = por %p51, %p52
    %p54 = scmp.ne.s32.totalorder %s46, %s49
    %p55 = scmp.eq.s32.totalorder %s10, 0
    %p56 = por %p54, %p55
    %p57 = scmp.ne.s32.totalorder %s46, %s49
    %p58 = scmp.eq.s32.totalorder %s15, 1
    %p59 = por %p57, %p58
    %p60 = scmp.ne.s32.totalorder %s49, %s50
    %p61 = scmp.eq.s32.totalorder %s15, 0
    %p62 = por %p60, %p61
    %p63 = scmp.ne.s32.totalorder %s49, %s50
    %p64 = scmp.eq.s32.totalorder %s16, 1
    %p65 = por %p63, %p64
    %p67 = scmp.ne.s32.totalorder %s50, %s66
    %p68 = scmp.eq.s32.totalorder %s16, 0
    %p69 = por %p67, %p68
    %s71 = sadd.s32 %s70, 1
    %p74 = scmp.eq.s32.totalorder %s10, 1
    %p75 = scmp.ne.s32.totalorder %s70, %s72
    %p76 = scmp.eq.s32.totalorder %s10, 0
    %p77 = por %p75, %p76
    %p78 = scmp.ne.s32.totalorder %s70, %s72
    %p79 = scmp.eq.s32.totalorder %s15, 1
    %p80 = por %p78, %p79
    %p81 = scmp.ne.s32.totalorder %s72, %s73
    %p82 = scmp.eq.s32.totalorder %s15, 0
    %p83 = por %p81, %p82
    %p84 = scmp.ne.s32.totalorder %s72, %s73
    %p85 = scmp.eq.s32.totalorder %s16, 1
    %p86 = por %p84, %p85
    %p88 = scmp.ne.s32.totalorder %s73, %s87
    %p89 = scmp.eq.s32.totalorder %s16, 0
    %p90 = por %p88, %p89
    %s92 = sadd.s32 %s91, 1
    %p95 = scmp.eq.s32.totalorder %s10, 1
    %p96 = scmp.ne.s32.totalorder %s91, %s93
    %p97 = scmp.eq.s32.totalorder %s10, 0
    %p98 = por %p96, %p97
    %p99 = scmp.ne.s32.totalorder %s91, %s93
    %p100 = scmp.eq.s32.totalorder %s15, 1
    %p101 = por %p99, %p100
    %p102 = scmp.ne.s32.totalorder %s93, %s94
    %p103 = scmp.eq.s32.totalorder %s15, 0
    %p104 = por %p102, %p103
    %p105 = scmp.ne.s32.totalorder %s93, %s94
    %p106 = scmp.eq.s32.totalorder %s16, 1
    %p107 = por %p105, %p106
    %p109 = scmp.ne.s32.totalorder %s94, %s108
    %p110 = scmp.eq.s32.totalorder %s16, 0
    %p111 = por %p109, %p110
    %s113 = sadd.s32 %s112, 1
    %p116 = scmp.eq.s32.totalorder %s10, 1
    %p117 = scmp.ne.s32.totalorder %s112, %s114
    %p118 = scmp.eq.s32.totalorder %s10, 0
    %p119 = por %p117, %p118
    %p120 = scmp.ne.s32.totalorder %s112, %s114
    %p121 = scmp.eq.s32.totalorder %s15, 1
    %p122 = por %p120, %p121
    %p123 = scmp.ne.s32.totalorder %s114, %s115
    %p124 = scmp.eq.s32.totalorder %s15, 0
    %p125 = por %p123, %p124
    %p126 = scmp.ne.s32.totalorder %s114, %s115
    %p127 = scmp.eq.s32.totalorder %s16, 1
    %p128 = por %p126, %p127
    %p130 = scmp.ne.s32.totalorder %s115, %s129
    %p131 = scmp.eq.s32.totalorder %s16, 0
    %p132 = por %p130, %p131
    %p133 = scmp.le.s32.totalorder 1, %s10
    %p134 = scmp.lt.s32.totalorder %s10, 3
    %p135 = pnand %p133, %p134
    %p136 = pneg %p135
    // Predicated region
    $region9: #{xxsgcn_forward.9} parent=5 // pred_check
      _
    $region10: #{xxsgcn_forward.9} parent=5 // pred_check_branch
      %138 = sbr.rel (%p135) target = $region12
    $region11: #{xxsgcn_forward.9} parent=5 // pred_region
      %s139 = ssub.s32 %s10, 1
      // Predicated region
      $region13: #{xxsgcn_forward.9} parent=11 // pred_check
        %p140 = pneg %p83
      $region14: #{xxsgcn_forward.9} parent=11 // pred_check_branch
        %142 = sbr.rel (%p140) target = $region16
      $region15: #{xxsgcn_forward.9} parent=11 // pred_region
        _
      $region16: #{xxsgcn_forward.9} parent=11 // pred_fallthru
        _
      // Predicated region
      $region17: #{xxsgcn_forward.9} parent=11 // pred_check
        %p143 = pneg %p104
      $region18: #{xxsgcn_forward.9} parent=11 // pred_check_branch
        %145 = sbr.rel (%p143) target = $region20
      $region19: #{xxsgcn_forward.9} parent=11 // pred_region
        _
      $region20: #{xxsgcn_forward.9} parent=11 // pred_fallthru
        _
    $region12: #{xxsgcn_forward.9} parent=5 // pred_fallthru
      _
    %p146 = scmp.lt.s32.totalorder %s10, 2
    // Predicated region
    $region21: #{xxsgcn_forward.9} parent=5 // pred_check
      %p147 = pneg %p146
    $region22: #{xxsgcn_forward.9} parent=5 // pred_check_branch
      %149 = sbr.rel (%p147) target = $region24
    $region23: #{xxsgcn_forward.9} parent=5 // pred_region
      // Predicated region
      $region25: #{xxsgcn_forward.9} parent=23 // pred_check
        %p150 = pneg %p30
      $region26: #{xxsgcn_forward.9} parent=23 // pred_check_branch
        %152 = sbr.rel (%p150) target = $region28
      $region27: #{xxsgcn_forward.9} parent=23 // pred_region
        %p153 = scmp.lt.s32.totalorder %s10, 1
        %s154 = scalar_select %p153, %s10, 1
        %s155 = smul.addr %s154, 4
        %s156 = scalar_lea.vmem %s0, %s155
      $region28: #{xxsgcn_forward.9} parent=23 // pred_fallthru
        _
      // Predicated region
      $region29: #{xxsgcn_forward.9} parent=23 // pred_check
        %p157 = pneg %p56
      $region30: #{xxsgcn_forward.9} parent=23 // pred_check_branch
        %159 = sbr.rel (%p157) target = $region32
      $region31: #{xxsgcn_forward.9} parent=23 // pred_region
        %s160 = smul.u32 16, %s10
        %p161 = scmp.lt.s32.totalorder %s160, 31
        %s162 = scalar_select %p161, %s160, 31
        %s163 = smul.addr %s162, 4
        %s164 = scalar_lea.vmem %s1, %s163
        %s165 = smul.u32 16, %s10
      $region32: #{xxsgcn_forward.9} parent=23 // pred_fallthru
        _
    $region24: #{xxsgcn_forward.9} parent=5 // pred_fallthru
      _
    %p166 = scmp.le.s32.totalorder 1, %s10
    %p167 = scmp.lt.s32.totalorder %s10, 3
    %p168 = pnand %p166, %p167
    %p169 = pneg %p168
    // Predicated region
    $region33: #{xxsgcn_forward.9} parent=5 // pred_check
      _
    $region34: #{xxsgcn_forward.9} parent=5 // pred_check_branch
      %171 = sbr.rel (%p168) target = $region36
    $region35: #{xxsgcn_forward.9} parent=5 // pred_region
      %s172 = ssub.s32 %s10, 1
      %p173 = scmp.lt.s32.totalorder %s15, 1
      %s174 = scalar_select %p173, %s15, 1
      %s175 = smul.addr %s174, 4
      %s176 = scalar_lea.vmem %s0, %s175
      %p177 = pneg %p36
      %p178 = pneg %p33
      %s179 = smul.u32 16, %s15
      %p180 = scmp.lt.s32.totalorder %s179, 31
      %s181 = scalar_select %p180, %s179, 31
      %s182 = smul.addr %s181, 4
      %s183 = scalar_lea.vmem %s1, %s182
      %p184 = pneg %p62
      %p185 = pneg %p59
      %p186 = pneg %p83
      %p187 = pneg %p80
      %p188 = pneg %p104
      %p189 = pneg %p101
      %p190 = pneg %p125
      %p191 = pneg %p122
      %p192 = scmp.lt.s32.totalorder %s15, 1
      %s193 = scalar_select %p192, %s15, 1
      %s194 = smul.addr %s193, 4
      %s195 = scalar_lea.vmem %s0, %s194
      %s196 = smul.u32 16, %s15
      %p197 = scmp.lt.s32.totalorder %s196, 31
      %s198 = scalar_select %p197, %s196, 31
      %s199 = smul.addr %s198, 4
      %s200 = scalar_lea.vmem %s1, %s199
      %s201 = smul.u32 16, %s15
      %p203 = scmp.eq.s32.totalorder %s15, 0
      // Predicated region
      $region37: #{xxsgcn_forward.9} parent=35 // pred_check
        %p204 = pneg %p203
      $region38: #{xxsgcn_forward.9} parent=35 // pred_check_branch
        %206 = sbr.rel (%p204) target = $region40
      $region39: #{xxsgcn_forward.9} parent=35 // pred_region
        %vm207 = vcmask 392192
        %208 = vst.msk [vmem:[#allocation2] sm:$0xff] %vm207, 0.0
      $region40: #{xxsgcn_forward.9} parent=35 // pred_fallthru
        _
      %v209 = vld [vmem:[#allocation2] sm:$0xff]
      %v210 = vld [vmem:[%s195] sm:$0xf]
      %v211 = vld [vmem:[%s200] sm:$0xf]
      %v212 = vld [vmem:[%s200 + $0x4] sm:$0xf]
      %v213 = vld [vmem:[%s200 + $0x8] sm:$0xf]
      %v214 = vld [vmem:[%s200 + $0xc] sm:$0xf]
      %v215 = vld [vmem:[%s200 + $0x10] sm:$0xf]
      %v216 = vld [vmem:[%s200 + $0x14] sm:$0xf]
      %v217 = vld [vmem:[%s200 + $0x18] sm:$0xf]
      %v218 = vld [vmem:[%s200 + $0x1c] sm:$0xf]
      %v219 = vld [vmem:[%s200 + $0x20] sm:$0xf]
      %v220 = vld [vmem:[%s200 + $0x24] sm:$0xf]
      %v221 = vld [vmem:[%s200 + $0x28] sm:$0xf]
      %v222 = vld [vmem:[%s200 + $0x2c] sm:$0xf]
      %v223 = vld [vmem:[%s200 + $0x30] sm:$0xf]
      %v224 = vld [vmem:[%s200 + $0x34] sm:$0xf]
      %v225 = vld [vmem:[%s200 + $0x38] sm:$0xf]
      %v226 = vld [vmem:[%s200 + $0x3c] sm:$0xf]
      %v243 = vunpack.c.l.b16 %v211
      %v244 = vunpack.c.l.b16 %v212
      %v245 = vunpack.c.l.b16 %v213
      %v246 = vunpack.c.l.b16 %v214
      %v247 = vunpack.c.l.b16 %v215
      %v248 = vunpack.c.l.b16 %v216
      %v249 = vunpack.c.l.b16 %v217
      %v250 = vunpack.c.l.b16 %v218
      %v251 = vunpack.c.l.b16 %v219
      %v252 = vunpack.c.l.b16 %v220
      %v253 = vunpack.c.l.b16 %v221
      %v254 = vunpack.c.l.b16 %v222
      %v255 = vunpack.c.l.b16 %v223
      %v256 = vunpack.c.l.b16 %v224
      %v257 = vunpack.c.l.b16 %v225
      %v258 = vunpack.c.l.b16 %v226
      %v259 = vpack.c.b16 %v244, %v243
      %v260 = vpack.c.b16 %v246, %v245
      %v261 = vpack.c.b16 %v248, %v247
      %v262 = vpack.c.b16 %v250, %v249
      %v263 = vpack.c.b16 %v252, %v251
      %v264 = vpack.c.b16 %v254, %v253
      %v265 = vpack.c.b16 %v256, %v255
      %v266 = vpack.c.b16 %v258, %v257
      %275 = vmatpush.bf16.msra.mxu0 %v266
      %276 = vmatpush.bf16.msra.mxu0 %v265
      %277 = vmatpush.bf16.msra.mxu0 %v264
      %278 = vmatpush.bf16.msra.mxu0 %v263
      %279 = vmatpush.bf16.msra.mxu0 %v262
      %280 = vmatpush.bf16.msra.mxu0 %v261
      %281 = vmatpush.bf16.msra.mxu0 %v260
      %282 = vmatpush.bf16.msra.mxu0 %v259
      %283 = vmatmul.bf16.gmra.mxu0 %v210
      %v284 = vpop.f32.mrf.mxu0
      %v285 = vadd.f32 0.0, %v284
      %v286 = vpop.f32.mrf.mxu0
      %287 = vdwg.mxu0
      %v288 = vadd.f32 %v209, %v285
      %vm289 = vcmask 392192
      %290 = vst.msk [vmem:[#allocation2] sm:$0xff] %vm289, %v288
      %p291 = scmp.eq.s32.totalorder %s15, 1
      // Predicated region
      $region41: #{xxsgcn_forward.9} parent=35 // pred_check
        %p292 = pneg %p291
      $region42: #{xxsgcn_forward.9} parent=35 // pred_check_branch
        %294 = sbr.rel (%p292) target = $region44
      $region43: #{xxsgcn_forward.9} parent=35 // pred_region
        %v295 = vld [vmem:[#allocation2] sm:$0xff]
        %v296 = vld [vmem:[%s2] sm:$0xff]
        %v297 = vld [vmem:[%s2 + $0x8] sm:$0xff]
        %v298 = vld [vmem:[%s2 + $0x10] sm:$0xff]
        %v299 = vld [vmem:[%s2 + $0x18] sm:$0xff]
        %v300 = vld [vmem:[%s2 + $0x20] sm:$0xff]
        %v301 = vld [vmem:[%s2 + $0x28] sm:$0xff]
        %v302 = vpack.c.bf16 %v297, %v296
        %v303 = vpack.c.bf16 %v299, %v298
        %v304 = vpack.c.bf16 %v301, %v300
        %v305 = vld [vmem:[%s3] sm:$0x1]
        %v306 = vpack.c.bf16 %v295, %v295
        %v307 = vperm.slane %v305, 0
        %v309 = vsel %vm289, %v306, 0
        %311 = vmatpush.bf16.msra.mxu0 0
        %312 = vmatpush.bf16.msra.mxu0 0
        %313 = vmatpush.bf16.msra.mxu0 0
        %314 = vmatpush.bf16.msra.mxu0 0
        %315 = vmatpush.bf16.msra.mxu0 0
        %316 = vmatpush.bf16.msra.mxu0 %v304
        %317 = vmatpush.bf16.msra.mxu0 %v303
        %318 = vmatpush.bf16.msra.mxu0 %v302
        %319 = vmatmul.bf16.gmra.mxu0 %v309
        %v320 = vpop.f32.mrf.mxu0
        %v321 = vadd.f32 %v307, %v320
        %v322 = vpop.f32.mrf.mxu0
        %323 = vdwg.mxu0
        %v324 = vmax.f32 %v321, 0.0
        %v325 = vld [vmem:[%s2 + $0x30] sm:$0xff]
        %v326 = vld [vmem:[%s2 + $0x38] sm:$0xff]
        %v327 = vld [vmem:[%s2 + $0x40] sm:$0xff]
        %v328 = vpack.c.bf16 %v326, %v325
        %v329 = vpack.c.bf16 %v327, %v327
        %v330 = vld [vmem:[%s3 + $0x8] sm:$0x1]
        %v331 = vpack.c.bf16 %v324, %v324
        %v332 = vperm.slane %v330, 0
        %vm333 = vcmask 195584
        %v335 = vsel %vm333, %v331, 0
        %vm337 = vcmask 1043456
        %v339 = vsel %vm337, %v329, 0
        %341 = vmatpush.bf16.msra.mxu0 0
        %342 = vmatpush.bf16.msra.mxu0 0
        %343 = vmatpush.bf16.msra.mxu0 0
        %344 = vmatpush.bf16.msra.mxu0 0
        %345 = vmatpush.bf16.msra.mxu0 0
        %346 = vmatpush.bf16.msra.mxu0 0
        %347 = vmatpush.bf16.msra.mxu0 %v339
        %348 = vmatpush.bf16.msra.mxu0 %v328
        %349 = vmatmul.bf16.gmra.mxu0 %v335
        %v350 = vpop.f32.mrf.mxu0
        %v351 = vadd.f32 %v332, %v350
        %v352 = vpop.f32.mrf.mxu0
        %353 = vdwg.mxu0
        %v354 = vmax.f32 %v351, 0.0
        %v355 = vld [vmem:[%s2 + $0x48] sm:$0xff]
        %v356 = vld [vmem:[%s2 + $0x50] sm:$0xf]
        %v357 = vpack.c.bf16 %v356, %v355
        %v358 = vld [vmem:[%s3 + $0x10] sm:$0x1]
        %v359 = vpack.c.bf16 %v354, %v354
        %v360 = vperm.slane %v358, 0
        %vm361 = vcmask 97280
        %v363 = vsel %vm361, %v359, 0
        %vm365 = vcmask 1045504
        %v367 = vsel %vm365, %v357, 0
        %369 = vmatpush.bf16.msra.mxu0 0
        %370 = vmatpush.bf16.msra.mxu0 0
        %371 = vmatpush.bf16.msra.mxu0 0
        %372 = vmatpush.bf16.msra.mxu0 0
        %373 = vmatpush.bf16.msra.mxu0 0
        %374 = vmatpush.bf16.msra.mxu0 0
        %375 = vmatpush.bf16.msra.mxu0 0
        %376 = vmatpush.bf16.msra.mxu0 %v367
        %377 = vmatmul.bf16.gmra.mxu0 %v363
        %v378 = vpop.f32.mrf.mxu0
        %v379 = vadd.f32 %v360, %v378
        %v380 = vpop.f32.mrf.mxu0
        %381 = vdwg.mxu0
        %v382 = vmax.f32 %v379, 0.0
        %v383 = vld [vmem:[%s2 + $0x58] sm:$0xf]
        %v384 = vpack.c.bf16 %v383, %v383
        %v385 = vld [vmem:[%s3 + $0x18] sm:$0x1]
        %v386 = vpack.c.bf16 %v382, %v382
        %v387 = vperm.slane %v385, 0
        %vm388 = vcmask 31744
        %v390 = vsel %vm388, %v386, 0
        %vm392 = vcmask 1041408
        %v394 = vsel %vm392, %v384, 0
        %396 = vmatpush.bf16.msra.mxu0 0
        %397 = vmatpush.bf16.msra.mxu0 0
        %398 = vmatpush.bf16.msra.mxu0 0
        %399 = vmatpush.bf16.msra.mxu0 0
        %400 = vmatpush.bf16.msra.mxu0 0
        %401 = vmatpush.bf16.msra.mxu0 0
        %402 = vmatpush.bf16.msra.mxu0 0
        %403 = vmatpush.bf16.msra.mxu0 %v394
        %404 = vmatmul.bf16.gmra.mxu0 %v390
        %v405 = vpop.f32.mrf.mxu0
        %v406 = vadd.f32 %v387, %v405
        %v407 = vpop.f32.mrf.mxu0
        %408 = vdwg.mxu0
        %vm409 = vcmask 15360
        %410 = vst.msk [vmem:[%s4] sm:$0xff] %vm409, %v406
      $region44: #{xxsgcn_forward.9} parent=35 // pred_fallthru
        _
      // Predicated region
      $region45: #{xxsgcn_forward.9} parent=35 // pred_check
        %p411 = pneg %p122
      $region46: #{xxsgcn_forward.9} parent=35 // pred_check_branch
        %413 = sbr.rel (%p411) target = $region48
      $region47: #{xxsgcn_forward.9} parent=35 // pred_region
        _
      $region48: #{xxsgcn_forward.9} parent=35 // pred_fallthru
        _
      // Predicated region
      $region49: #{xxsgcn_forward.9} parent=35 // pred_check
        %p414 = pneg %p122
      $region50: #{xxsgcn_forward.9} parent=35 // pred_check_branch
        %416 = sbr.rel (%p414) target = $region52
      $region51: #{xxsgcn_forward.9} parent=35 // pred_region
        _
      $region52: #{xxsgcn_forward.9} parent=35 // pred_fallthru
        _
    $region36: #{xxsgcn_forward.9} parent=5 // pred_fallthru
      _
    %p417 = scmp.le.s32.totalorder 2, %s10
    // Predicated region
    $region53: #{xxsgcn_forward.9} parent=5 // pred_check
      %p418 = pneg %p417
    $region54: #{xxsgcn_forward.9} parent=5 // pred_check_branch
      %420 = sbr.rel (%p418) target = $region56
    $region55: #{xxsgcn_forward.9} parent=5 // pred_region
      %s421 = ssub.s32 %s10, 2
    $region56: #{xxsgcn_forward.9} parent=5 // pred_fallthru
      _
  $region6: #{xxsgcn_forward.9} parent=0 // loop_footer
    %s14 = sadd.s32 1, %s10
  $region7: #{xxsgcn_forward.9} parent=0 // loop_footer_branch
    %9 = sbr.rel target = $region3
  $region8: #{xxsgcn_forward.9} parent=0 // loop_exit
    _

</llo_original>
